<compile_context>
chip_gen: v7x
topology: tpu7x:2x2x1
jax: 0.10.0
libtpu: 0.0.40
codegen_flags: <defaults>
</compile_context>

<pallas_src>
import functools

import jax
import jax.numpy as jnp
from jax import lax
from jax.experimental import pallas as pl
from jax.experimental.pallas import tpu as pltpu


# ----------------------------------------------------------------------------
# One-time probe of pltpu.roll: verify sign convention (vs jnp.roll) and that
# it lowers at all; otherwise fall back to jnp.roll.  Must run outside jit.
# ----------------------------------------------------------------------------
@functools.lru_cache(maxsize=None)
def _roll_mode():
    try:
        def k(x_ref, o_ref):
            o_ref[...] = pltpu.roll(x_ref[...], 1, axis=1)
        x = lax.broadcasted_iota(jnp.float32, (8, 256), 1)
        y = pl.pallas_call(
            k, out_shape=jax.ShapeDtypeStruct((8, 256), jnp.float32))(x)
        y0 = float(jax.block_until_ready(y)[0, 0])
        if y0 == 255.0:
            return 0          # pltpu.roll(x, s) == jnp.roll(x, s)
        if y0 == 1.0:
            return 1          # opposite sign convention
    except Exception:
        pass
    return 2                  # conservative fallback: jnp.roll (slice+concat)


# ----------------------------------------------------------------------------
# Pallas kernel: fused forward pass for a (TB, C_in, HW) block of images.
# ----------------------------------------------------------------------------
def _lff_kernel(x_ref, rowm_ref, colm_ref, w1g_ref, b1_ref, wdw3_ref,
                wskc_ref, w2_ref, caw1_ref, caw2_ref, w3b_ref, out_ref,
                *, nf, H, W, TB, roll_mode):
    HW = H * W
    C_in = x_ref.shape[1]
    inv_c = 1.0 / C_in
    inv_hw = 1.0 / HW

    def lane_roll(x, off):
        """out[:, p] = x[:, (p + off) % HW]  (circular within one image)."""
        s = (-off) % HW
        if s == 0:
            return x
        if roll_mode == 0:
            return pltpu.roll(x, s, axis=1)
        if roll_mode == 1:
            return pltpu.roll(x, HW - s, axis=1)
        return jnp.roll(x, s, axis=1)

    def dwconv(u, taps, K, row_m, col_m):
        """Depthwise KxK conv (stride 1, 'same' zero padding, cross-correlation
        like torch.nn.Conv2d) on one image laid out as (C, HW).  Factored
        masks: one row-roll + row-mask per dy, then col roll/mask per dx."""
        half = K // 2
        base = 3 - half                    # offset into the 7-row mask packs
        acc = None
        for kh in range(K):
            dy = kh - half
            if dy == 0:
                u_dy = u                   # row mask is all-ones -> skip
            else:
                u_dy = lane_roll(u, dy * W) * row_m[base + kh:base + kh + 1, :]
            for kw in range(K):
                dx = kw - half
                if dx == 0:
                    s = u_dy               # col mask is all-ones -> skip
                else:
                    s = lane_roll(u_dy, dx) * col_m[base + kw:base + kw + 1, :]
                term = taps[:, kh * K + kw:kh * K + kw + 1] * s
                acc = term if acc is None else acc + term
        return acc

    @pl.loop(0, TB)
    def _(g):
        # Tiny, loop-invariant weight/mask loads (cheap VMEM reads).
        row_m = rowm_ref[...]              # (8, HW) rows 0..6 <-> dy = -3..3
        col_m = colm_ref[...]              # (8, HW) rows 0..6 <-> dx = -3..3
        w1g = w1g_ref[...]                 # (2nf, C_in) bf16, LN gamma folded
        b1 = b1_ref[...]                   # (2nf, 1) f32, LN bias folded
        wdw3 = wdw3_ref[...]               # (2nf, 9)  f32
        wskc = wskc_ref[...]               # (nf, 49)  f32, 3x3 folded into 7x7
        w2 = w2_ref[...]                   # (2nf, nf) bf16
        caw1 = caw1_ref[...]               # (nf//4, nf) f32
        caw2 = caw2_ref[...]               # (nf, nf//4) f32
        w3b = w3b_ref[...]                 # (nf, nf) bf16, residual beta folded

        x = x_ref[g].astype(jnp.float32)   # (C_in, HW) -- one image
        shortcut = x[:nf, :]

        # LayerNorm2d statistics (two-pass variance; affine folded into w1g/b1).
        ones_row = jnp.ones((1, C_in), jnp.float32)
        mu = jnp.dot(ones_row, x, preferred_element_type=jnp.float32) * inv_c
        xc = x - mu
        var = jnp.dot(ones_row, xc * xc,
                      preferred_element_type=jnp.float32) * inv_c
        xn = xc * lax.rsqrt(var + 1e-6)

        # conv1x1_1 (gamma folded into w1g, bln folded into b1)
        t = jnp.dot(w1g, xn.astype(jnp.bfloat16),
                    preferred_element_type=jnp.float32) + b1

        # dw_conv3x3 (depthwise, groups = 2*nf)
        t = dwconv(t, wdw3, 3, row_m, col_m)

        # SimpleGate
        u = t[:nf, :] * t[nf:2 * nf, :]

        # sk_layer / ParallelConvBlock (3x3 branch pre-folded into 7x7 taps)
        u = dwconv(u, wskc, 7, row_m, col_m)

        # conv1x1_2
        v = jnp.dot(w2, u.astype(jnp.bfloat16),
                    preferred_element_type=jnp.float32)

        # SigmoidGate
        v = v[:nf, :] * jax.nn.sigmoid(v[nf:2 * nf, :])

        # CALayer: per-image global average pooling (lane reduction).
        pooled = jnp.sum(v, axis=1, keepdims=True) * inv_hw       # (nf, 1)
        z = jnp.maximum(jnp.dot(caw1, pooled,
                                preferred_element_type=jnp.float32), 0.0)
        scale = jax.nn.sigmoid(jnp.dot(caw2, z,
                                       preferred_element_type=jnp.float32))
        v = v * scale

        # conv1x1_3 (residual beta folded into w3b); y = shortcut + x * beta
        y = shortcut + jnp.dot(w3b, v.astype(jnp.bfloat16),
                               preferred_element_type=jnp.float32)
        out_ref[g] = y.astype(out_ref.dtype)


# ----------------------------------------------------------------------------
# Host-side helpers
# ----------------------------------------------------------------------------
def _vmem_capacity_bytes():
    try:
        return int(pltpu.get_tpu_info().vmem_capacity_bytes)
    except Exception:
        return 64 * 1024 * 1024            # safe lower bound (v7x per-TC VMEM)


def _pick_tb(bn, hw, c_in, nf, budget_bytes):
    """Images per grid step: largest divisor of BN whose double-buffered
    in+out blocks fit the VMEM budget; prefer >=2 grid steps so the
    'parallel' axis can shard across v7x's two TensorCores."""
    per_img = 2 * (c_in + nf) * hw * 4     # double-buffered f32 in + out
    max_tb = max(1, budget_bytes // max(per_img, 1))
    cands = [t for t in range(1, bn + 1) if bn % t == 0 and t <= max_tb] or [1]
    multi = [t for t in cands if bn // t >= 2]
    return max(multi) if multi else max(cands)


def _boundary_masks(H, W):
    """Factored depthwise 'same'-padding masks: rows 0..6 hold the dy / dx =
    -3..3 validity masks for one (H, W) image flattened to HW lanes; row 7 is
    zero padding so each pack is a clean (8, HW) tile."""
    HW = H * W
    p = jnp.arange(HW, dtype=jnp.int32)
    hh = p // W
    ww = p % W
    offs = (jnp.arange(7, dtype=jnp.int32) - 3)[:, None]
    row_m = ((hh[None, :] + offs >= 0) & (hh[None, :] + offs < H))
    col_m = ((ww[None, :] + offs >= 0) & (ww[None, :] + offs < W))
    pad = jnp.zeros((1, HW), jnp.float32)
    row_m = jnp.concatenate([row_m.astype(jnp.float32), pad], axis=0)
    col_m = jnp.concatenate([col_m.astype(jnp.float32), pad], axis=0)
    return row_m, col_m


# ----------------------------------------------------------------------------
# Wrapper
# ----------------------------------------------------------------------------
def lightweight_feature_fusion(x5, params, nf, af):
    B, N, C_in, H, W = x5.shape
    assert C_in == nf + af
    BN, HW = B * N, H * W
    out_dtype = x5.dtype

    # Natural layout: free reshape only, no host transposes.
    x3 = x5.reshape(BN, C_in, HW)

    # --- parameter prep (all folds done once, outside the kernel) ---
    gamma = params["gamma"].astype(jnp.float32)
    bln = params["bln"].astype(jnp.float32)
    w1 = params["w1"].astype(jnp.float32)
    w1g = (w1 * gamma[None, :]).astype(jnp.bfloat16)            # LN gamma folded
    b1 = (w1 @ bln).reshape(2 * nf, 1).astype(jnp.float32)      # LN bias folded
    wdw3 = params["wdw3"].reshape(2 * nf, 9).astype(jnp.float32)
    wskc = (params["wsk7"].astype(jnp.float32)
            .at[:, 2:5, 2:5].add(params["wsk3"].astype(jnp.float32))
            .reshape(nf, 49))                                   # 3x3 folded into 7x7
    w2 = params["w2"].astype(jnp.bfloat16)
    caw1 = params["caw1"].astype(jnp.float32)
    caw2 = params["caw2"].astype(jnp.float32)
    w3b = (params["beta"].reshape(nf, 1).astype(jnp.float32)
           * params["w3"].astype(jnp.float32)).astype(jnp.bfloat16)  # beta folded

    row_m, col_m = _boundary_masks(H, W)
    weights = [w1g, b1, wdw3, wskc, w2, caw1, caw2, w3b]

    cap = _vmem_capacity_bytes()
    TB = _pick_tb(BN, HW, C_in, nf, budget_bytes=cap // 4)
    grid = (BN // TB,)

    needed = 2 * TB * (C_in + nf) * HW * 4 + 2 * 8 * HW * 4 + (1 << 20)
    vmem_limit = int(min(cap * 3 // 4, max(2 * needed, 32 * 1024 * 1024)))

    def const_spec(a):
        nd = a.ndim
        return pl.BlockSpec(a.shape, lambda i, _nd=nd: (0,) * _nd)

    kernel = functools.partial(_lff_kernel, nf=nf, H=H, W=W, TB=TB,
                               roll_mode=_roll_mode())

    out = pl.pallas_call(
        kernel,
        out_shape=jax.ShapeDtypeStruct((BN, nf, HW), out_dtype),
        grid_spec=pltpu.PrefetchScalarGridSpec(
            num_scalar_prefetch=0,
            grid=grid,
            in_specs=[pl.BlockSpec((TB, C_in, HW), lambda i: (i, 0, 0)),
                      const_spec(row_m), const_spec(col_m)]
                     + [const_spec(w) for w in weights],
            out_specs=pl.BlockSpec((TB, nf, HW), lambda i: (i, 0, 0)),
        ),
        compiler_params=pltpu.CompilerParams(
            dimension_semantics=("parallel",),
            vmem_limit_bytes=vmem_limit,
        ),
    )(x3, row_m, col_m, *weights)

    # (BN, nf, HW) -> (B, N, nf, H, W): free reshape, no transpose.
    return out.reshape(B, N, nf, H, W)


# ----------------------------------------------------------------------------
# Pure-JAX reference (semantics check)
# ----------------------------------------------------------------------------
def ref_forward(x5, params, nf, af):
    B, N, C, H, W = x5.shape
    x = x5.reshape(B * N, C, H, W).astype(jnp.float32)
    shortcut = x[:, :nf]

    mu = jnp.mean(x, axis=1, keepdims=True)
    var = jnp.mean((x - mu) ** 2, axis=1, keepdims=True)
    xn = (x - mu) / jnp.sqrt(var + 1e-6)
    xn = xn * params["gamma"][None, :, None, None] + params["bln"][None, :, None, None]

    def conv1x1(u, w):
        return jnp.einsum("oi,bihw->bohw", w, u)

    def dwconv(u, w):  # w: (C, K, K)
        K = w.shape[-1]
        return lax.conv_general_dilated(
            u, w[:, None, :, :], window_strides=(1, 1),
            padding=[(K // 2, K // 2)] * 2,
            dimension_numbers=("NCHW", "OIHW", "NCHW"),
            feature_group_count=u.shape[1])

    t = conv1x1(xn, params["w1"])
    t = dwconv(t, params["wdw3"])
    t = t[:, :nf] * t[:, nf:]                                      # SimpleGate
    t = dwconv(t, params["wsk3"]) + dwconv(t, params["wsk7"])      # ParallelConvBlock
    v = conv1x1(t, params["w2"])
    v = v[:, :nf] * jax.nn.sigmoid(v[:, nf:])                      # SigmoidGate
    pooled = jnp.mean(v, axis=(2, 3), keepdims=True)
    z = jax.nn.relu(conv1x1(pooled, params["caw1"]))
    s = jax.nn.sigmoid(conv1x1(z, params["caw2"]))
    v = v * s                                                      # CALayer
    w_out = conv1x1(v, params["w3"])
    y = shortcut + w_out * params["beta"][None, :, None, None]
    return y.reshape(B, N, nf, H, W)


# ----------------------------------------------------------------------------
if __name__ == "__main__":
    nf, af = 8, 4
    C_in = nf + af
    B, N, H, W = 2, 3, 16, 16

    keys = jax.random.split(jax.random.PRNGKey(0), 12)
    params = {
        "gamma": 1.0 + 0.1 * jax.random.normal(keys[0], (C_in,), jnp.float32),
        "bln":   0.1 * jax.random.normal(keys[1], (C_in,), jnp.float32),
        "w1":    0.1 * jax.random.normal(keys[2], (2 * nf, C_in), jnp.float32),
        "wdw3":  0.1 * jax.random.normal(keys[3], (2 * nf, 3, 3), jnp.float32),
        "wsk3":  0.1 * jax.random.normal(keys[4], (nf, 3, 3), jnp.float32),
        "wsk7":  0.1 * jax.random.normal(keys[5], (nf, 7, 7), jnp.float32),
        "w2":    0.1 * jax.random.normal(keys[6], (2 * nf, nf), jnp.float32),
        "caw1":  0.1 * jax.random.normal(keys[7], (nf // 4, nf), jnp.float32),
        "caw2":  0.1 * jax.random.normal(keys[8], (nf, nf // 4), jnp.float32),
        "w3":    0.1 * jax.random.normal(keys[9], (nf, nf), jnp.float32),
        "beta":  0.1 * jax.random.normal(keys[10], (nf,), jnp.float32),
    }

    x5 = jax.random.normal(keys[11], (B, N, C_in, H, W), jnp.float32)

    out = lightweight_feature_fusion(x5, params, nf, af)
    out = jax.block_until_ready(out)

    ref = ref_forward(x5, params, nf, af)
    assert out.shape == (B, N, nf, H, W)
    max_err = float(jnp.max(jnp.abs(out.astype(jnp.float32) - ref)))
    assert max_err < 2e-3, f"mismatch vs reference: {max_err}"

    print("KERNEL_OK")
</pallas_src>

<mosaic_0001>
module attributes {stable_mosaic.version = 11 : i64} {
  func.func @k(%arg0: memref<8x256xf32, #tpu.memory_space<vmem>>, %arg1: memref<8x256xf32, #tpu.memory_space<vmem>>) attributes {dimension_semantics = [], scalar_prefetch = 0 : i64, scratch_operands = 0 : i64, tpu.core_type = #tpu.core_type<tc>} {
    %c0 = arith.constant 0 : index
    %c0_0 = arith.constant 0 : index
    %0 = vector.load %arg0[%c0, %c0_0] : memref<8x256xf32, #tpu.memory_space<vmem>>, vector<8x256xf32>
    %c1_i32 = arith.constant 1 : i32
    %1 = tpu.dynamic_rotate %0 by %c1_i32 dim 1 : vector<8x256xf32>, i32 -> vector<8x256xf32>
    %c0_1 = arith.constant 0 : index
    %c0_2 = arith.constant 0 : index
    %2 = vector.load %arg1[%c0_1, %c0_2] : memref<8x256xf32, #tpu.memory_space<vmem>>, vector<8x256xf32>
    tpu.vector_store %arg1[%c0_1, %c0_2], %1 {strides = array<i32>} : memref<8x256xf32, #tpu.memory_space<vmem>>, vector<8x256xf32>,
    return
  }
}

module attributes {stable_mosaic.version = 11 : i64} {
  func.func @_lff_kernel(%arg0: i32, %arg1: memref<3x12x256xf32, #tpu.memory_space<vmem>>, %arg2: memref<8x256xf32, #tpu.memory_space<vmem>>, %arg3: memref<8x256xf32, #tpu.memory_space<vmem>>, %arg4: memref<16x12xbf16, #tpu.memory_space<vmem>>, %arg5: memref<16x1xf32, #tpu.memory_space<vmem>>, %arg6: memref<16x9xf32, #tpu.memory_space<vmem>>, %arg7: memref<8x49xf32, #tpu.memory_space<vmem>>, %arg8: memref<16x8xbf16, #tpu.memory_space<vmem>>, %arg9: memref<2x8xf32, #tpu.memory_space<vmem>>, %arg10: memref<8x2xf32, #tpu.memory_space<vmem>>, %arg11: memref<8x8xbf16, #tpu.memory_space<vmem>>, %arg12: memref<3x8x256xf32, #tpu.memory_space<vmem>>) attributes {dimension_semantics = [#tpu.dimension_semantics<parallel>], iteration_bounds = array<i64: 2>, scalar_prefetch = 0 : i64, scratch_operands = 0 : i64, tpu.core_type = #tpu.core_type<tc>, window_params = [{transform_indices = @transform_0, window_bounds = array<i64: 3, 12, 256>}, {pipeline_mode = #tpu.pipeline_mode<synchronous>, transform_indices = @transform_1, window_bounds = array<i64: 8, 256>}, {pipeline_mode = #tpu.pipeline_mode<synchronous>, transform_indices = @transform_2, window_bounds = array<i64: 8, 256>}, {pipeline_mode = #tpu.pipeline_mode<synchronous>, transform_indices = @transform_3, window_bounds = array<i64: 16, 12>}, {pipeline_mode = #tpu.pipeline_mode<synchronous>, transform_indices = @transform_4, window_bounds = array<i64: 16, 1>}, {pipeline_mode = #tpu.pipeline_mode<synchronous>, transform_indices = @transform_5, window_bounds = array<i64: 16, 9>}, {pipeline_mode = #tpu.pipeline_mode<synchronous>, transform_indices = @transform_6, window_bounds = array<i64: 8, 49>}, {pipeline_mode = #tpu.pipeline_mode<synchronous>, transform_indices = @transform_7, window_bounds = array<i64: 16, 8>}, {pipeline_mode = #tpu.pipeline_mode<synchronous>, transform_indices = @transform_8, window_bounds = array<i64: 2, 8>}, {pipeline_mode = #tpu.pipeline_mode<synchronous>, transform_indices = @transform_9, window_bounds = array<i64: 8, 2>}, {pipeline_mode = #tpu.pipeline_mode<synchronous>, transform_indices = @transform_10, window_bounds = array<i64: 8, 8>}, {transform_indices = @transform_11, window_bounds = array<i64: 3, 8, 256>}]} {
    %c0_i32 = arith.constant 0 : i32
    %c3_i32 = arith.constant 3 : i32
    %0 = arith.addi %c0_i32, %c3_i32 : i32
    %c1_i32 = arith.constant 1 : i32
    scf.for %arg13 = %c0_i32 to %0 step %c1_i32  : i32 {
      %c1_i32_1 = arith.constant 1 : i32
      %1 = arith.muli %arg13, %c1_i32_1 : i32
      %c0_i32_2 = arith.constant 0 : i32
      %2 = arith.addi %c0_i32_2, %1 : i32
      %c0 = arith.constant 0 : index
      %c0_3 = arith.constant 0 : index
      %3 = vector.load %arg2[%c0, %c0_3] : memref<8x256xf32, #tpu.memory_space<vmem>>, vector<8x256xf32>
      %c0_4 = arith.constant 0 : index
      %c0_5 = arith.constant 0 : index
      %4 = vector.load %arg3[%c0_4, %c0_5] : memref<8x256xf32, #tpu.memory_space<vmem>>, vector<8x256xf32>
      %c0_6 = arith.constant 0 : index
      %c0_7 = arith.constant 0 : index
      %5 = vector.load %arg4[%c0_6, %c0_7] : memref<16x12xbf16, #tpu.memory_space<vmem>>, vector<16x12xbf16>
      %c0_8 = arith.constant 0 : index
      %c0_9 = arith.constant 0 : index
      %6 = vector.load %arg5[%c0_8, %c0_9] : memref<16x1xf32, #tpu.memory_space<vmem>>, vector<16x1xf32>
      %c0_10 = arith.constant 0 : index
      %c0_11 = arith.constant 0 : index
      %7 = vector.load %arg6[%c0_10, %c0_11] : memref<16x9xf32, #tpu.memory_space<vmem>>, vector<16x9xf32>
      %c0_12 = arith.constant 0 : index
      %c0_13 = arith.constant 0 : index
      %8 = vector.load %arg7[%c0_12, %c0_13] : memref<8x49xf32, #tpu.memory_space<vmem>>, vector<8x49xf32>
      %c0_14 = arith.constant 0 : index
      %c0_15 = arith.constant 0 : index
      %9 = vector.load %arg8[%c0_14, %c0_15] : memref<16x8xbf16, #tpu.memory_space<vmem>>, vector<16x8xbf16>
      %c0_16 = arith.constant 0 : index
      %c0_17 = arith.constant 0 : index
      %10 = vector.load %arg9[%c0_16, %c0_17] : memref<2x8xf32, #tpu.memory_space<vmem>>, vector<2x8xf32>
      %c0_18 = arith.constant 0 : index
      %c0_19 = arith.constant 0 : index
      %11 = vector.load %arg10[%c0_18, %c0_19] : memref<8x2xf32, #tpu.memory_space<vmem>>, vector<8x2xf32>
      %c0_20 = arith.constant 0 : index
      %c0_21 = arith.constant 0 : index
      %12 = vector.load %arg11[%c0_20, %c0_21] : memref<8x8xbf16, #tpu.memory_space<vmem>>, vector<8x8xbf16>
      %13 = arith.index_cast %2 : i32 to index
      %c0_22 = arith.constant 0 : index
      %c0_23 = arith.constant 0 : index
      %14 = vector.load %arg1[%13, %c0_22, %c0_23] : memref<3x12x256xf32, #tpu.memory_space<vmem>>, vector<1x12x256xf32>
      %15 = vector.shape_cast %14 : vector<1x12x256xf32> to vector<12x256xf32>
      %16 = vector.extract_strided_slice %15 {offsets = [0, 0], sizes = [8, 256], strides = [1, 1]} : vector<12x256xf32> to vector<8x256xf32>
      %cst = arith.constant 1.000000e+00 : f32
      %17 = vector.broadcast %cst : f32 to vector<1x12xf32>
      %cst_24 = arith.constant dense<0.000000e+00> : vector<1x256xf32>
      %18 = tpu.matmul %17, %15, %cst_24 {dimension_numbers = #tpu.dot_dimension_numbers<[1], [0], [0], [1], [0, 0, 1, 1], [], []>} : vector<1x12xf32>, vector<12x256xf32>, vector<1x256xf32> -> vector<1x256xf32>
      %cst_25 = arith.constant 0.0833333358 : f32
      %19 = vector.broadcast %cst_25 : f32 to vector<1x256xf32>
      %20 = arith.mulf %18, %19 : vector<1x256xf32>
      %21 = vector.broadcast %20 : vector<1x256xf32> to vector<12x256xf32>
      %22 = arith.subf %15, %21 : vector<12x256xf32>
      %23 = arith.mulf %22, %22 : vector<12x256xf32>
      %cst_26 = arith.constant dense<0.000000e+00> : vector<1x256xf32>
      %24 = tpu.matmul %17, %23, %cst_26 {dimension_numbers = #tpu.dot_dimension_numbers<[1], [0], [0], [1], [0, 0, 1, 1], [], []>} : vector<1x12xf32>, vector<12x256xf32>, vector<1x256xf32> -> vector<1x256xf32>
      %cst_27 = arith.constant 0.0833333358 : f32
      %25 = vector.broadcast %cst_27 : f32 to vector<1x256xf32>
      %26 = arith.mulf %24, %25 : vector<1x256xf32>
      %cst_28 = arith.constant 9.99999997E-7 : f32
      %27 = vector.broadcast %cst_28 : f32 to vector<1x256xf32>
      %28 = arith.addf %26, %27 : vector<1x256xf32>
      %29 = math.rsqrt %28 : vector<1x256xf32>
      %30 = vector.broadcast %29 : vector<1x256xf32> to vector<12x256xf32>
      %31 = arith.mulf %22, %30 : vector<12x256xf32>
      %32 = arith.truncf %31 : vector<12x256xf32> to vector<12x256xbf16>
      %cst_29 = arith.constant dense<0.000000e+00> : vector<16x256xf32>
      %33 = tpu.matmul %5, %32, %cst_29 {dimension_numbers = #tpu.dot_dimension_numbers<[1], [0], [0], [1], [0, 0, 1, 1], [], []>} : vector<16x12xbf16>, vector<12x256xbf16>, vector<16x256xf32> -> vector<16x256xf32>
      %34 = vector.broadcast %6 : vector<16x1xf32> to vector<16x256xf32>
      %35 = arith.addf %33, %34 : vector<16x256xf32>
      %36 = vector.extract_strided_slice %35 {offsets = [0, 240], sizes = [16, 16], strides = [1, 1]} : vector<16x256xf32> to vector<16x16xf32>
      %37 = vector.extract_strided_slice %35 {offsets = [0, 0], sizes = [16, 240], strides = [1, 1]} : vector<16x256xf32> to vector<16x240xf32>
      %38 = tpu.concatenate %36, %37 in 1 : vector<16x16xf32>, vector<16x240xf32> -> vector<16x256xf32>
      %39 = vector.extract_strided_slice %3 {offsets = [2, 0], sizes = [1, 256], strides = [1, 1]} : vector<8x256xf32> to vector<1x256xf32>
      %40 = vector.broadcast %39 : vector<1x256xf32> to vector<16x256xf32>
      %41 = arith.mulf %38, %40 : vector<16x256xf32>
      %42 = vector.extract_strided_slice %41 {offsets = [0, 255], sizes = [16, 1], strides = [1, 1]} : vector<16x256xf32> to vector<16x1xf32>
      %43 = vector.extract_strided_slice %41 {offsets = [0, 0], sizes = [16, 255], strides = [1, 1]} : vector<16x256xf32> to vector<16x255xf32>
      %44 = tpu.concatenate %42, %43 in 1 : vector<16x1xf32>, vector<16x255xf32> -> vector<16x256xf32>
      %45 = vector.extract_strided_slice %4 {offsets = [2, 0], sizes = [1, 256], strides = [1, 1]} : vector<8x256xf32> to vector<1x256xf32>
      %46 = vector.broadcast %45 : vector<1x256xf32> to vector<16x256xf32>
      %47 = arith.mulf %44, %46 : vector<16x256xf32>
      %48 = vector.extract_strided_slice %7 {offsets = [0, 0], sizes = [16, 1], strides = [1, 1]} : vector<16x9xf32> to vector<16x1xf32>
      %49 = vector.broadcast %48 : vector<16x1xf32> to vector<16x256xf32>
      %50 = arith.mulf %49, %47 : vector<16x256xf32>
      %51 = vector.extract_strided_slice %7 {offsets = [0, 1], sizes = [16, 1], strides = [1, 1]} : vector<16x9xf32> to vector<16x1xf32>
      %52 = vector.broadcast %51 : vector<16x1xf32> to vector<16x256xf32>
      %53 = arith.mulf %52, %41 : vector<16x256xf32>
      %54 = arith.addf %50, %53 : vector<16x256xf32>
      %55 = vector.extract_strided_slice %41 {offsets = [0, 1], sizes = [16, 255], strides = [1, 1]} : vector<16x256xf32> to vector<16x255xf32>
      %56 = vector.extract_strided_slice %41 {offsets = [0, 0], sizes = [16, 1], strides = [1, 1]} : vector<16x256xf32> to vector<16x1xf32>
      %57 = tpu.concatenate %55, %56 in 1 : vector<16x255xf32>, vector<16x1xf32> -> vector<16x256xf32>
      %58 = vector.extract_strided_slice %4 {offsets = [4, 0], sizes = [1, 256], strides = [1, 1]} : vector<8x256xf32> to vector<1x256xf32>
      %59 = vector.broadcast %58 : vector<1x256xf32> to vector<16x256xf32>
      %60 = arith.mulf %57, %59 : vector<16x256xf32>
      %61 = vector.extract_strided_slice %7 {offsets = [0, 2], sizes = [16, 1], strides = [1, 1]} : vector<16x9xf32> to vector<16x1xf32>
      %62 = vector.broadcast %61 : vector<16x1xf32> to vector<16x256xf32>
      %63 = arith.mulf %62, %60 : vector<16x256xf32>
      %64 = arith.addf %54, %63 : vector<16x256xf32>
      %65 = vector.extract_strided_slice %35 {offsets = [0, 255], sizes = [16, 1], strides = [1, 1]} : vector<16x256xf32> to vector<16x1xf32>
      %66 = vector.extract_strided_slice %35 {offsets = [0, 0], sizes = [16, 255], strides = [1, 1]} : vector<16x256xf32> to vector<16x255xf32>
      %67 = tpu.concatenate %65, %66 in 1 : vector<16x1xf32>, vector<16x255xf32> -> vector<16x256xf32>
      %68 = vector.extract_strided_slice %4 {offsets = [2, 0], sizes = [1, 256], strides = [1, 1]} : vector<8x256xf32> to vector<1x256xf32>
      %69 = vector.broadcast %68 : vector<1x256xf32> to vector<16x256xf32>
      %70 = arith.mulf %67, %69 : vector<16x256xf32>
      %71 = vector.extract_strided_slice %7 {offsets = [0, 3], sizes = [16, 1], strides = [1, 1]} : vector<16x9xf32> to vector<16x1xf32>
      %72 = vector.broadcast %71 : vector<16x1xf32> to vector<16x256xf32>
      %73 = arith.mulf %72, %70 : vector<16x256xf32>
      %74 = arith.addf %64, %73 : vector<16x256xf32>
      %75 = vector.extract_strided_slice %7 {offsets = [0, 4], sizes = [16, 1], strides = [1, 1]} : vector<16x9xf32> to vector<16x1xf32>
      %76 = vector.broadcast %75 : vector<16x1xf32> to vector<16x256xf32>
      %77 = arith.mulf %76, %35 : vector<16x256xf32>
      %78 = arith.addf %74, %77 : vector<16x256xf32>
      %79 = vector.extract_strided_slice %35 {offsets = [0, 1], sizes = [16, 255], strides = [1, 1]} : vector<16x256xf32> to vector<16x255xf32>
      %80 = vector.extract_strided_slice %35 {offsets = [0, 0], sizes = [16, 1], strides = [1, 1]} : vector<16x256xf32> to vector<16x1xf32>
      %81 = tpu.concatenate %79, %80 in 1 : vector<16x255xf32>, vector<16x1xf32> -> vector<16x256xf32>
      %82 = vector.extract_strided_slice %4 {offsets = [4, 0], sizes = [1, 256], strides = [1, 1]} : vector<8x256xf32> to vector<1x256xf32>
      %83 = vector.broadcast %82 : vector<1x256xf32> to vector<16x256xf32>
      %84 = arith.mulf %81, %83 : vector<16x256xf32>
      %85 = vector.extract_strided_slice %7 {offsets = [0, 5], sizes = [16, 1], strides = [1, 1]} : vector<16x9xf32> to vector<16x1xf32>
      %86 = vector.broadcast %85 : vector<16x1xf32> to vector<16x256xf32>
      %87 = arith.mulf %86, %84 : vector<16x256xf32>
      %88 = arith.addf %78, %87 : vector<16x256xf32>
      %89 = vector.extract_strided_slice %35 {offsets = [0, 16], sizes = [16, 240], strides = [1, 1]} : vector<16x256xf32> to vector<16x240xf32>
      %90 = vector.extract_strided_slice %35 {offsets = [0, 0], sizes = [16, 16], strides = [1, 1]} : vector<16x256xf32> to vector<16x16xf32>
      %91 = tpu.concatenate %89, %90 in 1 : vector<16x240xf32>, vector<16x16xf32> -> vector<16x256xf32>
      %92 = vector.extract_strided_slice %3 {offsets = [4, 0], sizes = [1, 256], strides = [1, 1]} : vector<8x256xf32> to vector<1x256xf32>
      %93 = vector.broadcast %92 : vector<1x256xf32> to vector<16x256xf32>
      %94 = arith.mulf %91, %93 : vector<16x256xf32>
      %95 = vector.extract_strided_slice %94 {offsets = [0, 255], sizes = [16, 1], strides = [1, 1]} : vector<16x256xf32> to vector<16x1xf32>
      %96 = vector.extract_strided_slice %94 {offsets = [0, 0], sizes = [16, 255], strides = [1, 1]} : vector<16x256xf32> to vector<16x255xf32>
      %97 = tpu.concatenate %95, %96 in 1 : vector<16x1xf32>, vector<16x255xf32> -> vector<16x256xf32>
      %98 = vector.extract_strided_slice %4 {offsets = [2, 0], sizes = [1, 256], strides = [1, 1]} : vector<8x256xf32> to vector<1x256xf32>
      %99 = vector.broadcast %98 : vector<1x256xf32> to vector<16x256xf32>
      %100 = arith.mulf %97, %99 : vector<16x256xf32>
      %101 = vector.extract_strided_slice %7 {offsets = [0, 6], sizes = [16, 1], strides = [1, 1]} : vector<16x9xf32> to vector<16x1xf32>
      %102 = vector.broadcast %101 : vector<16x1xf32> to vector<16x256xf32>
      %103 = arith.mulf %102, %100 : vector<16x256xf32>
      %104 = arith.addf %88, %103 : vector<16x256xf32>
      %105 = vector.extract_strided_slice %7 {offsets = [0, 7], sizes = [16, 1], strides = [1, 1]} : vector<16x9xf32> to vector<16x1xf32>
      %106 = vector.broadcast %105 : vector<16x1xf32> to vector<16x256xf32>
      %107 = arith.mulf %106, %94 : vector<16x256xf32>
      %108 = arith.addf %104, %107 : vector<16x256xf32>
      %109 = vector.extract_strided_slice %94 {offsets = [0, 1], sizes = [16, 255], strides = [1, 1]} : vector<16x256xf32> to vector<16x255xf32>
      %110 = vector.extract_strided_slice %94 {offsets = [0, 0], sizes = [16, 1], strides = [1, 1]} : vector<16x256xf32> to vector<16x1xf32>
      %111 = tpu.concatenate %109, %110 in 1 : vector<16x255xf32>, vector<16x1xf32> -> vector<16x256xf32>
      %112 = vector.extract_strided_slice %4 {offsets = [4, 0], sizes = [1, 256], strides = [1, 1]} : vector<8x256xf32> to vector<1x256xf32>
      %113 = vector.broadcast %112 : vector<1x256xf32> to vector<16x256xf32>
      %114 = arith.mulf %111, %113 : vector<16x256xf32>
      %115 = vector.extract_strided_slice %7 {offsets = [0, 8], sizes = [16, 1], strides = [1, 1]} : vector<16x9xf32> to vector<16x1xf32>
      %116 = vector.broadcast %115 : vector<16x1xf32> to vector<16x256xf32>
      %117 = arith.mulf %116, %114 : vector<16x256xf32>
      %118 = arith.addf %108, %117 : vector<16x256xf32>
      %119 = vector.extract_strided_slice %118 {offsets = [0, 0], sizes = [8, 256], strides = [1, 1]} : vector<16x256xf32> to vector<8x256xf32>
      %120 = vector.extract_strided_slice %118 {offsets = [8, 0], sizes = [8, 256], strides = [1, 1]} : vector<16x256xf32> to vector<8x256xf32>
      %121 = arith.mulf %119, %120 : vector<8x256xf32>
      %122 = vector.extract_strided_slice %121 {offsets = [0, 208], sizes = [8, 48], strides = [1, 1]} : vector<8x256xf32> to vector<8x48xf32>
      %123 = vector.extract_strided_slice %121 {offsets = [0, 0], sizes = [8, 208], strides = [1, 1]} : vector<8x256xf32> to vector<8x208xf32>
      %124 = tpu.concatenate %122, %123 in 1 : vector<8x48xf32>, vector<8x208xf32> -> vector<8x256xf32>
      %125 = vector.extract_strided_slice %3 {offsets = [0, 0], sizes = [1, 256], strides = [1, 1]} : vector<8x256xf32> to vector<1x256xf32>
      %126 = vector.broadcast %125 : vector<1x256xf32> to vector<8x256xf32>
      %127 = arith.mulf %124, %126 : vector<8x256xf32>
      %128 = vector.extract_strided_slice %127 {offsets = [0, 253], sizes = [8, 3], strides = [1, 1]} : vector<8x256xf32> to vector<8x3xf32>
      %129 = vector.extract_strided_slice %127 {offsets = [0, 0], sizes = [8, 253], strides = [1, 1]} : vector<8x256xf32> to vector<8x253xf32>
      %130 = tpu.concatenate %128, %129 in 1 : vector<8x3xf32>, vector<8x253xf32> -> vector<8x256xf32>
      %131 = vector.extract_strided_slice %4 {offsets = [0, 0], sizes = [1, 256], strides = [1, 1]} : vector<8x256xf32> to vector<1x256xf32>
      %132 = vector.broadcast %131 : vector<1x256xf32> to vector<8x256xf32>
      %133 = arith.mulf %130, %132 : vector<8x256xf32>
      %134 = vector.extract_strided_slice %8 {offsets = [0, 0], sizes = [8, 1], strides = [1, 1]} : vector<8x49xf32> to vector<8x1xf32>
      %135 = vector.broadcast %134 : vector<8x1xf32> to vector<8x256xf32>
      %136 = arith.mulf %135, %133 : vector<8x256xf32>
      %137 = vector.extract_strided_slice %127 {offsets = [0, 254], sizes = [8, 2], strides = [1, 1]} : vector<8x256xf32> to vector<8x2xf32>
      %138 = vector.extract_strided_slice %127 {offsets = [0, 0], sizes = [8, 254], strides = [1, 1]} : vector<8x256xf32> to vector<8x254xf32>
      %139 = tpu.concatenate %137, %138 in 1 : vector<8x2xf32>, vector<8x254xf32> -> vector<8x256xf32>
      %140 = vector.extract_strided_slice %4 {offsets = [1, 0], sizes = [1, 256], strides = [1, 1]} : vector<8x256xf32> to vector<1x256xf32>
      %141 = vector.broadcast %140 : vector<1x256xf32> to vector<8x256xf32>
      %142 = arith.mulf %139, %141 : vector<8x256xf32>
      %143 = vector.extract_strided_slice %8 {offsets = [0, 1], sizes = [8, 1], strides = [1, 1]} : vector<8x49xf32> to vector<8x1xf32>
      %144 = vector.broadcast %143 : vector<8x1xf32> to vector<8x256xf32>
      %145 = arith.mulf %144, %142 : vector<8x256xf32>
      %146 = arith.addf %136, %145 : vector<8x256xf32>
      %147 = vector.extract_strided_slice %127 {offsets = [0, 255], sizes = [8, 1], strides = [1, 1]} : vector<8x256xf32> to vector<8x1xf32>
      %148 = vector.extract_strided_slice %127 {offsets = [0, 0], sizes = [8, 255], strides = [1, 1]} : vector<8x256xf32> to vector<8x255xf32>
      %149 = tpu.concatenate %147, %148 in 1 : vector<8x1xf32>, vector<8x255xf32> -> vector<8x256xf32>
      %150 = vector.extract_strided_slice %4 {offsets = [2, 0], sizes = [1, 256], strides = [1, 1]} : vector<8x256xf32> to vector<1x256xf32>
      %151 = vector.broadcast %150 : vector<1x256xf32> to vector<8x256xf32>
      %152 = arith.mulf %149, %151 : vector<8x256xf32>
      %153 = vector.extract_strided_slice %8 {offsets = [0, 2], sizes = [8, 1], strides = [1, 1]} : vector<8x49xf32> to vector<8x1xf32>
      %154 = vector.broadcast %153 : vector<8x1xf32> to vector<8x256xf32>
      %155 = arith.mulf %154, %152 : vector<8x256xf32>
      %156 = arith.addf %146, %155 : vector<8x256xf32>
      %157 = vector.extract_strided_slice %8 {offsets = [0, 3], sizes = [8, 1], strides = [1, 1]} : vector<8x49xf32> to vector<8x1xf32>
      %158 = vector.broadcast %157 : vector<8x1xf32> to vector<8x256xf32>
      %159 = arith.mulf %158, %127 : vector<8x256xf32>
      %160 = arith.addf %156, %159 : vector<8x256xf32>
      %161 = vector.extract_strided_slice %127 {offsets = [0, 1], sizes = [8, 255], strides = [1, 1]} : vector<8x256xf32> to vector<8x255xf32>
      %162 = vector.extract_strided_slice %127 {offsets = [0, 0], sizes = [8, 1], strides = [1, 1]} : vector<8x256xf32> to vector<8x1xf32>
      %163 = tpu.concatenate %161, %162 in 1 : vector<8x255xf32>, vector<8x1xf32> -> vector<8x256xf32>
      %164 = vector.extract_strided_slice %4 {offsets = [4, 0], sizes = [1, 256], strides = [1, 1]} : vector<8x256xf32> to vector<1x256xf32>
      %165 = vector.broadcast %164 : vector<1x256xf32> to vector<8x256xf32>
      %166 = arith.mulf %163, %165 : vector<8x256xf32>
      %167 = vector.extract_strided_slice %8 {offsets = [0, 4], sizes = [8, 1], strides = [1, 1]} : vector<8x49xf32> to vector<8x1xf32>
      %168 = vector.broadcast %167 : vector<8x1xf32> to vector<8x256xf32>
      %169 = arith.mulf %168, %166 : vector<8x256xf32>
      %170 = arith.addf %160, %169 : vector<8x256xf32>
      %171 = vector.extract_strided_slice %127 {offsets = [0, 2], sizes = [8, 254], strides = [1, 1]} : vector<8x256xf32> to vector<8x254xf32>
      %172 = vector.extract_strided_slice %127 {offsets = [0, 0], sizes = [8, 2], strides = [1, 1]} : vector<8x256xf32> to vector<8x2xf32>
      %173 = tpu.concatenate %171, %172 in 1 : vector<8x254xf32>, vector<8x2xf32> -> vector<8x256xf32>
      %174 = vector.extract_strided_slice %4 {offsets = [5, 0], sizes = [1, 256], strides = [1, 1]} : vector<8x256xf32> to vector<1x256xf32>
      %175 = vector.broadcast %174 : vector<1x256xf32> to vector<8x256xf32>
      %176 = arith.mulf %173, %175 : vector<8x256xf32>
      %177 = vector.extract_strided_slice %8 {offsets = [0, 5], sizes = [8, 1], strides = [1, 1]} : vector<8x49xf32> to vector<8x1xf32>
      %178 = vector.broadcast %177 : vector<8x1xf32> to vector<8x256xf32>
      %179 = arith.mulf %178, %176 : vector<8x256xf32>
      %180 = arith.addf %170, %179 : vector<8x256xf32>
      %181 = vector.extract_strided_slice %127 {offsets = [0, 3], sizes = [8, 253], strides = [1, 1]} : vector<8x256xf32> to vector<8x253xf32>
      %182 = vector.extract_strided_slice %127 {offsets = [0, 0], sizes = [8, 3], strides = [1, 1]} : vector<8x256xf32> to vector<8x3xf32>
      %183 = tpu.concatenate %181, %182 in 1 : vector<8x253xf32>, vector<8x3xf32> -> vector<8x256xf32>
      %184 = vector.extract_strided_slice %4 {offsets = [6, 0], sizes = [1, 256], strides = [1, 1]} : vector<8x256xf32> to vector<1x256xf32>
      %185 = vector.broadcast %184 : vector<1x256xf32> to vector<8x256xf32>
      %186 = arith.mulf %183, %185 : vector<8x256xf32>
      %187 = vector.extract_strided_slice %8 {offsets = [0, 6], sizes = [8, 1], strides = [1, 1]} : vector<8x49xf32> to vector<8x1xf32>
      %188 = vector.broadcast %187 : vector<8x1xf32> to vector<8x256xf32>
      %189 = arith.mulf %188, %186 : vector<8x256xf32>
      %190 = arith.addf %180, %189 : vector<8x256xf32>
      %191 = vector.extract_strided_slice %121 {offsets = [0, 224], sizes = [8, 32], strides = [1, 1]} : vector<8x256xf32> to vector<8x32xf32>
      %192 = vector.extract_strided_slice %121 {offsets = [0, 0], sizes = [8, 224], strides = [1, 1]} : vector<8x256xf32> to vector<8x224xf32>
      %193 = tpu.concatenate %191, %192 in 1 : vector<8x32xf32>, vector<8x224xf32> -> vector<8x256xf32>
      %194 = vector.extract_strided_slice %3 {offsets = [1, 0], sizes = [1, 256], strides = [1, 1]} : vector<8x256xf32> to vector<1x256xf32>
      %195 = vector.broadcast %194 : vector<1x256xf32> to vector<8x256xf32>
      %196 = arith.mulf %193, %195 : vector<8x256xf32>
      %197 = vector.extract_strided_slice %196 {offsets = [0, 253], sizes = [8, 3], strides = [1, 1]} : vector<8x256xf32> to vector<8x3xf32>
      %198 = vector.extract_strided_slice %196 {offsets = [0, 0], sizes = [8, 253], strides = [1, 1]} : vector<8x256xf32> to vector<8x253xf32>
      %199 = tpu.concatenate %197, %198 in 1 : vector<8x3xf32>, vector<8x253xf32> -> vector<8x256xf32>
      %200 = vector.extract_strided_slice %4 {offsets = [0, 0], sizes = [1, 256], strides = [1, 1]} : vector<8x256xf32> to vector<1x256xf32>
      %201 = vector.broadcast %200 : vector<1x256xf32> to vector<8x256xf32>
      %202 = arith.mulf %199, %201 : vector<8x256xf32>
      %203 = vector.extract_strided_slice %8 {offsets = [0, 7], sizes = [8, 1], strides = [1, 1]} : vector<8x49xf32> to vector<8x1xf32>
      %204 = vector.broadcast %203 : vector<8x1xf32> to vector<8x256xf32>
      %205 = arith.mulf %204, %202 : vector<8x256xf32>
      %206 = arith.addf %190, %205 : vector<8x256xf32>
      %207 = vector.extract_strided_slice %196 {offsets = [0, 254], sizes = [8, 2], strides = [1, 1]} : vector<8x256xf32> to vector<8x2xf32>
      %208 = vector.extract_strided_slice %196 {offsets = [0, 0], sizes = [8, 254], strides = [1, 1]} : vector<8x256xf32> to vector<8x254xf32>
      %209 = tpu.concatenate %207, %208 in 1 : vector<8x2xf32>, vector<8x254xf32> -> vector<8x256xf32>
      %210 = vector.extract_strided_slice %4 {offsets = [1, 0], sizes = [1, 256], strides = [1, 1]} : vector<8x256xf32> to vector<1x256xf32>
      %211 = vector.broadcast %210 : vector<1x256xf32> to vector<8x256xf32>
      %212 = arith.mulf %209, %211 : vector<8x256xf32>
      %213 = vector.extract_strided_slice %8 {offsets = [0, 8], sizes = [8, 1], strides = [1, 1]} : vector<8x49xf32> to vector<8x1xf32>
      %214 = vector.broadcast %213 : vector<8x1xf32> to vector<8x256xf32>
      %215 = arith.mulf %214, %212 : vector<8x256xf32>
      %216 = arith.addf %206, %215 : vector<8x256xf32>
      %217 = vector.extract_strided_slice %196 {offsets = [0, 255], sizes = [8, 1], strides = [1, 1]} : vector<8x256xf32> to vector<8x1xf32>
      %218 = vector.extract_strided_slice %196 {offsets = [0, 0], sizes = [8, 255], strides = [1, 1]} : vector<8x256xf32> to vector<8x255xf32>
      %219 = tpu.concatenate %217, %218 in 1 : vector<8x1xf32>, vector<8x255xf32> -> vector<8x256xf32>
      %220 = vector.extract_strided_slice %4 {offsets = [2, 0], sizes = [1, 256], strides = [1, 1]} : vector<8x256xf32> to vector<1x256xf32>
      %221 = vector.broadcast %220 : vector<1x256xf32> to vector<8x256xf32>
      %222 = arith.mulf %219, %221 : vector<8x256xf32>
      %223 = vector.extract_strided_slice %8 {offsets = [0, 9], sizes = [8, 1], strides = [1, 1]} : vector<8x49xf32> to vector<8x1xf32>
      %224 = vector.broadcast %223 : vector<8x1xf32> to vector<8x256xf32>
      %225 = arith.mulf %224, %222 : vector<8x256xf32>
      %226 = arith.addf %216, %225 : vector<8x256xf32>
      %227 = vector.extract_strided_slice %8 {offsets = [0, 10], sizes = [8, 1], strides = [1, 1]} : vector<8x49xf32> to vector<8x1xf32>
      %228 = vector.broadcast %227 : vector<8x1xf32> to vector<8x256xf32>
      %229 = arith.mulf %228, %196 : vector<8x256xf32>
      %230 = arith.addf %226, %229 : vector<8x256xf32>
      %231 = vector.extract_strided_slice %196 {offsets = [0, 1], sizes = [8, 255], strides = [1, 1]} : vector<8x256xf32> to vector<8x255xf32>
      %232 = vector.extract_strided_slice %196 {offsets = [0, 0], sizes = [8, 1], strides = [1, 1]} : vector<8x256xf32> to vector<8x1xf32>
      %233 = tpu.concatenate %231, %232 in 1 : vector<8x255xf32>, vector<8x1xf32> -> vector<8x256xf32>
      %234 = vector.extract_strided_slice %4 {offsets = [4, 0], sizes = [1, 256], strides = [1, 1]} : vector<8x256xf32> to vector<1x256xf32>
      %235 = vector.broadcast %234 : vector<1x256xf32> to vector<8x256xf32>
      %236 = arith.mulf %233, %235 : vector<8x256xf32>
      %237 = vector.extract_strided_slice %8 {offsets = [0, 11], sizes = [8, 1], strides = [1, 1]} : vector<8x49xf32> to vector<8x1xf32>
      %238 = vector.broadcast %237 : vector<8x1xf32> to vector<8x256xf32>
      %239 = arith.mulf %238, %236 : vector<8x256xf32>
      %240 = arith.addf %230, %239 : vector<8x256xf32>
      %241 = vector.extract_strided_slice %196 {offsets = [0, 2], sizes = [8, 254], strides = [1, 1]} : vector<8x256xf32> to vector<8x254xf32>
      %242 = vector.extract_strided_slice %196 {offsets = [0, 0], sizes = [8, 2], strides = [1, 1]} : vector<8x256xf32> to vector<8x2xf32>
      %243 = tpu.concatenate %241, %242 in 1 : vector<8x254xf32>, vector<8x2xf32> -> vector<8x256xf32>
      %244 = vector.extract_strided_slice %4 {offsets = [5, 0], sizes = [1, 256], strides = [1, 1]} : vector<8x256xf32> to vector<1x256xf32>
      %245 = vector.broadcast %244 : vector<1x256xf32> to vector<8x256xf32>
      %246 = arith.mulf %243, %245 : vector<8x256xf32>
      %247 = vector.extract_strided_slice %8 {offsets = [0, 12], sizes = [8, 1], strides = [1, 1]} : vector<8x49xf32> to vector<8x1xf32>
      %248 = vector.broadcast %247 : vector<8x1xf32> to vector<8x256xf32>
      %249 = arith.mulf %248, %246 : vector<8x256xf32>
      %250 = arith.addf %240, %249 : vector<8x256xf32>
      %251 = vector.extract_strided_slice %196 {offsets = [0, 3], sizes = [8, 253], strides = [1, 1]} : vector<8x256xf32> to vector<8x253xf32>
      %252 = vector.extract_strided_slice %196 {offsets = [0, 0], sizes = [8, 3], strides = [1, 1]} : vector<8x256xf32> to vector<8x3xf32>
      %253 = tpu.concatenate %251, %252 in 1 : vector<8x253xf32>, vector<8x3xf32> -> vector<8x256xf32>
      %254 = vector.extract_strided_slice %4 {offsets = [6, 0], sizes = [1, 256], strides = [1, 1]} : vector<8x256xf32> to vector<1x256xf32>
      %255 = vector.broadcast %254 : vector<1x256xf32> to vector<8x256xf32>
      %256 = arith.mulf %253, %255 : vector<8x256xf32>
      %257 = vector.extract_strided_slice %8 {offsets = [0, 13], sizes = [8, 1], strides = [1, 1]} : vector<8x49xf32> to vector<8x1xf32>
      %258 = vector.broadcast %257 : vector<8x1xf32> to vector<8x256xf32>
      %259 = arith.mulf %258, %256 : vector<8x256xf32>
      %260 = arith.addf %250, %259 : vector<8x256xf32>
      %261 = vector.extract_strided_slice %121 {offsets = [0, 240], sizes = [8, 16], strides = [1, 1]} : vector<8x256xf32> to vector<8x16xf32>
      %262 = vector.extract_strided_slice %121 {offsets = [0, 0], sizes = [8, 240], strides = [1, 1]} : vector<8x256xf32> to vector<8x240xf32>
      %263 = tpu.concatenate %261, %262 in 1 : vector<8x16xf32>, vector<8x240xf32> -> vector<8x256xf32>
      %264 = vector.extract_strided_slice %3 {offsets = [2, 0], sizes = [1, 256], strides = [1, 1]} : vector<8x256xf32> to vector<1x256xf32>
      %265 = vector.broadcast %264 : vector<1x256xf32> to vector<8x256xf32>
      %266 = arith.mulf %263, %265 : vector<8x256xf32>
      %267 = vector.extract_strided_slice %266 {offsets = [0, 253], sizes = [8, 3], strides = [1, 1]} : vector<8x256xf32> to vector<8x3xf32>
      %268 = vector.extract_strided_slice %266 {offsets = [0, 0], sizes = [8, 253], strides = [1, 1]} : vector<8x256xf32> to vector<8x253xf32>
      %269 = tpu.concatenate %267, %268 in 1 : vector<8x3xf32>, vector<8x253xf32> -> vector<8x256xf32>
      %270 = vector.extract_strided_slice %4 {offsets = [0, 0], sizes = [1, 256], strides = [1, 1]} : vector<8x256xf32> to vector<1x256xf32>
      %271 = vector.broadcast %270 : vector<1x256xf32> to vector<8x256xf32>
      %272 = arith.mulf %269, %271 : vector<8x256xf32>
      %273 = vector.extract_strided_slice %8 {offsets = [0, 14], sizes = [8, 1], strides = [1, 1]} : vector<8x49xf32> to vector<8x1xf32>
      %274 = vector.broadcast %273 : vector<8x1xf32> to vector<8x256xf32>
      %275 = arith.mulf %274, %272 : vector<8x256xf32>
      %276 = arith.addf %260, %275 : vector<8x256xf32>
      %277 = vector.extract_strided_slice %266 {offsets = [0, 254], sizes = [8, 2], strides = [1, 1]} : vector<8x256xf32> to vector<8x2xf32>
      %278 = vector.extract_strided_slice %266 {offsets = [0, 0], sizes = [8, 254], strides = [1, 1]} : vector<8x256xf32> to vector<8x254xf32>
      %279 = tpu.concatenate %277, %278 in 1 : vector<8x2xf32>, vector<8x254xf32> -> vector<8x256xf32>
      %280 = vector.extract_strided_slice %4 {offsets = [1, 0], sizes = [1, 256], strides = [1, 1]} : vector<8x256xf32> to vector<1x256xf32>
      %281 = vector.broadcast %280 : vector<1x256xf32> to vector<8x256xf32>
      %282 = arith.mulf %279, %281 : vector<8x256xf32>
      %283 = vector.extract_strided_slice %8 {offsets = [0, 15], sizes = [8, 1], strides = [1, 1]} : vector<8x49xf32> to vector<8x1xf32>
      %284 = vector.broadcast %283 : vector<8x1xf32> to vector<8x256xf32>
      %285 = arith.mulf %284, %282 : vector<8x256xf32>
      %286 = arith.addf %276, %285 : vector<8x256xf32>
      %287 = vector.extract_strided_slice %266 {offsets = [0, 255], sizes = [8, 1], strides = [1, 1]} : vector<8x256xf32> to vector<8x1xf32>
      %288 = vector.extract_strided_slice %266 {offsets = [0, 0], sizes = [8, 255], strides = [1, 1]} : vector<8x256xf32> to vector<8x255xf32>
      %289 = tpu.concatenate %287, %288 in 1 : vector<8x1xf32>, vector<8x255xf32> -> vector<8x256xf32>
      %290 = vector.extract_strided_slice %4 {offsets = [2, 0], sizes = [1, 256], strides = [1, 1]} : vector<8x256xf32> to vector<1x256xf32>
      %291 = vector.broadcast %290 : vector<1x256xf32> to vector<8x256xf32>
      %292 = arith.mulf %289, %291 : vector<8x256xf32>
      %293 = vector.extract_strided_slice %8 {offsets = [0, 16], sizes = [8, 1], strides = [1, 1]} : vector<8x49xf32> to vector<8x1xf32>
      %294 = vector.broadcast %293 : vector<8x1xf32> to vector<8x256xf32>
      %295 = arith.mulf %294, %292 : vector<8x256xf32>
      %296 = arith.addf %286, %295 : vector<8x256xf32>
      %297 = vector.extract_strided_slice %8 {offsets = [0, 17], sizes = [8, 1], strides = [1, 1]} : vector<8x49xf32> to vector<8x1xf32>
      %298 = vector.broadcast %297 : vector<8x1xf32> to vector<8x256xf32>
      %299 = arith.mulf %298, %266 : vector<8x256xf32>
      %300 = arith.addf %296, %299 : vector<8x256xf32>
      %301 = vector.extract_strided_slice %266 {offsets = [0, 1], sizes = [8, 255], strides = [1, 1]} : vector<8x256xf32> to vector<8x255xf32>
      %302 = vector.extract_strided_slice %266 {offsets = [0, 0], sizes = [8, 1], strides = [1, 1]} : vector<8x256xf32> to vector<8x1xf32>
      %303 = tpu.concatenate %301, %302 in 1 : vector<8x255xf32>, vector<8x1xf32> -> vector<8x256xf32>
      %304 = vector.extract_strided_slice %4 {offsets = [4, 0], sizes = [1, 256], strides = [1, 1]} : vector<8x256xf32> to vector<1x256xf32>
      %305 = vector.broadcast %304 : vector<1x256xf32> to vector<8x256xf32>
      %306 = arith.mulf %303, %305 : vector<8x256xf32>
      %307 = vector.extract_strided_slice %8 {offsets = [0, 18], sizes = [8, 1], strides = [1, 1]} : vector<8x49xf32> to vector<8x1xf32>
      %308 = vector.broadcast %307 : vector<8x1xf32> to vector<8x256xf32>
      %309 = arith.mulf %308, %306 : vector<8x256xf32>
      %310 = arith.addf %300, %309 : vector<8x256xf32>
      %311 = vector.extract_strided_slice %266 {offsets = [0, 2], sizes = [8, 254], strides = [1, 1]} : vector<8x256xf32> to vector<8x254xf32>
      %312 = vector.extract_strided_slice %266 {offsets = [0, 0], sizes = [8, 2], strides = [1, 1]} : vector<8x256xf32> to vector<8x2xf32>
      %313 = tpu.concatenate %311, %312 in 1 : vector<8x254xf32>, vector<8x2xf32> -> vector<8x256xf32>
      %314 = vector.extract_strided_slice %4 {offsets = [5, 0], sizes = [1, 256], strides = [1, 1]} : vector<8x256xf32> to vector<1x256xf32>
      %315 = vector.broadcast %314 : vector<1x256xf32> to vector<8x256xf32>
      %316 = arith.mulf %313, %315 : vector<8x256xf32>
      %317 = vector.extract_strided_slice %8 {offsets = [0, 19], sizes = [8, 1], strides = [1, 1]} : vector<8x49xf32> to vector<8x1xf32>
      %318 = vector.broadcast %317 : vector<8x1xf32> to vector<8x256xf32>
      %319 = arith.mulf %318, %316 : vector<8x256xf32>
      %320 = arith.addf %310, %319 : vector<8x256xf32>
      %321 = vector.extract_strided_slice %266 {offsets = [0, 3], sizes = [8, 253], strides = [1, 1]} : vector<8x256xf32> to vector<8x253xf32>
      %322 = vector.extract_strided_slice %266 {offsets = [0, 0], sizes = [8, 3], strides = [1, 1]} : vector<8x256xf32> to vector<8x3xf32>
      %323 = tpu.concatenate %321, %322 in 1 : vector<8x253xf32>, vector<8x3xf32> -> vector<8x256xf32>
      %324 = vector.extract_strided_slice %4 {offsets = [6, 0], sizes = [1, 256], strides = [1, 1]} : vector<8x256xf32> to vector<1x256xf32>
      %325 = vector.broadcast %324 : vector<1x256xf32> to vector<8x256xf32>
      %326 = arith.mulf %323, %325 : vector<8x256xf32>
      %327 = vector.extract_strided_slice %8 {offsets = [0, 20], sizes = [8, 1], strides = [1, 1]} : vector<8x49xf32> to vector<8x1xf32>
      %328 = vector.broadcast %327 : vector<8x1xf32> to vector<8x256xf32>
      %329 = arith.mulf %328, %326 : vector<8x256xf32>
      %330 = arith.addf %320, %329 : vector<8x256xf32>
      %331 = vector.extract_strided_slice %121 {offsets = [0, 253], sizes = [8, 3], strides = [1, 1]} : vector<8x256xf32> to vector<8x3xf32>
      %332 = vector.extract_strided_slice %121 {offsets = [0, 0], sizes = [8, 253], strides = [1, 1]} : vector<8x256xf32> to vector<8x253xf32>
      %333 = tpu.concatenate %331, %332 in 1 : vector<8x3xf32>, vector<8x253xf32> -> vector<8x256xf32>
      %334 = vector.extract_strided_slice %4 {offsets = [0, 0], sizes = [1, 256], strides = [1, 1]} : vector<8x256xf32> to vector<1x256xf32>
      %335 = vector.broadcast %334 : vector<1x256xf32> to vector<8x256xf32>
      %336 = arith.mulf %333, %335 : vector<8x256xf32>
      %337 = vector.extract_strided_slice %8 {offsets = [0, 21], sizes = [8, 1], strides = [1, 1]} : vector<8x49xf32> to vector<8x1xf32>
      %338 = vector.broadcast %337 : vector<8x1xf32> to vector<8x256xf32>
      %339 = arith.mulf %338, %336 : vector<8x256xf32>
      %340 = arith.addf %330, %339 : vector<8x256xf32>
      %341 = vector.extract_strided_slice %121 {offsets = [0, 254], sizes = [8, 2], strides = [1, 1]} : vector<8x256xf32> to vector<8x2xf32>
      %342 = vector.extract_strided_slice %121 {offsets = [0, 0], sizes = [8, 254], strides = [1, 1]} : vector<8x256xf32> to vector<8x254xf32>
      %343 = tpu.concatenate %341, %342 in 1 : vector<8x2xf32>, vector<8x254xf32> -> vector<8x256xf32>
      %344 = vector.extract_strided_slice %4 {offsets = [1, 0], sizes = [1, 256], strides = [1, 1]} : vector<8x256xf32> to vector<1x256xf32>
      %345 = vector.broadcast %344 : vector<1x256xf32> to vector<8x256xf32>
      %346 = arith.mulf %343, %345 : vector<8x256xf32>
      %347 = vector.extract_strided_slice %8 {offsets = [0, 22], sizes = [8, 1], strides = [1, 1]} : vector<8x49xf32> to vector<8x1xf32>
      %348 = vector.broadcast %347 : vector<8x1xf32> to vector<8x256xf32>
      %349 = arith.mulf %348, %346 : vector<8x256xf32>
      %350 = arith.addf %340, %349 : vector<8x256xf32>
      %351 = vector.extract_strided_slice %121 {offsets = [0, 255], sizes = [8, 1], strides = [1, 1]} : vector<8x256xf32> to vector<8x1xf32>
      %352 = vector.extract_strided_slice %121 {offsets = [0, 0], sizes = [8, 255], strides = [1, 1]} : vector<8x256xf32> to vector<8x255xf32>
      %353 = tpu.concatenate %351, %352 in 1 : vector<8x1xf32>, vector<8x255xf32> -> vector<8x256xf32>
      %354 = vector.extract_strided_slice %4 {offsets = [2, 0], sizes = [1, 256], strides = [1, 1]} : vector<8x256xf32> to vector<1x256xf32>
      %355 = vector.broadcast %354 : vector<1x256xf32> to vector<8x256xf32>
      %356 = arith.mulf %353, %355 : vector<8x256xf32>
      %357 = vector.extract_strided_slice %8 {offsets = [0, 23], sizes = [8, 1], strides = [1, 1]} : vector<8x49xf32> to vector<8x1xf32>
      %358 = vector.broadcast %357 : vector<8x1xf32> to vector<8x256xf32>
      %359 = arith.mulf %358, %356 : vector<8x256xf32>
      %360 = arith.addf %350, %359 : vector<8x256xf32>
      %361 = vector.extract_strided_slice %8 {offsets = [0, 24], sizes = [8, 1], strides = [1, 1]} : vector<8x49xf32> to vector<8x1xf32>
      %362 = vector.broadcast %361 : vector<8x1xf32> to vector<8x256xf32>
      %363 = arith.mulf %362, %121 : vector<8x256xf32>
      %364 = arith.addf %360, %363 : vector<8x256xf32>
      %365 = vector.extract_strided_slice %121 {offsets = [0, 1], sizes = [8, 255], strides = [1, 1]} : vector<8x256xf32> to vector<8x255xf32>
      %366 = vector.extract_strided_slice %121 {offsets = [0, 0], sizes = [8, 1], strides = [1, 1]} : vector<8x256xf32> to vector<8x1xf32>
      %367 = tpu.concatenate %365, %366 in 1 : vector<8x255xf32>, vector<8x1xf32> -> vector<8x256xf32>
      %368 = vector.extract_strided_slice %4 {offsets = [4, 0], sizes = [1, 256], strides = [1, 1]} : vector<8x256xf32> to vector<1x256xf32>
      %369 = vector.broadcast %368 : vector<1x256xf32> to vector<8x256xf32>
      %370 = arith.mulf %367, %369 : vector<8x256xf32>
      %371 = vector.extract_strided_slice %8 {offsets = [0, 25], sizes = [8, 1], strides = [1, 1]} : vector<8x49xf32> to vector<8x1xf32>
      %372 = vector.broadcast %371 : vector<8x1xf32> to vector<8x256xf32>
      %373 = arith.mulf %372, %370 : vector<8x256xf32>
      %374 = arith.addf %364, %373 : vector<8x256xf32>
      %375 = vector.extract_strided_slice %121 {offsets = [0, 2], sizes = [8, 254], strides = [1, 1]} : vector<8x256xf32> to vector<8x254xf32>
      %376 = vector.extract_strided_slice %121 {offsets = [0, 0], sizes = [8, 2], strides = [1, 1]} : vector<8x256xf32> to vector<8x2xf32>
      %377 = tpu.concatenate %375, %376 in 1 : vector<8x254xf32>, vector<8x2xf32> -> vector<8x256xf32>
      %378 = vector.extract_strided_slice %4 {offsets = [5, 0], sizes = [1, 256], strides = [1, 1]} : vector<8x256xf32> to vector<1x256xf32>
      %379 = vector.broadcast %378 : vector<1x256xf32> to vector<8x256xf32>
      %380 = arith.mulf %377, %379 : vector<8x256xf32>
      %381 = vector.extract_strided_slice %8 {offsets = [0, 26], sizes = [8, 1], strides = [1, 1]} : vector<8x49xf32> to vector<8x1xf32>
      %382 = vector.broadcast %381 : vector<8x1xf32> to vector<8x256xf32>
      %383 = arith.mulf %382, %380 : vector<8x256xf32>
      %384 = arith.addf %374, %383 : vector<8x256xf32>
      %385 = vector.extract_strided_slice %121 {offsets = [0, 3], sizes = [8, 253], strides = [1, 1]} : vector<8x256xf32> to vector<8x253xf32>
      %386 = vector.extract_strided_slice %121 {offsets = [0, 0], sizes = [8, 3], strides = [1, 1]} : vector<8x256xf32> to vector<8x3xf32>
      %387 = tpu.concatenate %385, %386 in 1 : vector<8x253xf32>, vector<8x3xf32> -> vector<8x256xf32>
      %388 = vector.extract_strided_slice %4 {offsets = [6, 0], sizes = [1, 256], strides = [1, 1]} : vector<8x256xf32> to vector<1x256xf32>
      %389 = vector.broadcast %388 : vector<1x256xf32> to vector<8x256xf32>
      %390 = arith.mulf %387, %389 : vector<8x256xf32>
      %391 = vector.extract_strided_slice %8 {offsets = [0, 27], sizes = [8, 1], strides = [1, 1]} : vector<8x49xf32> to vector<8x1xf32>
      %392 = vector.broadcast %391 : vector<8x1xf32> to vector<8x256xf32>
      %393 = arith.mulf %392, %390 : vector<8x256xf32>
      %394 = arith.addf %384, %393 : vector<8x256xf32>
      %395 = vector.extract_strided_slice %121 {offsets = [0, 16], sizes = [8, 240], strides = [1, 1]} : vector<8x256xf32> to vector<8x240xf32>
      %396 = vector.extract_strided_slice %121 {offsets = [0, 0], sizes = [8, 16], strides = [1, 1]} : vector<8x256xf32> to vector<8x16xf32>
      %397 = tpu.concatenate %395, %396 in 1 : vector<8x240xf32>, vector<8x16xf32> -> vector<8x256xf32>
      %398 = vector.extract_strided_slice %3 {offsets = [4, 0], sizes = [1, 256], strides = [1, 1]} : vector<8x256xf32> to vector<1x256xf32>
      %399 = vector.broadcast %398 : vector<1x256xf32> to vector<8x256xf32>
      %400 = arith.mulf %397, %399 : vector<8x256xf32>
      %401 = vector.extract_strided_slice %400 {offsets = [0, 253], sizes = [8, 3], strides = [1, 1]} : vector<8x256xf32> to vector<8x3xf32>
      %402 = vector.extract_strided_slice %400 {offsets = [0, 0], sizes = [8, 253], strides = [1, 1]} : vector<8x256xf32> to vector<8x253xf32>
      %403 = tpu.concatenate %401, %402 in 1 : vector<8x3xf32>, vector<8x253xf32> -> vector<8x256xf32>
      %404 = vector.extract_strided_slice %4 {offsets = [0, 0], sizes = [1, 256], strides = [1, 1]} : vector<8x256xf32> to vector<1x256xf32>
      %405 = vector.broadcast %404 : vector<1x256xf32> to vector<8x256xf32>
      %406 = arith.mulf %403, %405 : vector<8x256xf32>
      %407 = vector.extract_strided_slice %8 {offsets = [0, 28], sizes = [8, 1], strides = [1, 1]} : vector<8x49xf32> to vector<8x1xf32>
      %408 = vector.broadcast %407 : vector<8x1xf32> to vector<8x256xf32>
      %409 = arith.mulf %408, %406 : vector<8x256xf32>
      %410 = arith.addf %394, %409 : vector<8x256xf32>
      %411 = vector.extract_strided_slice %400 {offsets = [0, 254], sizes = [8, 2], strides = [1, 1]} : vector<8x256xf32> to vector<8x2xf32>
      %412 = vector.extract_strided_slice %400 {offsets = [0, 0], sizes = [8, 254], strides = [1, 1]} : vector<8x256xf32> to vector<8x254xf32>
      %413 = tpu.concatenate %411, %412 in 1 : vector<8x2xf32>, vector<8x254xf32> -> vector<8x256xf32>
      %414 = vector.extract_strided_slice %4 {offsets = [1, 0], sizes = [1, 256], strides = [1, 1]} : vector<8x256xf32> to vector<1x256xf32>
      %415 = vector.broadcast %414 : vector<1x256xf32> to vector<8x256xf32>
      %416 = arith.mulf %413, %415 : vector<8x256xf32>
      %417 = vector.extract_strided_slice %8 {offsets = [0, 29], sizes = [8, 1], strides = [1, 1]} : vector<8x49xf32> to vector<8x1xf32>
      %418 = vector.broadcast %417 : vector<8x1xf32> to vector<8x256xf32>
      %419 = arith.mulf %418, %416 : vector<8x256xf32>
      %420 = arith.addf %410, %419 : vector<8x256xf32>
      %421 = vector.extract_strided_slice %400 {offsets = [0, 255], sizes = [8, 1], strides = [1, 1]} : vector<8x256xf32> to vector<8x1xf32>
      %422 = vector.extract_strided_slice %400 {offsets = [0, 0], sizes = [8, 255], strides = [1, 1]} : vector<8x256xf32> to vector<8x255xf32>
      %423 = tpu.concatenate %421, %422 in 1 : vector<8x1xf32>, vector<8x255xf32> -> vector<8x256xf32>
      %424 = vector.extract_strided_slice %4 {offsets = [2, 0], sizes = [1, 256], strides = [1, 1]} : vector<8x256xf32> to vector<1x256xf32>
      %425 = vector.broadcast %424 : vector<1x256xf32> to vector<8x256xf32>
      %426 = arith.mulf %423, %425 : vector<8x256xf32>
      %427 = vector.extract_strided_slice %8 {offsets = [0, 30], sizes = [8, 1], strides = [1, 1]} : vector<8x49xf32> to vector<8x1xf32>
      %428 = vector.broadcast %427 : vector<8x1xf32> to vector<8x256xf32>
      %429 = arith.mulf %428, %426 : vector<8x256xf32>
      %430 = arith.addf %420, %429 : vector<8x256xf32>
      %431 = vector.extract_strided_slice %8 {offsets = [0, 31], sizes = [8, 1], strides = [1, 1]} : vector<8x49xf32> to vector<8x1xf32>
      %432 = vector.broadcast %431 : vector<8x1xf32> to vector<8x256xf32>
      %433 = arith.mulf %432, %400 : vector<8x256xf32>
      %434 = arith.addf %430, %433 : vector<8x256xf32>
      %435 = vector.extract_strided_slice %400 {offsets = [0, 1], sizes = [8, 255], strides = [1, 1]} : vector<8x256xf32> to vector<8x255xf32>
      %436 = vector.extract_strided_slice %400 {offsets = [0, 0], sizes = [8, 1], strides = [1, 1]} : vector<8x256xf32> to vector<8x1xf32>
      %437 = tpu.concatenate %435, %436 in 1 : vector<8x255xf32>, vector<8x1xf32> -> vector<8x256xf32>
      %438 = vector.extract_strided_slice %4 {offsets = [4, 0], sizes = [1, 256], strides = [1, 1]} : vector<8x256xf32> to vector<1x256xf32>
      %439 = vector.broadcast %438 : vector<1x256xf32> to vector<8x256xf32>
      %440 = arith.mulf %437, %439 : vector<8x256xf32>
      %441 = vector.extract_strided_slice %8 {offsets = [0, 32], sizes = [8, 1], strides = [1, 1]} : vector<8x49xf32> to vector<8x1xf32>
      %442 = vector.broadcast %441 : vector<8x1xf32> to vector<8x256xf32>
      %443 = arith.mulf %442, %440 : vector<8x256xf32>
      %444 = arith.addf %434, %443 : vector<8x256xf32>
      %445 = vector.extract_strided_slice %400 {offsets = [0, 2], sizes = [8, 254], strides = [1, 1]} : vector<8x256xf32> to vector<8x254xf32>
      %446 = vector.extract_strided_slice %400 {offsets = [0, 0], sizes = [8, 2], strides = [1, 1]} : vector<8x256xf32> to vector<8x2xf32>
      %447 = tpu.concatenate %445, %446 in 1 : vector<8x254xf32>, vector<8x2xf32> -> vector<8x256xf32>
      %448 = vector.extract_strided_slice %4 {offsets = [5, 0], sizes = [1, 256], strides = [1, 1]} : vector<8x256xf32> to vector<1x256xf32>
      %449 = vector.broadcast %448 : vector<1x256xf32> to vector<8x256xf32>
      %450 = arith.mulf %447, %449 : vector<8x256xf32>
      %451 = vector.extract_strided_slice %8 {offsets = [0, 33], sizes = [8, 1], strides = [1, 1]} : vector<8x49xf32> to vector<8x1xf32>
      %452 = vector.broadcast %451 : vector<8x1xf32> to vector<8x256xf32>
      %453 = arith.mulf %452, %450 : vector<8x256xf32>
      %454 = arith.addf %444, %453 : vector<8x256xf32>
      %455 = vector.extract_strided_slice %400 {offsets = [0, 3], sizes = [8, 253], strides = [1, 1]} : vector<8x256xf32> to vector<8x253xf32>
      %456 = vector.extract_strided_slice %400 {offsets = [0, 0], sizes = [8, 3], strides = [1, 1]} : vector<8x256xf32> to vector<8x3xf32>
      %457 = tpu.concatenate %455, %456 in 1 : vector<8x253xf32>, vector<8x3xf32> -> vector<8x256xf32>
      %458 = vector.extract_strided_slice %4 {offsets = [6, 0], sizes = [1, 256], strides = [1, 1]} : vector<8x256xf32> to vector<1x256xf32>
      %459 = vector.broadcast %458 : vector<1x256xf32> to vector<8x256xf32>
      %460 = arith.mulf %457, %459 : vector<8x256xf32>
      %461 = vector.extract_strided_slice %8 {offsets = [0, 34], sizes = [8, 1], strides = [1, 1]} : vector<8x49xf32> to vector<8x1xf32>
      %462 = vector.broadcast %461 : vector<8x1xf32> to vector<8x256xf32>
      %463 = arith.mulf %462, %460 : vector<8x256xf32>
      %464 = arith.addf %454, %463 : vector<8x256xf32>
      %465 = vector.extract_strided_slice %121 {offsets = [0, 32], sizes = [8, 224], strides = [1, 1]} : vector<8x256xf32> to vector<8x224xf32>
      %466 = vector.extract_strided_slice %121 {offsets = [0, 0], sizes = [8, 32], strides = [1, 1]} : vector<8x256xf32> to vector<8x32xf32>
      %467 = tpu.concatenate %465, %466 in 1 : vector<8x224xf32>, vector<8x32xf32> -> vector<8x256xf32>
      %468 = vector.extract_strided_slice %3 {offsets = [5, 0], sizes = [1, 256], strides = [1, 1]} : vector<8x256xf32> to vector<1x256xf32>
      %469 = vector.broadcast %468 : vector<1x256xf32> to vector<8x256xf32>
      %470 = arith.mulf %467, %469 : vector<8x256xf32>
      %471 = vector.extract_strided_slice %470 {offsets = [0, 253], sizes = [8, 3], strides = [1, 1]} : vector<8x256xf32> to vector<8x3xf32>
      %472 = vector.extract_strided_slice %470 {offsets = [0, 0], sizes = [8, 253], strides = [1, 1]} : vector<8x256xf32> to vector<8x253xf32>
      %473 = tpu.concatenate %471, %472 in 1 : vector<8x3xf32>, vector<8x253xf32> -> vector<8x256xf32>
      %474 = vector.extract_strided_slice %4 {offsets = [0, 0], sizes = [1, 256], strides = [1, 1]} : vector<8x256xf32> to vector<1x256xf32>
      %475 = vector.broadcast %474 : vector<1x256xf32> to vector<8x256xf32>
      %476 = arith.mulf %473, %475 : vector<8x256xf32>
      %477 = vector.extract_strided_slice %8 {offsets = [0, 35], sizes = [8, 1], strides = [1, 1]} : vector<8x49xf32> to vector<8x1xf32>
      %478 = vector.broadcast %477 : vector<8x1xf32> to vector<8x256xf32>
      %479 = arith.mulf %478, %476 : vector<8x256xf32>
      %480 = arith.addf %464, %479 : vector<8x256xf32>
      %481 = vector.extract_strided_slice %470 {offsets = [0, 254], sizes = [8, 2], strides = [1, 1]} : vector<8x256xf32> to vector<8x2xf32>
      %482 = vector.extract_strided_slice %470 {offsets = [0, 0], sizes = [8, 254], strides = [1, 1]} : vector<8x256xf32> to vector<8x254xf32>
      %483 = tpu.concatenate %481, %482 in 1 : vector<8x2xf32>, vector<8x254xf32> -> vector<8x256xf32>
      %484 = vector.extract_strided_slice %4 {offsets = [1, 0], sizes = [1, 256], strides = [1, 1]} : vector<8x256xf32> to vector<1x256xf32>
      %485 = vector.broadcast %484 : vector<1x256xf32> to vector<8x256xf32>
      %486 = arith.mulf %483, %485 : vector<8x256xf32>
      %487 = vector.extract_strided_slice %8 {offsets = [0, 36], sizes = [8, 1], strides = [1, 1]} : vector<8x49xf32> to vector<8x1xf32>
      %488 = vector.broadcast %487 : vector<8x1xf32> to vector<8x256xf32>
      %489 = arith.mulf %488, %486 : vector<8x256xf32>
      %490 = arith.addf %480, %489 : vector<8x256xf32>
      %491 = vector.extract_strided_slice %470 {offsets = [0, 255], sizes = [8, 1], strides = [1, 1]} : vector<8x256xf32> to vector<8x1xf32>
      %492 = vector.extract_strided_slice %470 {offsets = [0, 0], sizes = [8, 255], strides = [1, 1]} : vector<8x256xf32> to vector<8x255xf32>
      %493 = tpu.concatenate %491, %492 in 1 : vector<8x1xf32>, vector<8x255xf32> -> vector<8x256xf32>
      %494 = vector.extract_strided_slice %4 {offsets = [2, 0], sizes = [1, 256], strides = [1, 1]} : vector<8x256xf32> to vector<1x256xf32>
      %495 = vector.broadcast %494 : vector<1x256xf32> to vector<8x256xf32>
      %496 = arith.mulf %493, %495 : vector<8x256xf32>
      %497 = vector.extract_strided_slice %8 {offsets = [0, 37], sizes = [8, 1], strides = [1, 1]} : vector<8x49xf32> to vector<8x1xf32>
      %498 = vector.broadcast %497 : vector<8x1xf32> to vector<8x256xf32>
      %499 = arith.mulf %498, %496 : vector<8x256xf32>
      %500 = arith.addf %490, %499 : vector<8x256xf32>
      %501 = vector.extract_strided_slice %8 {offsets = [0, 38], sizes = [8, 1], strides = [1, 1]} : vector<8x49xf32> to vector<8x1xf32>
      %502 = vector.broadcast %501 : vector<8x1xf32> to vector<8x256xf32>
      %503 = arith.mulf %502, %470 : vector<8x256xf32>
      %504 = arith.addf %500, %503 : vector<8x256xf32>
      %505 = vector.extract_strided_slice %470 {offsets = [0, 1], sizes = [8, 255], strides = [1, 1]} : vector<8x256xf32> to vector<8x255xf32>
      %506 = vector.extract_strided_slice %470 {offsets = [0, 0], sizes = [8, 1], strides = [1, 1]} : vector<8x256xf32> to vector<8x1xf32>
      %507 = tpu.concatenate %505, %506 in 1 : vector<8x255xf32>, vector<8x1xf32> -> vector<8x256xf32>
      %508 = vector.extract_strided_slice %4 {offsets = [4, 0], sizes = [1, 256], strides = [1, 1]} : vector<8x256xf32> to vector<1x256xf32>
      %509 = vector.broadcast %508 : vector<1x256xf32> to vector<8x256xf32>
      %510 = arith.mulf %507, %509 : vector<8x256xf32>
      %511 = vector.extract_strided_slice %8 {offsets = [0, 39], sizes = [8, 1], strides = [1, 1]} : vector<8x49xf32> to vector<8x1xf32>
      %512 = vector.broadcast %511 : vector<8x1xf32> to vector<8x256xf32>
      %513 = arith.mulf %512, %510 : vector<8x256xf32>
      %514 = arith.addf %504, %513 : vector<8x256xf32>
      %515 = vector.extract_strided_slice %470 {offsets = [0, 2], sizes = [8, 254], strides = [1, 1]} : vector<8x256xf32> to vector<8x254xf32>
      %516 = vector.extract_strided_slice %470 {offsets = [0, 0], sizes = [8, 2], strides = [1, 1]} : vector<8x256xf32> to vector<8x2xf32>
      %517 = tpu.concatenate %515, %516 in 1 : vector<8x254xf32>, vector<8x2xf32> -> vector<8x256xf32>
      %518 = vector.extract_strided_slice %4 {offsets = [5, 0], sizes = [1, 256], strides = [1, 1]} : vector<8x256xf32> to vector<1x256xf32>
      %519 = vector.broadcast %518 : vector<1x256xf32> to vector<8x256xf32>
      %520 = arith.mulf %517, %519 : vector<8x256xf32>
      %521 = vector.extract_strided_slice %8 {offsets = [0, 40], sizes = [8, 1], strides = [1, 1]} : vector<8x49xf32> to vector<8x1xf32>
      %522 = vector.broadcast %521 : vector<8x1xf32> to vector<8x256xf32>
      %523 = arith.mulf %522, %520 : vector<8x256xf32>
      %524 = arith.addf %514, %523 : vector<8x256xf32>
      %525 = vector.extract_strided_slice %470 {offsets = [0, 3], sizes = [8, 253], strides = [1, 1]} : vector<8x256xf32> to vector<8x253xf32>
      %526 = vector.extract_strided_slice %470 {offsets = [0, 0], sizes = [8, 3], strides = [1, 1]} : vector<8x256xf32> to vector<8x3xf32>
      %527 = tpu.concatenate %525, %526 in 1 : vector<8x253xf32>, vector<8x3xf32> -> vector<8x256xf32>
      %528 = vector.extract_strided_slice %4 {offsets = [6, 0], sizes = [1, 256], strides = [1, 1]} : vector<8x256xf32> to vector<1x256xf32>
      %529 = vector.broadcast %528 : vector<1x256xf32> to vector<8x256xf32>
      %530 = arith.mulf %527, %529 : vector<8x256xf32>
      %531 = vector.extract_strided_slice %8 {offsets = [0, 41], sizes = [8, 1], strides = [1, 1]} : vector<8x49xf32> to vector<8x1xf32>
      %532 = vector.broadcast %531 : vector<8x1xf32> to vector<8x256xf32>
      %533 = arith.mulf %532, %530 : vector<8x256xf32>
      %534 = arith.addf %524, %533 : vector<8x256xf32>
      %535 = vector.extract_strided_slice %121 {offsets = [0, 48], sizes = [8, 208], strides = [1, 1]} : vector<8x256xf32> to vector<8x208xf32>
      %536 = vector.extract_strided_slice %121 {offsets = [0, 0], sizes = [8, 48], strides = [1, 1]} : vector<8x256xf32> to vector<8x48xf32>
      %537 = tpu.concatenate %535, %536 in 1 : vector<8x208xf32>, vector<8x48xf32> -> vector<8x256xf32>
      %538 = vector.extract_strided_slice %3 {offsets = [6, 0], sizes = [1, 256], strides = [1, 1]} : vector<8x256xf32> to vector<1x256xf32>
      %539 = vector.broadcast %538 : vector<1x256xf32> to vector<8x256xf32>
      %540 = arith.mulf %537, %539 : vector<8x256xf32>
      %541 = vector.extract_strided_slice %540 {offsets = [0, 253], sizes = [8, 3], strides = [1, 1]} : vector<8x256xf32> to vector<8x3xf32>
      %542 = vector.extract_strided_slice %540 {offsets = [0, 0], sizes = [8, 253], strides = [1, 1]} : vector<8x256xf32> to vector<8x253xf32>
      %543 = tpu.concatenate %541, %542 in 1 : vector<8x3xf32>, vector<8x253xf32> -> vector<8x256xf32>
      %544 = vector.extract_strided_slice %4 {offsets = [0, 0], sizes = [1, 256], strides = [1, 1]} : vector<8x256xf32> to vector<1x256xf32>
      %545 = vector.broadcast %544 : vector<1x256xf32> to vector<8x256xf32>
      %546 = arith.mulf %543, %545 : vector<8x256xf32>
      %547 = vector.extract_strided_slice %8 {offsets = [0, 42], sizes = [8, 1], strides = [1, 1]} : vector<8x49xf32> to vector<8x1xf32>
      %548 = vector.broadcast %547 : vector<8x1xf32> to vector<8x256xf32>
      %549 = arith.mulf %548, %546 : vector<8x256xf32>
      %550 = arith.addf %534, %549 : vector<8x256xf32>
      %551 = vector.extract_strided_slice %540 {offsets = [0, 254], sizes = [8, 2], strides = [1, 1]} : vector<8x256xf32> to vector<8x2xf32>
      %552 = vector.extract_strided_slice %540 {offsets = [0, 0], sizes = [8, 254], strides = [1, 1]} : vector<8x256xf32> to vector<8x254xf32>
      %553 = tpu.concatenate %551, %552 in 1 : vector<8x2xf32>, vector<8x254xf32> -> vector<8x256xf32>
      %554 = vector.extract_strided_slice %4 {offsets = [1, 0], sizes = [1, 256], strides = [1, 1]} : vector<8x256xf32> to vector<1x256xf32>
      %555 = vector.broadcast %554 : vector<1x256xf32> to vector<8x256xf32>
      %556 = arith.mulf %553, %555 : vector<8x256xf32>
      %557 = vector.extract_strided_slice %8 {offsets = [0, 43], sizes = [8, 1], strides = [1, 1]} : vector<8x49xf32> to vector<8x1xf32>
      %558 = vector.broadcast %557 : vector<8x1xf32> to vector<8x256xf32>
      %559 = arith.mulf %558, %556 : vector<8x256xf32>
      %560 = arith.addf %550, %559 : vector<8x256xf32>
      %561 = vector.extract_strided_slice %540 {offsets = [0, 255], sizes = [8, 1], strides = [1, 1]} : vector<8x256xf32> to vector<8x1xf32>
      %562 = vector.extract_strided_slice %540 {offsets = [0, 0], sizes = [8, 255], strides = [1, 1]} : vector<8x256xf32> to vector<8x255xf32>
      %563 = tpu.concatenate %561, %562 in 1 : vector<8x1xf32>, vector<8x255xf32> -> vector<8x256xf32>
      %564 = vector.extract_strided_slice %4 {offsets = [2, 0], sizes = [1, 256], strides = [1, 1]} : vector<8x256xf32> to vector<1x256xf32>
      %565 = vector.broadcast %564 : vector<1x256xf32> to vector<8x256xf32>
      %566 = arith.mulf %563, %565 : vector<8x256xf32>
      %567 = vector.extract_strided_slice %8 {offsets = [0, 44], sizes = [8, 1], strides = [1, 1]} : vector<8x49xf32> to vector<8x1xf32>
      %568 = vector.broadcast %567 : vector<8x1xf32> to vector<8x256xf32>
      %569 = arith.mulf %568, %566 : vector<8x256xf32>
      %570 = arith.addf %560, %569 : vector<8x256xf32>
      %571 = vector.extract_strided_slice %8 {offsets = [0, 45], sizes = [8, 1], strides = [1, 1]} : vector<8x49xf32> to vector<8x1xf32>
      %572 = vector.broadcast %571 : vector<8x1xf32> to vector<8x256xf32>
      %573 = arith.mulf %572, %540 : vector<8x256xf32>
      %574 = arith.addf %570, %573 : vector<8x256xf32>
      %575 = vector.extract_strided_slice %540 {offsets = [0, 1], sizes = [8, 255], strides = [1, 1]} : vector<8x256xf32> to vector<8x255xf32>
      %576 = vector.extract_strided_slice %540 {offsets = [0, 0], sizes = [8, 1], strides = [1, 1]} : vector<8x256xf32> to vector<8x1xf32>
      %577 = tpu.concatenate %575, %576 in 1 : vector<8x255xf32>, vector<8x1xf32> -> vector<8x256xf32>
      %578 = vector.extract_strided_slice %4 {offsets = [4, 0], sizes = [1, 256], strides = [1, 1]} : vector<8x256xf32> to vector<1x256xf32>
      %579 = vector.broadcast %578 : vector<1x256xf32> to vector<8x256xf32>
      %580 = arith.mulf %577, %579 : vector<8x256xf32>
      %581 = vector.extract_strided_slice %8 {offsets = [0, 46], sizes = [8, 1], strides = [1, 1]} : vector<8x49xf32> to vector<8x1xf32>
      %582 = vector.broadcast %581 : vector<8x1xf32> to vector<8x256xf32>
      %583 = arith.mulf %582, %580 : vector<8x256xf32>
      %584 = arith.addf %574, %583 : vector<8x256xf32>
      %585 = vector.extract_strided_slice %540 {offsets = [0, 2], sizes = [8, 254], strides = [1, 1]} : vector<8x256xf32> to vector<8x254xf32>
      %586 = vector.extract_strided_slice %540 {offsets = [0, 0], sizes = [8, 2], strides = [1, 1]} : vector<8x256xf32> to vector<8x2xf32>
      %587 = tpu.concatenate %585, %586 in 1 : vector<8x254xf32>, vector<8x2xf32> -> vector<8x256xf32>
      %588 = vector.extract_strided_slice %4 {offsets = [5, 0], sizes = [1, 256], strides = [1, 1]} : vector<8x256xf32> to vector<1x256xf32>
      %589 = vector.broadcast %588 : vector<1x256xf32> to vector<8x256xf32>
      %590 = arith.mulf %587, %589 : vector<8x256xf32>
      %591 = vector.extract_strided_slice %8 {offsets = [0, 47], sizes = [8, 1], strides = [1, 1]} : vector<8x49xf32> to vector<8x1xf32>
      %592 = vector.broadcast %591 : vector<8x1xf32> to vector<8x256xf32>
      %593 = arith.mulf %592, %590 : vector<8x256xf32>
      %594 = arith.addf %584, %593 : vector<8x256xf32>
      %595 = vector.extract_strided_slice %540 {offsets = [0, 3], sizes = [8, 253], strides = [1, 1]} : vector<8x256xf32> to vector<8x253xf32>
      %596 = vector.extract_strided_slice %540 {offsets = [0, 0], sizes = [8, 3], strides = [1, 1]} : vector<8x256xf32> to vector<8x3xf32>
      %597 = tpu.concatenate %595, %596 in 1 : vector<8x253xf32>, vector<8x3xf32> -> vector<8x256xf32>
      %598 = vector.extract_strided_slice %4 {offsets = [6, 0], sizes = [1, 256], strides = [1, 1]} : vector<8x256xf32> to vector<1x256xf32>
      %599 = vector.broadcast %598 : vector<1x256xf32> to vector<8x256xf32>
      %600 = arith.mulf %597, %599 : vector<8x256xf32>
      %601 = vector.extract_strided_slice %8 {offsets = [0, 48], sizes = [8, 1], strides = [1, 1]} : vector<8x49xf32> to vector<8x1xf32>
      %602 = vector.broadcast %601 : vector<8x1xf32> to vector<8x256xf32>
      %603 = arith.mulf %602, %600 : vector<8x256xf32>
      %604 = arith.addf %594, %603 : vector<8x256xf32>
      %605 = arith.truncf %604 : vector<8x256xf32> to vector<8x256xbf16>
      %cst_30 = arith.constant dense<0.000000e+00> : vector<16x256xf32>
      %606 = tpu.matmul %9, %605, %cst_30 {dimension_numbers = #tpu.dot_dimension_numbers<[1], [0], [0], [1], [0, 0, 1, 1], [], []>} : vector<16x8xbf16>, vector<8x256xbf16>, vector<16x256xf32> -> vector<16x256xf32>
      %607 = vector.extract_strided_slice %606 {offsets = [0, 0], sizes = [8, 256], strides = [1, 1]} : vector<16x256xf32> to vector<8x256xf32>
      %608 = vector.extract_strided_slice %606 {offsets = [8, 0], sizes = [8, 256], strides = [1, 1]} : vector<16x256xf32> to vector<8x256xf32>
      %609 = arith.negf %608 : vector<8x256xf32>
      %610 = math.exp %609 : vector<8x256xf32>
      %cst_31 = arith.constant 1.000000e+00 : f32
      %611 = vector.broadcast %cst_31 : f32 to vector<8x256xf32>
      %612 = arith.addf %611, %610 : vector<8x256xf32>
      %613 = arith.divf %611, %612 : vector<8x256xf32>
      %614 = arith.mulf %607, %613 : vector<8x256xf32>
      %cst_32 = arith.constant dense<0.000000e+00> : vector<8xf32>
      %615 = vector.multi_reduction <add>, %614, %cst_32 [1] : vector<8x256xf32> to vector<8xf32>
      %616 = vector.shape_cast %615 : vector<8xf32> to vector<8x1xf32>
      %cst_33 = arith.constant 3.906250e-03 : f32
      %617 = vector.broadcast %cst_33 : f32 to vector<8x1xf32>
      %618 = arith.mulf %616, %617 : vector<8x1xf32>
      %cst_34 = arith.constant dense<0.000000e+00> : vector<2x1xf32>
      %619 = tpu.matmul %10, %618, %cst_34 {dimension_numbers = #tpu.dot_dimension_numbers<[1], [0], [0], [1], [0, 0, 1, 1], [], []>} : vector<2x8xf32>, vector<8x1xf32>, vector<2x1xf32> -> vector<2x1xf32>
      %cst_35 = arith.constant 0.000000e+00 : f32
      %620 = vector.broadcast %cst_35 : f32 to vector<2x1xf32>
      %621 = arith.maximumf %619, %620 : vector<2x1xf32>
      %cst_36 = arith.constant dense<0.000000e+00> : vector<8x1xf32>
      %622 = tpu.matmul %11, %621, %cst_36 {dimension_numbers = #tpu.dot_dimension_numbers<[1], [0], [0], [1], [0, 0, 1, 1], [], []>} : vector<8x2xf32>, vector<2x1xf32>, vector<8x1xf32> -> vector<8x1xf32>
      %623 = arith.negf %622 : vector<8x1xf32>
      %624 = math.exp %623 : vector<8x1xf32>
      %cst_37 = arith.constant 1.000000e+00 : f32
      %625 = vector.broadcast %cst_37 : f32 to vector<8x1xf32>
      %626 = arith.addf %625, %624 : vector<8x1xf32>
      %627 = arith.divf %625, %626 : vector<8x1xf32>
      %628 = vector.broadcast %627 : vector<8x1xf32> to vector<8x256xf32>
      %629 = arith.mulf %614, %628 : vector<8x256xf32>
      %630 = arith.truncf %629 : vector<8x256xf32> to vector<8x256xbf16>
      %cst_38 = arith.constant dense<0.000000e+00> : vector<8x256xf32>
      %631 = tpu.matmul %12, %630, %cst_38 {dimension_numbers = #tpu.dot_dimension_numbers<[1], [0], [0], [1], [0, 0, 1, 1], [], []>} : vector<8x8xbf16>, vector<8x256xbf16>, vector<8x256xf32> -> vector<8x256xf32>
      %632 = arith.addf %16, %631 : vector<8x256xf32>
      %633 = arith.index_cast %2 : i32 to index
      %c0_39 = arith.constant 0 : index
      %c0_40 = arith.constant 0 : index
      %634 = vector.load %arg12[%633, %c0_39, %c0_40] : memref<3x8x256xf32, #tpu.memory_space<vmem>>, vector<1x8x256xf32>
      %635 = vector.shape_cast %634 : vector<1x8x256xf32> to vector<8x256xf32>
      %636 = vector.shape_cast %632 : vector<8x256xf32> to vector<1x8x256xf32>
      tpu.vector_store %arg12[%633, %c0_39, %c0_40], %636 {strides = array<i32>} : memref<3x8x256xf32, #tpu.memory_space<vmem>>, vector<1x8x256xf32>,
    }
    %c3_i32_0 = arith.constant 3 : i32
    return
  }
  func.func @transform_0(%arg0: i32) -> (i32, i32, i32) {
    %c0_i32 = arith.constant 0 : i32
    %c0_i32_0 = arith.constant 0 : i32
    %c0_i32_1 = arith.constant 0 : i32
    return %arg0, %c0_i32, %c0_i32_0 : i32, i32, i32
  }
  func.func @transform_1(%arg0: i32) -> (i32, i32) {
    %c0_i32 = arith.constant 0 : i32
    %c0_i32_0 = arith.constant 0 : i32
    %c0_i32_1 = arith.constant 0 : i32
    return %c0_i32, %c0_i32_0 : i32, i32
  }
  func.func @transform_2(%arg0: i32) -> (i32, i32) {
    %c0_i32 = arith.constant 0 : i32
    %c0_i32_0 = arith.constant 0 : i32
    %c0_i32_1 = arith.constant 0 : i32
    return %c0_i32, %c0_i32_0 : i32, i32
  }
  func.func @transform_3(%arg0: i32) -> (i32, i32) {
    %c0_i32 = arith.constant 0 : i32
    %c0_i32_0 = arith.constant 0 : i32
    %c0_i32_1 = arith.constant 0 : i32
    return %c0_i32, %c0_i32_0 : i32, i32
  }
  func.func @transform_4(%arg0: i32) -> (i32, i32) {
    %c0_i32 = arith.constant 0 : i32
    %c0_i32_0 = arith.constant 0 : i32
    %c0_i32_1 = arith.constant 0 : i32
    return %c0_i32, %c0_i32_0 : i32, i32
  }
  func.func @transform_5(%arg0: i32) -> (i32, i32) {
    %c0_i32 = arith.constant 0 : i32
    %c0_i32_0 = arith.constant 0 : i32
    %c0_i32_1 = arith.constant 0 : i32
    return %c0_i32, %c0_i32_0 : i32, i32
  }
  func.func @transform_6(%arg0: i32) -> (i32, i32) {
    %c0_i32 = arith.constant 0 : i32
    %c0_i32_0 = arith.constant 0 : i32
    %c0_i32_1 = arith.constant 0 : i32
    return %c0_i32, %c0_i32_0 : i32, i32
  }
  func.func @transform_7(%arg0: i32) -> (i32, i32) {
    %c0_i32 = arith.constant 0 : i32
    %c0_i32_0 = arith.constant 0 : i32
    %c0_i32_1 = arith.constant 0 : i32
    return %c0_i32, %c0_i32_0 : i32, i32
  }
  func.func @transform_8(%arg0: i32) -> (i32, i32) {
    %c0_i32 = arith.constant 0 : i32
    %c0_i32_0 = arith.constant 0 : i32
    %c0_i32_1 = arith.constant 0 : i32
    return %c0_i32, %c0_i32_0 : i32, i32
  }
  func.func @transform_9(%arg0: i32) -> (i32, i32) {
    %c0_i32 = arith.constant 0 : i32
    %c0_i32_0 = arith.constant 0 : i32
    %c0_i32_1 = arith.constant 0 : i32
    return %c0_i32, %c0_i32_0 : i32, i32
  }
  func.func @transform_10(%arg0: i32) -> (i32, i32) {
    %c0_i32 = arith.constant 0 : i32
    %c0_i32_0 = arith.constant 0 : i32
    %c0_i32_1 = arith.constant 0 : i32
    return %c0_i32, %c0_i32_0 : i32, i32
  }
  func.func @transform_11(%arg0: i32) -> (i32, i32, i32) {
    %c0_i32 = arith.constant 0 : i32
    %c0_i32_0 = arith.constant 0 : i32
    %c0_i32_1 = arith.constant 0 : i32
    return %arg0, %c0_i32, %c0_i32_0 : i32, i32, i32
  }
}

</mosaic_0001>

<llo_original>
// kernel: tpu_custom_call.1
$region0: #{tpu_custom_call.1}
  #allocation0 [shape = 'u32[]', space=smem, size = 0x4, offset = 0x4, fixed_abs, tag = 'smem constant byte address 0x4 - core index']
  #allocation1 [shape = 'u32[144,128]{1,0:T(1,128)}', space=vmem, size = 0x12000, scoped, tag = 'internal scratch']
  %s0 = inlined_call_operand.hbm [shape: f32[8,256], index: 0, kind: input, shape index: {}]
  %s1 = inlined_call_operand.hbm [shape: f32[8,256], index: 1, kind: output, shape index: {}]
  %s2 = sld [smem:[#allocation0]]
  $region18: #{tpu_custom_call.1} parent=0
    _
  %s4 = ssub.s32 1, %s2
  %s5 = scalar_select 0, %s4, %s2
  $region1: #{tpu_custom_call.1} parent=0
    #allocation2 [shape = 'u8[8192]{0}', space=vmem, size = 0x2000, scoped, tag = 'input window, operand 0, single buffered']
    #allocation3 [shape = 's32[1]{0}', space=sflag, size = 0x4, scoped, tag = 'scoped memory for tpu_custom_call.1']
    #allocation4 [shape = 's32[1]{0}', space=sflag, size = 0x4, scoped, tag = 'scoped memory for tpu_custom_call.1']
    #allocation5 [shape = 'u8[8192]{0}', space=vmem, size = 0x2000, scoped, tag = 'output window, operand 0, single buffered']
    %6 = vsyncpa [#allocation3], 0
    %7 = vsyncpa [#allocation4], 0
    // Predicated region
    $region2: #{tpu_custom_call.1} parent=1 // pred_check
      _
    $region3: #{tpu_custom_call.1} parent=1 // pred_check_branch
      %9 = sbr.rel (0) target = $region5
    $region4: #{tpu_custom_call.1} parent=1 // pred_region
      %s11 = ssub.s32 256, 256
      %12 = vsyncadd [#allocation3], %s11
      %s14 = sshll.u32 [#allocation2], 4
      %s15 = int_to_ptr.vmem [resolvable:$true] %s14
      %17 = dma.hbm_to_vmem [thread:$0]  %s0, 256, %s15, [#allocation3]
    $region5: #{tpu_custom_call.1} parent=1 // pred_fallthru
      _
    // Predicated region
    $region6: #{tpu_custom_call.1} parent=1 // pred_check
      _
    $region7: #{tpu_custom_call.1} parent=1 // pred_check_branch
      %19 = sbr.rel (0) target = $region9
    $region8: #{tpu_custom_call.1} parent=1 // pred_region
      %20 = dma.done [#allocation3], 256
    $region9: #{tpu_custom_call.1} parent=1 // pred_fallthru
      _
    %v21 = vld [vmem:[#allocation2] sm:$0xff]
    %v22 = vld [vmem:[#allocation2 + $0x8] sm:$0xff]
    %23 = vrot.lane.b32.xlu0 %v21, 1
    %v24 = vpop.permute.xlu0 %23
    %25 = vrot.lane.b32.xlu0 %v22, 1
    %v26 = vpop.permute.xlu0 %25
    %v27 = vlaneseq
    %v28 = vand.u32 %v27, 127
    %vm29 = vcmp.lt.s32.totalorder %v28, 1
    %v30 = vsel %vm29, %v24, %v26
    %v31 = vsel %vm29, %v26, %v24
    %32 = vst [vmem:[#allocation5] sm:$0xff] %v31
    %33 = vst [vmem:[#allocation5 + $0x8] sm:$0xff] %v30
    // Predicated region
    $region10: #{tpu_custom_call.1} parent=1 // pred_check
      _
    $region11: #{tpu_custom_call.1} parent=1 // pred_check_branch
      %35 = sbr.rel (0) target = $region13
    $region12: #{tpu_custom_call.1} parent=1 // pred_region
      %s37 = ssub.s32 256, 256
      %38 = vsyncadd [#allocation4], %s37
      %s40 = sshll.u32 [#allocation5], 4
      %s41 = int_to_ptr.vmem [resolvable:$true] %s40
      %43 = dma.vmem_to_hbm [thread:$0]  %s41, 256, %s1, [#allocation4]
    $region13: #{tpu_custom_call.1} parent=1 // pred_fallthru
      _
    // Predicated region
    $region14: #{tpu_custom_call.1} parent=1 // pred_check
      _
    $region15: #{tpu_custom_call.1} parent=1 // pred_check_branch
      %45 = sbr.rel (0) target = $region17
    $region16: #{tpu_custom_call.1} parent=1 // pred_region
      %46 = dma.done [#allocation4], 256
    $region17: #{tpu_custom_call.1} parent=1 // pred_fallthru
      _
    %47 = vsyncpa [#allocation3], 1
    %48 = vsyncpa [#allocation4], 1

// kernel: tpu_custom_call.1
$region0: #{tpu_custom_call.1}
  #allocation0 [shape = 'u32[]', space=smem, size = 0x4, offset = 0x4, fixed_abs, tag = 'smem constant byte address 0x4 - core index']
  #allocation1 [shape = 'u32[144,128]{1,0:T(1,128)}', space=vmem, size = 0x12000, scoped, tag = 'internal scratch']
  %s0 = inlined_call_operand.hbm [shape: f32[6,12,256], index: 0, kind: input, shape index: {}]
  %s1 = inlined_call_operand.vmem [shape: f32[8,256], index: 1, kind: input, shape index: {}]
  %s2 = inlined_call_operand.vmem [shape: f32[8,256], index: 2, kind: input, shape index: {}]
  %s3 = inlined_call_operand.hbm [shape: bf16[16,12], index: 3, kind: input, shape index: {}]
  %s4 = inlined_call_operand.vmem [shape: f32[16,1], index: 4, kind: input, shape index: {}]
  %s5 = inlined_call_operand.vmem [shape: f32[16,9], index: 5, kind: input, shape index: {}]
  %s6 = inlined_call_operand.vmem [shape: f32[8,49], index: 6, kind: input, shape index: {}]
  %s7 = inlined_call_operand.vmem [shape: bf16[16,8], index: 7, kind: input, shape index: {}]
  %s8 = inlined_call_operand.vmem [shape: f32[2,8], index: 8, kind: input, shape index: {}]
  %s9 = inlined_call_operand.vmem [shape: f32[8,2], index: 9, kind: input, shape index: {}]
  %s10 = inlined_call_operand.vmem [shape: bf16[8,8], index: 10, kind: input, shape index: {}]
  %s11 = inlined_call_operand.hbm [shape: f32[6,8,256], index: 11, kind: output, shape index: {}]
  %s12 = sld [smem:[#allocation0]]
  $region92: #{tpu_custom_call.1} parent=0
    _
  %s14 = ssub.s32 1, %s12
  %s15 = scalar_select 0, %s14, %s12
  $region1: #{tpu_custom_call.1} parent=0
    #allocation2 [shape = 'u8[98304]{0}', space=vmem, size = 0x18000, scoped, tag = 'input window, operand 0']
    #allocation3 [shape = 's32[2]{0}', space=sflag, size = 0x8, scoped, tag = 'scoped memory for tpu_custom_call.1']
    #allocation4 [shape = 's32[2]{0}', space=sflag, size = 0x8, scoped, tag = 'scoped memory for tpu_custom_call.1']
    #allocation5 [shape = 'u8[4096]{0}', space=vmem, size = 0x1000, scoped, tag = 'input window, operand 3, single buffered']
    #allocation6 [shape = 's32[1]{0}', space=sflag, size = 0x4, scoped, tag = 'scoped memory for tpu_custom_call.1']
    #allocation7 [shape = 'u8[49152]{0}', space=vmem, size = 0xc000, scoped, tag = 'output window, operand 0']
    %16 = vsyncpa [#allocation3], 0
    %s17 = scalar_lea.sflag [#allocation3], 1
    %18 = vsyncpa %s17, 0
    %19 = vsyncpa [#allocation6], 0
    %20 = vsyncpa [#allocation4], 0
    %s21 = scalar_lea.sflag [#allocation4], 1
    %22 = vsyncpa %s21, 0
    loop: start=0, step=1, limit=4
    $region2: #{tpu_custom_call.1} parent=1 // loop_pre_header
      _
    $region3: #{tpu_custom_call.1} parent=1 // loop_header
      %s24 = sphi 0, %s28
      %p25 = scmp.ge.s32.totalorder %s24, 4
      %s34 = sphi 0, %s36
      %s37 = sphi 0, %s34
      %s38 = sphi 0, %s37
      %s54 = sphi 0, %s38
      %s58 = sphi 0, %s58
      %s60 = sphi 0, %s58
      %s61 = sphi 0, %s60
      %s75 = sphi 0, %s61
      %s79 = sphi 0, %s79
      %s81 = sphi 0, %s79
      %s82 = sphi 0, %s81
      %s96 = sphi 0, %s82
      %s100 = sphi 0, %s100
      %s102 = sphi 0, %s100
      %s103 = sphi 0, %s102
      %s117 = sphi 0, %s103
      %s121 = sphi 0, %s121
      %s123 = sphi 0, %s121
      %s124 = sphi 0, %s123
      %s138 = sphi 0, %s124
      %s142 = sphi 0, %s142
      %s144 = sphi 0, %s142
      %s145 = sphi 0, %s144
      %s159 = sphi 0, %s145
      %s163 = sphi 0, %s163
      %s165 = sphi 0, %s163
      %s166 = sphi 0, %s165
      %s180 = sphi 0, %s166
      %s184 = sphi 0, %s184
      %s186 = sphi 0, %s184
      %s187 = sphi 0, %s186
      %s201 = sphi 0, %s187
      %s205 = sphi 0, %s205
      %s207 = sphi 0, %s205
      %s208 = sphi 0, %s207
      %s222 = sphi 0, %s208
      %s226 = sphi 0, %s226
      %s228 = sphi 0, %s226
      %s229 = sphi 0, %s228
      %s243 = sphi 0, %s229
      %s247 = sphi 0, %s247
      %s249 = sphi 0, %s247
      %s250 = sphi 0, %s249
      %s264 = sphi 0, %s250
      %s270 = sphi 0, %s272
      %s273 = sphi 0, %s270
      %s274 = sphi 0, %s273
      %s290 = sphi 0, %s274
    $region4: #{tpu_custom_call.1} parent=1 // loop_header_branch
      %27 = sbr.rel (%p25) target = $region8
    $region5: #{tpu_custom_call.1} parent=1 // loop_body
      %s29 = ssub.s32 %s24, 1
      %s30 = ssub.s32 %s24, 2
      %s31 = sadd.s32 %s24, 1
      %s32 = ssub.s32 %s24, %s31
      %p33 = scmp.eq.s32.totalorder %s32, 0
      %s35 = sadd.s32 %s34, 1
      %s36 = scalar_select %p33, %s34, %s35
      %p39 = pneg %p33
      %p40 = scmp.eq.s32.totalorder %s24, 1
      %p41 = por %p39, %p40
      %p42 = scmp.ne.s32.totalorder %s34, %s37
      %p43 = scmp.eq.s32.totalorder %s24, 0
      %p44 = por %p42, %p43
      %p45 = scmp.ne.s32.totalorder %s34, %s37
      %p46 = scmp.eq.s32.totalorder %s29, 1
      %p47 = por %p45, %p46
      %p48 = scmp.ne.s32.totalorder %s37, %s38
      %p49 = scmp.eq.s32.totalorder %s29, 0
      %p50 = por %p48, %p49
      %p51 = scmp.ne.s32.totalorder %s37, %s38
      %p52 = scmp.eq.s32.totalorder %s30, 1
      %p53 = por %p51, %p52
      %p55 = scmp.ne.s32.totalorder %s38, %s54
      %p56 = scmp.eq.s32.totalorder %s30, 0
      %p57 = por %p55, %p56
      %s59 = sadd.s32 %s58, 1
      %p62 = scmp.eq.s32.totalorder %s24, 1
      %p63 = scmp.ne.s32.totalorder %s58, %s60
      %p64 = scmp.eq.s32.totalorder %s24, 0
      %p65 = por %p63, %p64
      %p66 = scmp.ne.s32.totalorder %s58, %s60
      %p67 = scmp.eq.s32.totalorder %s29, 1
      %p68 = por %p66, %p67
      %p69 = scmp.ne.s32.totalorder %s60, %s61
      %p70 = scmp.eq.s32.totalorder %s29, 0
      %p71 = por %p69, %p70
      %p72 = scmp.ne.s32.totalorder %s60, %s61
      %p73 = scmp.eq.s32.totalorder %s30, 1
      %p74 = por %p72, %p73
      %p76 = scmp.ne.s32.totalorder %s61, %s75
      %p77 = scmp.eq.s32.totalorder %s30, 0
      %p78 = por %p76, %p77
      %s80 = sadd.s32 %s79, 1
      %p83 = scmp.eq.s32.totalorder %s24, 1
      %p84 = scmp.ne.s32.totalorder %s79, %s81
      %p85 = scmp.eq.s32.totalorder %s24, 0
      %p86 = por %p84, %p85
      %p87 = scmp.ne.s32.totalorder %s79, %s81
      %p88 = scmp.eq.s32.totalorder %s29, 1
      %p89 = por %p87, %p88
      %p90 = scmp.ne.s32.totalorder %s81, %s82
      %p91 = scmp.eq.s32.totalorder %s29, 0
      %p92 = por %p90, %p91
      %p93 = scmp.ne.s32.totalorder %s81, %s82
      %p94 = scmp.eq.s32.totalorder %s30, 1
      %p95 = por %p93, %p94
      %p97 = scmp.ne.s32.totalorder %s82, %s96
      %p98 = scmp.eq.s32.totalorder %s30, 0
      %p99 = por %p97, %p98
      %s101 = sadd.s32 %s100, 1
      %p104 = scmp.eq.s32.totalorder %s24, 1
      %p105 = scmp.ne.s32.totalorder %s100, %s102
      %p106 = scmp.eq.s32.totalorder %s24, 0
      %p107 = por %p105, %p106
      %p108 = scmp.ne.s32.totalorder %s100, %s102
      %p109 = scmp.eq.s32.totalorder %s29, 1
      %p110 = por %p108, %p109
      %p111 = scmp.ne.s32.totalorder %s102, %s103
      %p112 = scmp.eq.s32.totalorder %s29, 0
      %p113 = por %p111, %p112
      %p114 = scmp.ne.s32.totalorder %s102, %s103
      %p115 = scmp.eq.s32.totalorder %s30, 1
      %p116 = por %p114, %p115
      %p118 = scmp.ne.s32.totalorder %s103, %s117
      %p119 = scmp.eq.s32.totalorder %s30, 0
      %p120 = por %p118, %p119
      %s122 = sadd.s32 %s121, 1
      %p125 = scmp.eq.s32.totalorder %s24, 1
      %p126 = scmp.ne.s32.totalorder %s121, %s123
      %p127 = scmp.eq.s32.totalorder %s24, 0
      %p128 = por %p126, %p127
      %p129 = scmp.ne.s32.totalorder %s121, %s123
      %p130 = scmp.eq.s32.totalorder %s29, 1
      %p131 = por %p129, %p130
      %p132 = scmp.ne.s32.totalorder %s123, %s124
      %p133 = scmp.eq.s32.totalorder %s29, 0
      %p134 = por %p132, %p133
      %p135 = scmp.ne.s32.totalorder %s123, %s124
      %p136 = scmp.eq.s32.totalorder %s30, 1
      %p137 = por %p135, %p136
      %p139 = scmp.ne.s32.totalorder %s124, %s138
      %p140 = scmp.eq.s32.totalorder %s30, 0
      %p141 = por %p139, %p140
      %s143 = sadd.s32 %s142, 1
      %p146 = scmp.eq.s32.totalorder %s24, 1
      %p147 = scmp.ne.s32.totalorder %s142, %s144
      %p148 = scmp.eq.s32.totalorder %s24, 0
      %p149 = por %p147, %p148
      %p150 = scmp.ne.s32.totalorder %s142, %s144
      %p151 = scmp.eq.s32.totalorder %s29, 1
      %p152 = por %p150, %p151
      %p153 = scmp.ne.s32.totalorder %s144, %s145
      %p154 = scmp.eq.s32.totalorder %s29, 0
      %p155 = por %p153, %p154
      %p156 = scmp.ne.s32.totalorder %s144, %s145
      %p157 = scmp.eq.s32.totalorder %s30, 1
      %p158 = por %p156, %p157
      %p160 = scmp.ne.s32.totalorder %s145, %s159
      %p161 = scmp.eq.s32.totalorder %s30, 0
      %p162 = por %p160, %p161
      %s164 = sadd.s32 %s163, 1
      %p167 = scmp.eq.s32.totalorder %s24, 1
      %p168 = scmp.ne.s32.totalorder %s163, %s165
      %p169 = scmp.eq.s32.totalorder %s24, 0
      %p170 = por %p168, %p169
      %p171 = scmp.ne.s32.totalorder %s163, %s165
      %p172 = scmp.eq.s32.totalorder %s29, 1
      %p173 = por %p171, %p172
      %p174 = scmp.ne.s32.totalorder %s165, %s166
      %p175 = scmp.eq.s32.totalorder %s29, 0
      %p176 = por %p174, %p175
      %p177 = scmp.ne.s32.totalorder %s165, %s166
      %p178 = scmp.eq.s32.totalorder %s30, 1
      %p179 = por %p177, %p178
      %p181 = scmp.ne.s32.totalorder %s166, %s180
      %p182 = scmp.eq.s32.totalorder %s30, 0
      %p183 = por %p181, %p182
      %s185 = sadd.s32 %s184, 1
      %p188 = scmp.eq.s32.totalorder %s24, 1
      %p189 = scmp.ne.s32.totalorder %s184, %s186
      %p190 = scmp.eq.s32.totalorder %s24, 0
      %p191 = por %p189, %p190
      %p192 = scmp.ne.s32.totalorder %s184, %s186
      %p193 = scmp.eq.s32.totalorder %s29, 1
      %p194 = por %p192, %p193
      %p195 = scmp.ne.s32.totalorder %s186, %s187
      %p196 = scmp.eq.s32.totalorder %s29, 0
      %p197 = por %p195, %p196
      %p198 = scmp.ne.s32.totalorder %s186, %s187
      %p199 = scmp.eq.s32.totalorder %s30, 1
      %p200 = por %p198, %p199
      %p202 = scmp.ne.s32.totalorder %s187, %s201
      %p203 = scmp.eq.s32.totalorder %s30, 0
      %p204 = por %p202, %p203
      %s206 = sadd.s32 %s205, 1
      %p209 = scmp.eq.s32.totalorder %s24, 1
      %p210 = scmp.ne.s32.totalorder %s205, %s207
      %p211 = scmp.eq.s32.totalorder %s24, 0
      %p212 = por %p210, %p211
      %p213 = scmp.ne.s32.totalorder %s205, %s207
      %p214 = scmp.eq.s32.totalorder %s29, 1
      %p215 = por %p213, %p214
      %p216 = scmp.ne.s32.totalorder %s207, %s208
      %p217 = scmp.eq.s32.totalorder %s29, 0
      %p218 = por %p216, %p217
      %p219 = scmp.ne.s32.totalorder %s207, %s208
      %p220 = scmp.eq.s32.totalorder %s30, 1
      %p221 = por %p219, %p220
      %p223 = scmp.ne.s32.totalorder %s208, %s222
      %p224 = scmp.eq.s32.totalorder %s30, 0
      %p225 = por %p223, %p224
      %s227 = sadd.s32 %s226, 1
      %p230 = scmp.eq.s32.totalorder %s24, 1
      %p231 = scmp.ne.s32.totalorder %s226, %s228
      %p232 = scmp.eq.s32.totalorder %s24, 0
      %p233 = por %p231, %p232
      %p234 = scmp.ne.s32.totalorder %s226, %s228
      %p235 = scmp.eq.s32.totalorder %s29, 1
      %p236 = por %p234, %p235
      %p237 = scmp.ne.s32.totalorder %s228, %s229
      %p238 = scmp.eq.s32.totalorder %s29, 0
      %p239 = por %p237, %p238
      %p240 = scmp.ne.s32.totalorder %s228, %s229
      %p241 = scmp.eq.s32.totalorder %s30, 1
      %p242 = por %p240, %p241
      %p244 = scmp.ne.s32.totalorder %s229, %s243
      %p245 = scmp.eq.s32.totalorder %s30, 0
      %p246 = por %p244, %p245
      %s248 = sadd.s32 %s247, 1
      %p251 = scmp.eq.s32.totalorder %s24, 1
      %p252 = scmp.ne.s32.totalorder %s247, %s249
      %p253 = scmp.eq.s32.totalorder %s24, 0
      %p254 = por %p252, %p253
      %p255 = scmp.ne.s32.totalorder %s247, %s249
      %p256 = scmp.eq.s32.totalorder %s29, 1
      %p257 = por %p255, %p256
      %p258 = scmp.ne.s32.totalorder %s249, %s250
      %p259 = scmp.eq.s32.totalorder %s29, 0
      %p260 = por %p258, %p259
      %p261 = scmp.ne.s32.totalorder %s249, %s250
      %p262 = scmp.eq.s32.totalorder %s30, 1
      %p263 = por %p261, %p262
      %p265 = scmp.ne.s32.totalorder %s250, %s264
      %p266 = scmp.eq.s32.totalorder %s30, 0
      %p267 = por %p265, %p266
      %s268 = ssub.s32 %s24, %s31
      %p269 = scmp.eq.s32.totalorder %s268, 0
      %s271 = sadd.s32 %s270, 1
      %s272 = scalar_select %p269, %s270, %s271
      %p275 = pneg %p269
      %p276 = scmp.eq.s32.totalorder %s24, 1
      %p277 = por %p275, %p276
      %p278 = scmp.ne.s32.totalorder %s270, %s273
      %p279 = scmp.eq.s32.totalorder %s24, 0
      %p280 = por %p278, %p279
      %p281 = scmp.ne.s32.totalorder %s270, %s273
      %p282 = scmp.eq.s32.totalorder %s29, 1
      %p283 = por %p281, %p282
      %p284 = scmp.ne.s32.totalorder %s273, %s274
      %p285 = scmp.eq.s32.totalorder %s29, 0
      %p286 = por %p284, %p285
      %p287 = scmp.ne.s32.totalorder %s273, %s274
      %p288 = scmp.eq.s32.totalorder %s30, 1
      %p289 = por %p287, %p288
      %p291 = scmp.ne.s32.totalorder %s274, %s290
      %p292 = scmp.eq.s32.totalorder %s30, 0
      %p293 = por %p291, %p292
      %p294 = scmp.le.s32.totalorder 1, %s24
      %p295 = scmp.lt.s32.totalorder %s24, 3
      %p296 = pnand %p294, %p295
      %p297 = pneg %p296
      // Predicated region
      $region9: #{tpu_custom_call.1} parent=5 // pred_check
        _
      $region10: #{tpu_custom_call.1} parent=5 // pred_check_branch
        %299 = sbr.rel (%p296) target = $region12
      $region11: #{tpu_custom_call.1} parent=5 // pred_region
        %s300 = ssub.s32 %s24, 1
        // Predicated region
        $region13: #{tpu_custom_call.1} parent=11 // pred_check
          %p301 = pneg %p71
        $region14: #{tpu_custom_call.1} parent=11 // pred_check_branch
          %303 = sbr.rel (%p301) target = $region16
        $region15: #{tpu_custom_call.1} parent=11 // pred_region
          _
        $region16: #{tpu_custom_call.1} parent=11 // pred_fallthru
          _
        // Predicated region
        $region17: #{tpu_custom_call.1} parent=11 // pred_check
          %p304 = pneg %p92
        $region18: #{tpu_custom_call.1} parent=11 // pred_check_branch
          %306 = sbr.rel (%p304) target = $region20
        $region19: #{tpu_custom_call.1} parent=11 // pred_region
          _
        $region20: #{tpu_custom_call.1} parent=11 // pred_fallthru
          _
        // Predicated region
        $region21: #{tpu_custom_call.1} parent=11 // pred_check
          %p307 = pneg %p113
        $region22: #{tpu_custom_call.1} parent=11 // pred_check_branch
          %309 = sbr.rel (%p307) target = $region24
        $region23: #{tpu_custom_call.1} parent=11 // pred_region
          %s311 = ssub.s32 128, 128
          %312 = vsyncadd [#allocation6], %s311
          %s313 = sshll.u32 [#allocation5], 4
          %s314 = int_to_ptr.vmem [resolvable:$true] %s313
          %319 = dma.hbm_to_vmem [thread:$0]  %s3, 128, %s314, [#allocation6], 64, 64, 4
        $region24: #{tpu_custom_call.1} parent=11 // pred_fallthru
          _
        // Predicated region
        $region25: #{tpu_custom_call.1} parent=11 // pred_check
          %p320 = pneg %p134
        $region26: #{tpu_custom_call.1} parent=11 // pred_check_branch
          %322 = sbr.rel (%p320) target = $region28
        $region27: #{tpu_custom_call.1} parent=11 // pred_region
          _
        $region28: #{tpu_custom_call.1} parent=11 // pred_fallthru
          _
        // Predicated region
        $region29: #{tpu_custom_call.1} parent=11 // pred_check
          %p323 = pneg %p155
        $region30: #{tpu_custom_call.1} parent=11 // pred_check_branch
          %325 = sbr.rel (%p323) target = $region32
        $region31: #{tpu_custom_call.1} parent=11 // pred_region
          _
        $region32: #{tpu_custom_call.1} parent=11 // pred_fallthru
          _
        // Predicated region
        $region33: #{tpu_custom_call.1} parent=11 // pred_check
          %p326 = pneg %p176
        $region34: #{tpu_custom_call.1} parent=11 // pred_check_branch
          %328 = sbr.rel (%p326) target = $region36
        $region35: #{tpu_custom_call.1} parent=11 // pred_region
          _
        $region36: #{tpu_custom_call.1} parent=11 // pred_fallthru
          _
        // Predicated region
        $region37: #{tpu_custom_call.1} parent=11 // pred_check
          %p329 = pneg %p197
        $region38: #{tpu_custom_call.1} parent=11 // pred_check_branch
          %331 = sbr.rel (%p329) target = $region40
        $region39: #{tpu_custom_call.1} parent=11 // pred_region
          _
        $region40: #{tpu_custom_call.1} parent=11 // pred_fallthru
          _
        // Predicated region
        $region41: #{tpu_custom_call.1} parent=11 // pred_check
          %p332 = pneg %p218
        $region42: #{tpu_custom_call.1} parent=11 // pred_check_branch
          %334 = sbr.rel (%p332) target = $region44
        $region43: #{tpu_custom_call.1} parent=11 // pred_region
          _
        $region44: #{tpu_custom_call.1} parent=11 // pred_fallthru
          _
        // Predicated region
        $region45: #{tpu_custom_call.1} parent=11 // pred_check
          %p335 = pneg %p239
        $region46: #{tpu_custom_call.1} parent=11 // pred_check_branch
          %337 = sbr.rel (%p335) target = $region48
        $region47: #{tpu_custom_call.1} parent=11 // pred_region
          _
        $region48: #{tpu_custom_call.1} parent=11 // pred_fallthru
          _
        // Predicated region
        $region49: #{tpu_custom_call.1} parent=11 // pred_check
          %p338 = pneg %p260
        $region50: #{tpu_custom_call.1} parent=11 // pred_check_branch
          %340 = sbr.rel (%p338) target = $region52
        $region51: #{tpu_custom_call.1} parent=11 // pred_region
          _
        $region52: #{tpu_custom_call.1} parent=11 // pred_fallthru
          _
      $region12: #{tpu_custom_call.1} parent=5 // pred_fallthru
        _
      %p341 = scmp.lt.s32.totalorder %s24, 2
      // Predicated region
      $region53: #{tpu_custom_call.1} parent=5 // pred_check
        %p342 = pneg %p341
      $region54: #{tpu_custom_call.1} parent=5 // pred_check_branch
        %344 = sbr.rel (%p342) target = $region56
      $region55: #{tpu_custom_call.1} parent=5 // pred_region
        // Predicated region
        $region57: #{tpu_custom_call.1} parent=55 // pred_check
          %p345 = pneg %p44
        $region58: #{tpu_custom_call.1} parent=55 // pred_check_branch
          %347 = sbr.rel (%p345) target = $region60
        $region59: #{tpu_custom_call.1} parent=55 // pred_region
          %s348 = sand.u32 %s34, 1
          %s349 = scalar_lea.sflag [#allocation3], %s348
          %s350 = sand.u32 %s34, 1
          %s351 = smul.addr %s350, 96
          %s352 = scalar_lea.vmem [#allocation2], %s351
          %s353 = smul.u32 3, %s24
          %s355 = ssub.s32 1536, 1536
          %356 = vsyncadd %s349, %s355
          %s357 = smul.addr %s353, 4
          %s358 = smul.addr %s357, 128
          %s359 = scalar_lea.hbm %s0, %s358
          %s360 = sshll.u32 %s352, 4
          %s361 = int_to_ptr.vmem [resolvable:$true] %s360
          %366 = dma.hbm_to_vmem [thread:$0]  %s359, 1536, %s361, %s349, 256, 256, 16
        $region60: #{tpu_custom_call.1} parent=55 // pred_fallthru
          _
      $region56: #{tpu_custom_call.1} parent=5 // pred_fallthru
        _
      %p367 = scmp.le.s32.totalorder 1, %s24
      %p368 = scmp.lt.s32.totalorder %s24, 3
      %p369 = pnand %p367, %p368
      %p370 = pneg %p369
      // Predicated region
      $region61: #{tpu_custom_call.1} parent=5 // pred_check
        _
      $region62: #{tpu_custom_call.1} parent=5 // pred_check_branch
        %372 = sbr.rel (%p369) target = $region64
      $region63: #{tpu_custom_call.1} parent=5 // pred_region
        %s373 = ssub.s32 %s24, 1
        %s374 = sand.u32 %s37, 1
        %s375 = scalar_lea.sflag [#allocation3], %s374
        %s376 = sand.u32 %s37, 1
        %s377 = smul.addr %s376, 96
        %s378 = scalar_lea.vmem [#allocation2], %s377
        // Predicated region
        $region65: #{tpu_custom_call.1} parent=63 // pred_check
          %p379 = pneg %p50
        $region66: #{tpu_custom_call.1} parent=63 // pred_check_branch
          %381 = sbr.rel (%p379) target = $region68
        $region67: #{tpu_custom_call.1} parent=63 // pred_region
          %382 = dma.done %s375, 1536
        $region68: #{tpu_custom_call.1} parent=63 // pred_fallthru
          _
        // Predicated region
        $region69: #{tpu_custom_call.1} parent=63 // pred_check
          %p383 = pneg %p113
        $region70: #{tpu_custom_call.1} parent=63 // pred_check_branch
          %385 = sbr.rel (%p383) target = $region72
        $region71: #{tpu_custom_call.1} parent=63 // pred_region
          %386 = dma.done [#allocation6], 128
        $region72: #{tpu_custom_call.1} parent=63 // pred_fallthru
          _
        %s387 = sand.u32 %s37, 1
        %s388 = scalar_lea.sflag [#allocation3], %s387
        %s389 = sand.u32 %s37, 1
        %s390 = smul.addr %s389, 96
        %s391 = scalar_lea.vmem [#allocation2], %s390
        %p392 = pneg %p50
        %p393 = pneg %p47
        %p394 = pneg %p71
        %p395 = pneg %p68
        %p396 = pneg %p92
        %p397 = pneg %p89
        %p398 = pneg %p113
        %p399 = pneg %p110
        %p400 = pneg %p134
        %p401 = pneg %p131
        %p402 = pneg %p155
        %p403 = pneg %p152
        %p404 = pneg %p176
        %p405 = pneg %p173
        %p406 = pneg %p197
        %p407 = pneg %p194
        %p408 = pneg %p218
        %p409 = pneg %p215
        %p410 = pneg %p239
        %p411 = pneg %p236
        %p412 = pneg %p260
        %p413 = pneg %p257
        %p414 = pneg %p286
        %p415 = pneg %p283
        %s416 = sand.u32 %s273, 1
        %s417 = scalar_lea.sflag [#allocation4], %s416
        %s418 = sand.u32 %s273, 1
        %s419 = smul.addr %s418, 48
        %s420 = scalar_lea.vmem [#allocation7], %s419
        %s421 = smul.u32 3, %s29
        %s422 = smul.u32 3, %s29
        loop: start=0, step=1, limit=3
        $region73: #{tpu_custom_call.1} parent=63 // loop_pre_header
          _
        $region74: #{tpu_custom_call.1} parent=63 // loop_header
          %s425 = sphi 0, %s429
          %p426 = scmp.ge.s32.totalorder %s425, 3
        $region75: #{tpu_custom_call.1} parent=63 // loop_header_branch
          %428 = sbr.rel (%p426) target = $region79
        $region76: #{tpu_custom_call.1} parent=63 // loop_body
          %v430 = vld [vmem:[%s1] sm:$0xff]
          %v431 = vld [vmem:[%s1 + $0x8] sm:$0xff]
          %v432 = vld [vmem:[%s2] sm:$0xff]
          %v433 = vld [vmem:[%s2 + $0x8] sm:$0xff]
          %v434 = vld [vmem:[#allocation5] sm:$0xf]
          %v435 = vld [vmem:[#allocation5 + $0x4] sm:$0xf]
          %v436 = vld [vmem:[%s4] sm:$0xff]
          %v437 = vld [vmem:[%s4 + $0x8] sm:$0xff]
          %v438 = vld [vmem:[%s5] sm:$0xff]
          %v439 = vld [vmem:[%s5 + $0x8] sm:$0xff]
          %v440 = vld [vmem:[%s6] sm:$0xff]
          %v441 = vld [vmem:[%s7] sm:$0xf]
          %v442 = vld [vmem:[%s7 + $0x4] sm:$0xf]
          %v443 = vld [vmem:[%s8] sm:$0x3]
          %v444 = vld [vmem:[%s9] sm:$0xff]
          %v445 = vld [vmem:[%s10] sm:$0xf]
          %s446 = smul.u32 %s425, 4
          %s447 = smul.addr %s446, 8
          %s448 = scalar_lea.vmem %s378, %s447 [#allocation2]
          %v449 = vld [vmem:[%s448] sm:$0xff]
          %v450 = vld [vmem:[%s448 + $0x8] sm:$0xff]
          %v451 = vld [vmem:[%s448 + $0x10] sm:$0xf]
          %v452 = vld [vmem:[%s448 + $0x18] sm:$0xf]
          %vm453 = vcmask 97280
          %v455 = vsel %vm453, 1.0, 0
          %vm457 = vcmask 1043456
          %v459 = vsel %vm457, %v451, 0
          %v462 = vsel %vm457, %v452, 0
          %464 = vmatprep.subr.mxu0 %v450
          %465 = vmatpush1.msra.mxu0 %v449
          %466 = vmatprep.subr.mxu0 %v462
          %467 = vmatpush1.msra.mxu0 %v459
          %468 = vmatprep.subr.mxu0 0.0
          %469 = vmatpush1.msra.mxu0 0.0
          %470 = vmatprep.subr.mxu0 0.0
          %471 = vmatpush1.msra.mxu0 0.0
          %472 = vmatprep.subr.mxu0 0.0
          %473 = vmatpush1.msra.mxu0 0.0
          %474 = vmatprep.subr.mxu0 0.0
          %475 = vmatpush1.msra.mxu0 0.0
          %476 = vmatprep.subr.mxu0 0.0
          %477 = vmatpush1.msra.mxu0 0.0
          %478 = vmatprep.subr.mxu0 0.0
          %479 = vmatpush1.msra.mxu0 0.0
          %480 = vmatprep.subr.mxu0 0.0
          %481 = vmatpush1.msra.mxu0 0.0
          %482 = vmatprep.subr.mxu0 0.0
          %483 = vmatpush1.msra.mxu0 0.0
          %484 = vmatprep.subr.mxu0 0.0
          %485 = vmatpush1.msra.mxu0 0.0
          %486 = vmatprep.subr.mxu0 0.0
          %487 = vmatpush1.msra.mxu0 0.0
          %488 = vmatprep.subr.mxu0 0.0
          %489 = vmatpush1.msra.mxu0 0.0
          %490 = vmatprep.subr.mxu0 0.0
          %491 = vmatpush1.msra.mxu0 0.0
          %492 = vmatprep.subr.mxu0 0.0
          %493 = vmatpush1.msra.mxu0 0.0
          %494 = vmatprep.subr.mxu0 0.0
          %495 = vmatpush1.msra.mxu0 0.0
          %496 = vmatprep.subr.mxu0 0.0
          %497 = vmatpush1.msra.mxu0 0.0
          %498 = vmatprep.subr.mxu0 0.0
          %499 = vmatpush1.msra.mxu0 0.0
          %500 = vmatprep.subr.mxu0 0.0
          %501 = vmatpush1.msra.mxu0 0.0
          %502 = vmatprep.subr.mxu0 0.0
          %503 = vmatpush1.msra.mxu0 0.0
          %504 = vmatprep.subr.mxu0 0.0
          %505 = vmatpush1.msra.mxu0 0.0
          %506 = vmatprep.subr.mxu0 0.0
          %507 = vmatpush1.msra.mxu0 0.0
          %508 = vmatprep.subr.mxu0 0.0
          %509 = vmatpush1.msra.mxu0 0.0
          %510 = vmatprep.subr.mxu0 0.0
          %511 = vmatpush1.msra.mxu0 0.0
          %512 = vmatprep.subr.mxu0 0.0
          %513 = vmatpush1.msra.mxu0 0.0
          %514 = vmatprep.subr.mxu0 0.0
          %515 = vmatpush1.msra.mxu0 0.0
          %516 = vmatprep.subr.mxu0 0.0
          %517 = vmatpush1.msra.mxu0 0.0
          %518 = vmatprep.subr.mxu0 0.0
          %519 = vmatpush1.msra.mxu0 0.0
          %520 = vmatprep.subr.mxu0 0.0
          %521 = vmatpush1.msra.mxu0 0.0
          %522 = vmatprep.subr.mxu0 0.0
          %523 = vmatpush1.msra.mxu0 0.0
          %524 = vmatprep.subr.mxu0 0.0
          %525 = vmatpush1.msra.mxu0 0.0
          %526 = vmatprep.subr.mxu0 0.0
          %527 = vmatpush1.msra.mxu0 0.0
          %528 = vmatprep.mubr.f32.mxu0 0.0
          %529 = vmatmul.mubr.f32.gmra.mrb[0].mxu0 %v455
          %v530 = vpop.f32.mrb[0].mxu0
          %v531 = vadd.f32 0.0, %v530
          %v532 = vpop.f32.mrb[0].mxu0
          %v533 = vadd.f32 0.0, %v532
          %534 = vdwg.mxu0
          %v535 = vmul.f32 %v531, 0.083333336
          %v536 = vmul.f32 %v533, 0.083333336
          %v537 = vlaneseq
          %v538 = vshrl.u32 %v537, 7
          %v539 = vsub.s32 0, %v538
          %v540 = vrot.slane %v535, %v539
          %v541 = vlaneseq
          %v542 = vshrl.u32 %v541, 7
          %v543 = vsub.s32 0, %v542
          %v544 = vrot.slane %v536, %v543
          %v545 = vsub.f32 %v449, %v540
          %v546 = vsub.f32 %v450, %v544
          %v547 = vsub.f32 %v451, %v540
          %v548 = vsub.f32 %v452, %v544
          %v549 = vmul.f32 %v545, %v545
          %v550 = vmul.f32 %v546, %v546
          %v551 = vmul.f32 %v547, %v547
          %v552 = vmul.f32 %v548, %v548
          %v554 = vsel %vm457, %v551, 0
          %v557 = vsel %vm457, %v552, 0
          %559 = vmatprep.subr.mxu0 %v550
          %560 = vmatpush1.msra.mxu0 %v549
          %561 = vmatprep.subr.mxu0 %v557
          %562 = vmatpush1.msra.mxu0 %v554
          %563 = vmatprep.subr.mxu0 0.0
          %564 = vmatpush1.msra.mxu0 0.0
          %565 = vmatprep.subr.mxu0 0.0
          %566 = vmatpush1.msra.mxu0 0.0
          %567 = vmatprep.subr.mxu0 0.0
          %568 = vmatpush1.msra.mxu0 0.0
          %569 = vmatprep.subr.mxu0 0.0
          %570 = vmatpush1.msra.mxu0 0.0
          %571 = vmatprep.subr.mxu0 0.0
          %572 = vmatpush1.msra.mxu0 0.0
          %573 = vmatprep.subr.mxu0 0.0
          %574 = vmatpush1.msra.mxu0 0.0
          %575 = vmatprep.subr.mxu0 0.0
          %576 = vmatpush1.msra.mxu0 0.0
          %577 = vmatprep.subr.mxu0 0.0
          %578 = vmatpush1.msra.mxu0 0.0
          %579 = vmatprep.subr.mxu0 0.0
          %580 = vmatpush1.msra.mxu0 0.0
          %581 = vmatprep.subr.mxu0 0.0
          %582 = vmatpush1.msra.mxu0 0.0
          %583 = vmatprep.subr.mxu0 0.0
          %584 = vmatpush1.msra.mxu0 0.0
          %585 = vmatprep.subr.mxu0 0.0
          %586 = vmatpush1.msra.mxu0 0.0
          %587 = vmatprep.subr.mxu0 0.0
          %588 = vmatpush1.msra.mxu0 0.0
          %589 = vmatprep.subr.mxu0 0.0
          %590 = vmatpush1.msra.mxu0 0.0
          %591 = vmatprep.subr.mxu0 0.0
          %592 = vmatpush1.msra.mxu0 0.0
          %593 = vmatprep.subr.mxu0 0.0
          %594 = vmatpush1.msra.mxu0 0.0
          %595 = vmatprep.subr.mxu0 0.0
          %596 = vmatpush1.msra.mxu0 0.0
          %597 = vmatprep.subr.mxu0 0.0
          %598 = vmatpush1.msra.mxu0 0.0
          %599 = vmatprep.subr.mxu0 0.0
          %600 = vmatpush1.msra.mxu0 0.0
          %601 = vmatprep.subr.mxu0 0.0
          %602 = vmatpush1.msra.mxu0 0.0
          %603 = vmatprep.subr.mxu0 0.0
          %604 = vmatpush1.msra.mxu0 0.0
          %605 = vmatprep.subr.mxu0 0.0
          %606 = vmatpush1.msra.mxu0 0.0
          %607 = vmatprep.subr.mxu0 0.0
          %608 = vmatpush1.msra.mxu0 0.0
          %609 = vmatprep.subr.mxu0 0.0
          %610 = vmatpush1.msra.mxu0 0.0
          %611 = vmatprep.subr.mxu0 0.0
          %612 = vmatpush1.msra.mxu0 0.0
          %613 = vmatprep.subr.mxu0 0.0
          %614 = vmatpush1.msra.mxu0 0.0
          %615 = vmatprep.subr.mxu0 0.0
          %616 = vmatpush1.msra.mxu0 0.0
          %617 = vmatprep.subr.mxu0 0.0
          %618 = vmatpush1.msra.mxu0 0.0
          %619 = vmatprep.subr.mxu0 0.0
          %620 = vmatpush1.msra.mxu0 0.0
          %621 = vmatprep.subr.mxu0 0.0
          %622 = vmatpush1.msra.mxu0 0.0
          %623 = vmatprep.mubr.f32.mxu0 0.0
          %624 = vmatmul.mubr.f32.gmra.mrb[0].mxu0 %v455
          %v625 = vpop.f32.mrb[0].mxu0
          %v626 = vadd.f32 0.0, %v625
          %v627 = vpop.f32.mrb[0].mxu0
          %v628 = vadd.f32 0.0, %v627
          %629 = vdwg.mxu0
          %v630 = vmul.f32 %v626, 0.083333336
          %v631 = vmul.f32 %v628, 0.083333336
          %v632 = vadd.f32 %v630, 1e-06
          %v633 = vadd.f32 %v631, 1e-06
          %v634 = vrsqrt.pop %v632
          %v635 = vrsqrt.pop %v633
          %v636 = vlaneseq
          %v637 = vshrl.u32 %v636, 7
          %v638 = vsub.s32 0, %v637
          %v639 = vrot.slane %v634, %v638
          %v640 = vlaneseq
          %v641 = vshrl.u32 %v640, 7
          %v642 = vsub.s32 0, %v641
          %v643 = vrot.slane %v635, %v642
          %v644 = vmul.f32 %v545, %v639
          %v645 = vmul.f32 %v546, %v643
          %v646 = vmul.f32 %v547, %v639
          %v647 = vmul.f32 %v548, %v643
          %v648 = vpack.c.bf16 %v646, %v644
          %v649 = vpack.c.bf16 %v647, %v645
          %651 = vset.pattern.permute.xlu0 0
          %652 = vperm.xlu0 %651, %v436
          %v653 = vpop.permute.xlu0 %652
          %656 = vset.pattern.permute.xlu0 0
          %657 = vperm.xlu0 %656, %v437
          %v658 = vpop.permute.xlu0 %657
          %v662 = vunpack.c.l.b16 %v434
          %v663 = vunpack.c.l.b16 %v435
          %v664 = vpack.c.b16 %v663, %v662
          %v666 = vsel %vm453, %v664, 0
          %vm668 = vcmask 1045504
          %v670 = vsel %vm668, %v648, 0
          %v673 = vsel %vm668, %v649, 0
          %675 = vmatprep.subr.bf16.mxu0 %v673
          %676 = vmatpush1.bf16.msra.mxu0 %v670
          %677 = vmatprep.subr.bf16.mxu0 0
          %678 = vmatpush1.bf16.msra.mxu0 0
          %679 = vmatprep.subr.bf16.mxu0 0
          %680 = vmatpush1.bf16.msra.mxu0 0
          %681 = vmatprep.subr.bf16.mxu0 0
          %682 = vmatpush1.bf16.msra.mxu0 0
          %683 = vmatprep.subr.bf16.mxu0 0
          %684 = vmatpush1.bf16.msra.mxu0 0
          %685 = vmatprep.subr.bf16.mxu0 0
          %686 = vmatpush1.bf16.msra.mxu0 0
          %687 = vmatprep.subr.bf16.mxu0 0
          %688 = vmatpush1.bf16.msra.mxu0 0
          %689 = vmatprep.subr.bf16.mxu0 0
          %690 = vmatpush1.bf16.msra.mxu0 0
          %691 = vmatprep.subr.bf16.mxu0 0
          %692 = vmatpush1.bf16.msra.mxu0 0
          %693 = vmatprep.subr.bf16.mxu0 0
          %694 = vmatpush1.bf16.msra.mxu0 0
          %695 = vmatprep.subr.bf16.mxu0 0
          %696 = vmatpush1.bf16.msra.mxu0 0
          %697 = vmatprep.subr.bf16.mxu0 0
          %698 = vmatpush1.bf16.msra.mxu0 0
          %699 = vmatprep.subr.bf16.mxu0 0
          %700 = vmatpush1.bf16.msra.mxu0 0
          %701 = vmatprep.subr.bf16.mxu0 0
          %702 = vmatpush1.bf16.msra.mxu0 0
          %703 = vmatprep.subr.bf16.mxu0 0
          %704 = vmatpush1.bf16.msra.mxu0 0
          %705 = vmatprep.subr.bf16.mxu0 0
          %706 = vmatpush1.bf16.msra.mxu0 0
          %707 = vmatprep.mubr.bf16.mxu0 0
          %708 = vmatmul.mubr.bf16.gmra.mrb[0].mxu0 %v666
          %v709 = vpop.f32.mrb[0].mxu0
          %v710 = vadd.f32 %v653, %v709
          %v711 = vpop.f32.mrb[0].mxu0
          %v712 = vadd.f32 %v653, %v711
          %v713 = vpop.f32.mrb[0].mxu0
          %v714 = vadd.f32 %v658, %v713
          %v715 = vpop.f32.mrb[0].mxu0
          %v716 = vadd.f32 %v658, %v715
          %717 = vdwg.mxu0
          %720 = vrot.lane.b32.xlu0 %v712, 16
          %v721 = vpop.permute.xlu0 %720
          %722 = vrot.lane.b32.xlu0 %v716, 16
          %v723 = vpop.permute.xlu0 %722
          %728 = vrot.lane.b32.xlu0 %v710, 16
          %v729 = vpop.permute.xlu0 %728
          %730 = vrot.lane.b32.xlu0 %v714, 16
          %v731 = vpop.permute.xlu0 %730
          %vm732 = vcmask 130048
          %v733 = vsel %vm732, %v729, %v721
          %v734 = vsel %vm732, %v731, %v723
          %v739 = vsel %vm732, %v721, %v729
          %v740 = vsel %vm732, %v723, %v731
          %v741 = vlaneseq
          %v742 = vshrl.u32 %v741, 7
          %v743 = vsub.s32 2, %v742
          %v744 = vrot.slane %v430, %v743
          %v745 = vlaneseq
          %v746 = vshrl.u32 %v745, 7
          %v747 = vsub.s32 2, %v746
          %v748 = vrot.slane %v431, %v747
          %v749 = vmul.f32 %v739, %v744
          %v750 = vmul.f32 %v733, %v748
          %v751 = vmul.f32 %v740, %v744
          %v752 = vmul.f32 %v734, %v748
          %755 = vrot.lane.b32.xlu0 %v750, 1
          %v756 = vpop.permute.xlu0 %755
          %757 = vrot.lane.b32.xlu0 %v752, 1
          %v758 = vpop.permute.xlu0 %757
          %763 = vrot.lane.b32.xlu0 %v749, 1
          %v764 = vpop.permute.xlu0 %763
          %765 = vrot.lane.b32.xlu0 %v751, 1
          %v766 = vpop.permute.xlu0 %765
          %vm767 = vcmask 7168
          %v768 = vsel %vm767, %v764, %v756
          %v769 = vsel %vm767, %v766, %v758
          %v774 = vsel %vm767, %v756, %v764
          %v775 = vsel %vm767, %v758, %v766
          %v776 = vlaneseq
          %v777 = vshrl.u32 %v776, 7
          %v778 = vsub.s32 2, %v777
          %v779 = vrot.slane %v432, %v778
          %v780 = vlaneseq
          %v781 = vshrl.u32 %v780, 7
          %v782 = vsub.s32 2, %v781
          %v783 = vrot.slane %v433, %v782
          %v784 = vmul.f32 %v774, %v779
          %v785 = vmul.f32 %v768, %v783
          %v786 = vmul.f32 %v775, %v779
          %v787 = vmul.f32 %v769, %v783
          %789 = vset.pattern.permute.xlu0 0
          %790 = vperm.xlu0 %789, %v438
          %v791 = vpop.permute.xlu0 %790
          %794 = vset.pattern.permute.xlu0 0
          %795 = vperm.xlu0 %794, %v439
          %v796 = vpop.permute.xlu0 %795
          %v798 = vmul.f32 %v791, %v784
          %v799 = vmul.f32 %v791, %v785
          %v800 = vmul.f32 %v796, %v786
          %v801 = vmul.f32 %v796, %v787
          %802 = vset.pattern.permute.xlu0 1
          %803 = vperm.xlu0 %802, %v438
          %v804 = vpop.permute.xlu0 %803
          %806 = vset.pattern.permute.xlu0 1
          %807 = vperm.xlu0 %806, %v439
          %v808 = vpop.permute.xlu0 %807
          %v810 = vmul.f32 %v804, %v749
          %v811 = vmul.f32 %v804, %v750
          %v812 = vmul.f32 %v808, %v751
          %v813 = vmul.f32 %v808, %v752
          %v814 = vadd.f32 %v798, %v810
          %v815 = vadd.f32 %v799, %v811
          %v816 = vadd.f32 %v800, %v812
          %v817 = vadd.f32 %v801, %v813
          %818 = vrot.lane.b32.xlu0 %v749, 127
          %v819 = vpop.permute.xlu0 %818
          %820 = vrot.lane.b32.xlu0 %v750, 127
          %v821 = vpop.permute.xlu0 %820
          %822 = vrot.lane.b32.xlu0 %v751, 127
          %v823 = vpop.permute.xlu0 %822
          %824 = vrot.lane.b32.xlu0 %v752, 127
          %v825 = vpop.permute.xlu0 %824
          %vm826 = vcmask 1039360
          %v827 = vsel %vm826, %v819, %v821
          %v828 = vsel %vm826, %v823, %v825
          %v835 = vsel %vm826, %v821, %v819
          %v836 = vsel %vm826, %v825, %v823
          %v837 = vlaneseq
          %v838 = vshrl.u32 %v837, 7
          %v839 = vsub.s32 4, %v838
          %v840 = vrot.slane %v432, %v839
          %v841 = vlaneseq
          %v842 = vshrl.u32 %v841, 7
          %v843 = vsub.s32 4, %v842
          %v844 = vrot.slane %v433, %v843
          %v845 = vmul.f32 %v827, %v840
          %v846 = vmul.f32 %v835, %v844
          %v847 = vmul.f32 %v828, %v840
          %v848 = vmul.f32 %v836, %v844
          %849 = vset.pattern.permute.xlu0 2
          %850 = vperm.xlu0 %849, %v438
          %v851 = vpop.permute.xlu0 %850
          %853 = vset.pattern.permute.xlu0 2
          %854 = vperm.xlu0 %853, %v439
          %v855 = vpop.permute.xlu0 %854
          %v857 = vmul.f32 %v851, %v845
          %v858 = vmul.f32 %v851, %v846
          %v859 = vmul.f32 %v855, %v847
          %v860 = vmul.f32 %v855, %v848
          %v861 = vadd.f32 %v814, %v857
          %v862 = vadd.f32 %v815, %v858
          %v863 = vadd.f32 %v816, %v859
          %v864 = vadd.f32 %v817, %v860
          %865 = vrot.lane.b32.xlu0 %v712, 1
          %v866 = vpop.permute.xlu0 %865
          %867 = vrot.lane.b32.xlu0 %v716, 1
          %v868 = vpop.permute.xlu0 %867
          %871 = vrot.lane.b32.xlu0 %v710, 1
          %v872 = vpop.permute.xlu0 %871
          %873 = vrot.lane.b32.xlu0 %v714, 1
          %v874 = vpop.permute.xlu0 %873
          %v875 = vsel %vm767, %v872, %v866
          %v876 = vsel %vm767, %v874, %v868
          %v881 = vsel %vm767, %v866, %v872
          %v882 = vsel %vm767, %v868, %v874
          %v883 = vmul.f32 %v881, %v779
          %v884 = vmul.f32 %v875, %v783
          %v885 = vmul.f32 %v882, %v779
          %v886 = vmul.f32 %v876, %v783
          %887 = vset.pattern.permute.xlu0 3
          %888 = vperm.xlu0 %887, %v438
          %v889 = vpop.permute.xlu0 %888
          %891 = vset.pattern.permute.xlu0 3
          %892 = vperm.xlu0 %891, %v439
          %v893 = vpop.permute.xlu0 %892
          %v895 = vmul.f32 %v889, %v883
          %v896 = vmul.f32 %v889, %v884
          %v897 = vmul.f32 %v893, %v885
          %v898 = vmul.f32 %v893, %v886
          %v899 = vadd.f32 %v861, %v895
          %v900 = vadd.f32 %v862, %v896
          %v901 = vadd.f32 %v863, %v897
          %v902 = vadd.f32 %v864, %v898
          %903 = vset.pattern.permute.xlu0 4
          %904 = vperm.xlu0 %903, %v438
          %v905 = vpop.permute.xlu0 %904
          %907 = vset.pattern.permute.xlu0 4
          %908 = vperm.xlu0 %907, %v439
          %v909 = vpop.permute.xlu0 %908
          %v911 = vmul.f32 %v905, %v710
          %v912 = vmul.f32 %v905, %v712
          %v913 = vmul.f32 %v909, %v714
          %v914 = vmul.f32 %v909, %v716
          %v915 = vadd.f32 %v899, %v911
          %v916 = vadd.f32 %v900, %v912
          %v917 = vadd.f32 %v901, %v913
          %v918 = vadd.f32 %v902, %v914
          %919 = vrot.lane.b32.xlu0 %v710, 127
          %v920 = vpop.permute.xlu0 %919
          %921 = vrot.lane.b32.xlu0 %v712, 127
          %v922 = vpop.permute.xlu0 %921
          %923 = vrot.lane.b32.xlu0 %v714, 127
          %v924 = vpop.permute.xlu0 %923
          %925 = vrot.lane.b32.xlu0 %v716, 127
          %v926 = vpop.permute.xlu0 %925
          %v927 = vsel %vm826, %v920, %v922
          %v928 = vsel %vm826, %v924, %v926
          %v935 = vsel %vm826, %v922, %v920
          %v936 = vsel %vm826, %v926, %v924
          %v937 = vmul.f32 %v927, %v840
          %v938 = vmul.f32 %v935, %v844
          %v939 = vmul.f32 %v928, %v840
          %v940 = vmul.f32 %v936, %v844
          %941 = vset.pattern.permute.xlu0 5
          %942 = vperm.xlu0 %941, %v438
          %v943 = vpop.permute.xlu0 %942
          %945 = vset.pattern.permute.xlu0 5
          %946 = vperm.xlu0 %945, %v439
          %v947 = vpop.permute.xlu0 %946
          %v949 = vmul.f32 %v943, %v937
          %v950 = vmul.f32 %v943, %v938
          %v951 = vmul.f32 %v947, %v939
          %v952 = vmul.f32 %v947, %v940
          %v953 = vadd.f32 %v915, %v949
          %v954 = vadd.f32 %v916, %v950
          %v955 = vadd.f32 %v917, %v951
          %v956 = vadd.f32 %v918, %v952
          %957 = vrot.lane.b32.xlu0 %v710, 112
          %v958 = vpop.permute.xlu0 %957
          %959 = vrot.lane.b32.xlu0 %v712, 112
          %v960 = vpop.permute.xlu0 %959
          %961 = vrot.lane.b32.xlu0 %v714, 112
          %v962 = vpop.permute.xlu0 %961
          %963 = vrot.lane.b32.xlu0 %v716, 112
          %v964 = vpop.permute.xlu0 %963
          %vm965 = vcmask 916480
          %v966 = vsel %vm965, %v958, %v960
          %v967 = vsel %vm965, %v962, %v964
          %v974 = vsel %vm965, %v960, %v958
          %v975 = vsel %vm965, %v964, %v962
          %v976 = vlaneseq
          %v977 = vshrl.u32 %v976, 7
          %v978 = vsub.s32 4, %v977
          %v979 = vrot.slane %v430, %v978
          %v980 = vlaneseq
          %v981 = vshrl.u32 %v980, 7
          %v982 = vsub.s32 4, %v981
          %v983 = vrot.slane %v431, %v982
          %v984 = vmul.f32 %v966, %v979
          %v985 = vmul.f32 %v974, %v983
          %v986 = vmul.f32 %v967, %v979
          %v987 = vmul.f32 %v975, %v983
          %990 = vrot.lane.b32.xlu0 %v985, 1
          %v991 = vpop.permute.xlu0 %990
          %992 = vrot.lane.b32.xlu0 %v987, 1
          %v993 = vpop.permute.xlu0 %992
          %998 = vrot.lane.b32.xlu0 %v984, 1
          %v999 = vpop.permute.xlu0 %998
          %1000 = vrot.lane.b32.xlu0 %v986, 1
          %v1001 = vpop.permute.xlu0 %1000
          %v1002 = vsel %vm767, %v999, %v991
          %v1003 = vsel %vm767, %v1001, %v993
          %v1008 = vsel %vm767, %v991, %v999
          %v1009 = vsel %vm767, %v993, %v1001
          %v1010 = vmul.f32 %v1008, %v779
          %v1011 = vmul.f32 %v1002, %v783
          %v1012 = vmul.f32 %v1009, %v779
          %v1013 = vmul.f32 %v1003, %v783
          %1014 = vset.pattern.permute.xlu0 6
          %1015 = vperm.xlu0 %1014, %v438
          %v1016 = vpop.permute.xlu0 %1015
          %1018 = vset.pattern.permute.xlu0 6
          %1019 = vperm.xlu0 %1018, %v439
          %v1020 = vpop.permute.xlu0 %1019
          %v1022 = vmul.f32 %v1016, %v1010
          %v1023 = vmul.f32 %v1016, %v1011
          %v1024 = vmul.f32 %v1020, %v1012
          %v1025 = vmul.f32 %v1020, %v1013
          %v1026 = vadd.f32 %v953, %v1022
          %v1027 = vadd.f32 %v954, %v1023
          %v1028 = vadd.f32 %v955, %v1024
          %v1029 = vadd.f32 %v956, %v1025
          %1030 = vset.pattern.permute.xlu0 7
          %1031 = vperm.xlu0 %1030, %v438
          %v1032 = vpop.permute.xlu0 %1031
          %1034 = vset.pattern.permute.xlu0 7
          %1035 = vperm.xlu0 %1034, %v439
          %v1036 = vpop.permute.xlu0 %1035
          %v1038 = vmul.f32 %v1032, %v984
          %v1039 = vmul.f32 %v1032, %v985
          %v1040 = vmul.f32 %v1036, %v986
          %v1041 = vmul.f32 %v1036, %v987
          %v1042 = vadd.f32 %v1026, %v1038
          %v1043 = vadd.f32 %v1027, %v1039
          %v1044 = vadd.f32 %v1028, %v1040
          %v1045 = vadd.f32 %v1029, %v1041
          %1046 = vrot.lane.b32.xlu0 %v984, 127
          %v1047 = vpop.permute.xlu0 %1046
          %1048 = vrot.lane.b32.xlu0 %v985, 127
          %v1049 = vpop.permute.xlu0 %1048
          %1050 = vrot.lane.b32.xlu0 %v986, 127
          %v1051 = vpop.permute.xlu0 %1050
          %1052 = vrot.lane.b32.xlu0 %v987, 127
          %v1053 = vpop.permute.xlu0 %1052
          %v1054 = vsel %vm826, %v1047, %v1049
          %v1055 = vsel %vm826, %v1051, %v1053
          %v1062 = vsel %vm826, %v1049, %v1047
          %v1063 = vsel %vm826, %v1053, %v1051
          %v1064 = vmul.f32 %v1054, %v840
          %v1065 = vmul.f32 %v1062, %v844
          %v1066 = vmul.f32 %v1055, %v840
          %v1067 = vmul.f32 %v1063, %v844
          %1068 = vset.pattern.permute.xlu0 8
          %1069 = vperm.xlu0 %1068, %v438
          %v1070 = vpop.permute.xlu0 %1069
          %1072 = vset.pattern.permute.xlu0 8
          %1073 = vperm.xlu0 %1072, %v439
          %v1074 = vpop.permute.xlu0 %1073
          %v1076 = vmul.f32 %v1070, %v1064
          %v1077 = vmul.f32 %v1070, %v1065
          %v1078 = vmul.f32 %v1074, %v1066
          %v1079 = vmul.f32 %v1074, %v1067
          %v1080 = vadd.f32 %v1042, %v1076
          %v1081 = vadd.f32 %v1043, %v1077
          %v1082 = vadd.f32 %v1044, %v1078
          %v1083 = vadd.f32 %v1045, %v1079
          %v1084 = vmul.f32 %v1080, %v1082
          %v1085 = vmul.f32 %v1081, %v1083
          %1087 = vrot.lane.b32.xlu0 %v1085, 48
          %v1088 = vpop.permute.xlu0 %1087
          %1091 = vrot.lane.b32.xlu0 %v1084, 48
          %v1092 = vpop.permute.xlu0 %1091
          %vm1093 = vcmask 392192
          %v1094 = vsel %vm1093, %v1092, %v1088
          %v1097 = vsel %vm1093, %v1088, %v1092
          %v1098 = vlaneseq
          %v1099 = vshrl.u32 %v1098, 7
          %v1100 = vsub.s32 0, %v1099
          %v1101 = vrot.slane %v430, %v1100
          %v1102 = vlaneseq
          %v1103 = vshrl.u32 %v1102, 7
          %v1104 = vsub.s32 0, %v1103
          %v1105 = vrot.slane %v431, %v1104
          %v1106 = vmul.f32 %v1097, %v1101
          %v1107 = vmul.f32 %v1094, %v1105
          %1109 = vrot.lane.b32.xlu0 %v1107, 3
          %v1110 = vpop.permute.xlu0 %1109
          %1113 = vrot.lane.b32.xlu0 %v1106, 3
          %v1114 = vpop.permute.xlu0 %1113
          %vm1115 = vcmask 23552
          %v1116 = vsel %vm1115, %v1114, %v1110
          %v1119 = vsel %vm1115, %v1110, %v1114
          %v1120 = vlaneseq
          %v1121 = vshrl.u32 %v1120, 7
          %v1122 = vsub.s32 0, %v1121
          %v1123 = vrot.slane %v432, %v1122
          %v1124 = vlaneseq
          %v1125 = vshrl.u32 %v1124, 7
          %v1126 = vsub.s32 0, %v1125
          %v1127 = vrot.slane %v433, %v1126
          %v1128 = vmul.f32 %v1119, %v1123
          %v1129 = vmul.f32 %v1116, %v1127
          %1131 = vset.pattern.permute.xlu0 0
          %1132 = vperm.xlu0 %1131, %v440
          %v1133 = vpop.permute.xlu0 %1132
          %v1135 = vmul.f32 %v1133, %v1128
          %v1136 = vmul.f32 %v1133, %v1129
          %1137 = vrot.lane.b32.xlu0 %v1107, 2
          %v1138 = vpop.permute.xlu0 %1137
          %1140 = vrot.lane.b32.xlu0 %v1106, 2
          %v1141 = vpop.permute.xlu0 %1140
          %vm1142 = vcmask 15360
          %v1143 = vsel %vm1142, %v1141, %v1138
          %v1146 = vsel %vm1142, %v1138, %v1141
          %v1147 = vlaneseq
          %v1148 = vshrl.u32 %v1147, 7
          %v1149 = vsub.s32 1, %v1148
          %v1150 = vrot.slane %v432, %v1149
          %v1151 = vlaneseq
          %v1152 = vshrl.u32 %v1151, 7
          %v1153 = vsub.s32 1, %v1152
          %v1154 = vrot.slane %v433, %v1153
          %v1155 = vmul.f32 %v1146, %v1150
          %v1156 = vmul.f32 %v1143, %v1154
          %1157 = vset.pattern.permute.xlu0 1
          %1158 = vperm.xlu0 %1157, %v440
          %v1159 = vpop.permute.xlu0 %1158
          %v1161 = vmul.f32 %v1159, %v1155
          %v1162 = vmul.f32 %v1159, %v1156
          %v1163 = vadd.f32 %v1135, %v1161
          %v1164 = vadd.f32 %v1136, %v1162
          %1165 = vrot.lane.b32.xlu0 %v1107, 1
          %v1166 = vpop.permute.xlu0 %1165
          %1168 = vrot.lane.b32.xlu0 %v1106, 1
          %v1169 = vpop.permute.xlu0 %1168
          %v1170 = vsel %vm767, %v1169, %v1166
          %v1173 = vsel %vm767, %v1166, %v1169
          %v1174 = vmul.f32 %v1173, %v779
          %v1175 = vmul.f32 %v1170, %v783
          %1176 = vset.pattern.permute.xlu0 2
          %1177 = vperm.xlu0 %1176, %v440
          %v1178 = vpop.permute.xlu0 %1177
          %v1180 = vmul.f32 %v1178, %v1174
          %v1181 = vmul.f32 %v1178, %v1175
          %v1182 = vadd.f32 %v1163, %v1180
          %v1183 = vadd.f32 %v1164, %v1181
          %1184 = vset.pattern.permute.xlu0 3
          %1185 = vperm.xlu0 %1184, %v440
          %v1186 = vpop.permute.xlu0 %1185
          %v1188 = vmul.f32 %v1186, %v1106
          %v1189 = vmul.f32 %v1186, %v1107
          %v1190 = vadd.f32 %v1182, %v1188
          %v1191 = vadd.f32 %v1183, %v1189
          %1192 = vrot.lane.b32.xlu0 %v1106, 127
          %v1193 = vpop.permute.xlu0 %1192
          %1194 = vrot.lane.b32.xlu0 %v1107, 127
          %v1195 = vpop.permute.xlu0 %1194
          %v1196 = vsel %vm826, %v1193, %v1195
          %v1200 = vsel %vm826, %v1195, %v1193
          %v1201 = vmul.f32 %v1196, %v840
          %v1202 = vmul.f32 %v1200, %v844
          %1203 = vset.pattern.permute.xlu0 4
          %1204 = vperm.xlu0 %1203, %v440
          %v1205 = vpop.permute.xlu0 %1204
          %v1207 = vmul.f32 %v1205, %v1201
          %v1208 = vmul.f32 %v1205, %v1202
          %v1209 = vadd.f32 %v1190, %v1207
          %v1210 = vadd.f32 %v1191, %v1208
          %1211 = vrot.lane.b32.xlu0 %v1106, 126
          %v1212 = vpop.permute.xlu0 %1211
          %1213 = vrot.lane.b32.xlu0 %v1107, 126
          %v1214 = vpop.permute.xlu0 %1213
          %vm1215 = vcmask 1031168
          %v1216 = vsel %vm1215, %v1212, %v1214
          %v1220 = vsel %vm1215, %v1214, %v1212
          %v1221 = vlaneseq
          %v1222 = vshrl.u32 %v1221, 7
          %v1223 = vsub.s32 5, %v1222
          %v1224 = vrot.slane %v432, %v1223
          %v1225 = vlaneseq
          %v1226 = vshrl.u32 %v1225, 7
          %v1227 = vsub.s32 5, %v1226
          %v1228 = vrot.slane %v433, %v1227
          %v1229 = vmul.f32 %v1216, %v1224
          %v1230 = vmul.f32 %v1220, %v1228
          %1231 = vset.pattern.permute.xlu0 5
          %1232 = vperm.xlu0 %1231, %v440
          %v1233 = vpop.permute.xlu0 %1232
          %v1235 = vmul.f32 %v1233, %v1229
          %v1236 = vmul.f32 %v1233, %v1230
          %v1237 = vadd.f32 %v1209, %v1235
          %v1238 = vadd.f32 %v1210, %v1236
          %1239 = vrot.lane.b32.xlu0 %v1106, 125
          %v1240 = vpop.permute.xlu0 %1239
          %1241 = vrot.lane.b32.xlu0 %v1107, 125
          %v1242 = vpop.permute.xlu0 %1241
          %vm1243 = vcmask 1022976
          %v1244 = vsel %vm1243, %v1240, %v1242
          %v1248 = vsel %vm1243, %v1242, %v1240
          %v1249 = vlaneseq
          %v1250 = vshrl.u32 %v1249, 7
          %v1251 = vsub.s32 6, %v1250
          %v1252 = vrot.slane %v432, %v1251
          %v1253 = vlaneseq
          %v1254 = vshrl.u32 %v1253, 7
          %v1255 = vsub.s32 6, %v1254
          %v1256 = vrot.slane %v433, %v1255
          %v1257 = vmul.f32 %v1244, %v1252
          %v1258 = vmul.f32 %v1248, %v1256
          %1259 = vset.pattern.permute.xlu0 6
          %1260 = vperm.xlu0 %1259, %v440
          %v1261 = vpop.permute.xlu0 %1260
          %v1263 = vmul.f32 %v1261, %v1257
          %v1264 = vmul.f32 %v1261, %v1258
          %v1265 = vadd.f32 %v1237, %v1263
          %v1266 = vadd.f32 %v1238, %v1264
          %1267 = vrot.lane.b32.xlu0 %v1085, 32
          %v1268 = vpop.permute.xlu0 %1267
          %1270 = vrot.lane.b32.xlu0 %v1084, 32
          %v1271 = vpop.permute.xlu0 %1270
          %vm1272 = vcmask 261120
          %v1273 = vsel %vm1272, %v1271, %v1268
          %v1276 = vsel %vm1272, %v1268, %v1271
          %v1277 = vlaneseq
          %v1278 = vshrl.u32 %v1277, 7
          %v1279 = vsub.s32 1, %v1278
          %v1280 = vrot.slane %v430, %v1279
          %v1281 = vlaneseq
          %v1282 = vshrl.u32 %v1281, 7
          %v1283 = vsub.s32 1, %v1282
          %v1284 = vrot.slane %v431, %v1283
          %v1285 = vmul.f32 %v1276, %v1280
          %v1286 = vmul.f32 %v1273, %v1284
          %1288 = vrot.lane.b32.xlu0 %v1286, 3
          %v1289 = vpop.permute.xlu0 %1288
          %1292 = vrot.lane.b32.xlu0 %v1285, 3
          %v1293 = vpop.permute.xlu0 %1292
          %v1294 = vsel %vm1115, %v1293, %v1289
          %v1297 = vsel %vm1115, %v1289, %v1293
          %v1298 = vmul.f32 %v1297, %v1123
          %v1299 = vmul.f32 %v1294, %v1127
          %1300 = vset.pattern.permute.xlu0 7
          %1301 = vperm.xlu0 %1300, %v440
          %v1302 = vpop.permute.xlu0 %1301
          %v1304 = vmul.f32 %v1302, %v1298
          %v1305 = vmul.f32 %v1302, %v1299
          %v1306 = vadd.f32 %v1265, %v1304
          %v1307 = vadd.f32 %v1266, %v1305
          %1308 = vrot.lane.b32.xlu0 %v1286, 2
          %v1309 = vpop.permute.xlu0 %1308
          %1311 = vrot.lane.b32.xlu0 %v1285, 2
          %v1312 = vpop.permute.xlu0 %1311
          %v1313 = vsel %vm1142, %v1312, %v1309
          %v1316 = vsel %vm1142, %v1309, %v1312
          %v1317 = vmul.f32 %v1316, %v1150
          %v1318 = vmul.f32 %v1313, %v1154
          %1319 = vset.pattern.permute.xlu0 8
          %1320 = vperm.xlu0 %1319, %v440
          %v1321 = vpop.permute.xlu0 %1320
          %v1323 = vmul.f32 %v1321, %v1317
          %v1324 = vmul.f32 %v1321, %v1318
          %v1325 = vadd.f32 %v1306, %v1323
          %v1326 = vadd.f32 %v1307, %v1324
          %1327 = vrot.lane.b32.xlu0 %v1286, 1
          %v1328 = vpop.permute.xlu0 %1327
          %1330 = vrot.lane.b32.xlu0 %v1285, 1
          %v1331 = vpop.permute.xlu0 %1330
          %v1332 = vsel %vm767, %v1331, %v1328
          %v1335 = vsel %vm767, %v1328, %v1331
          %v1336 = vmul.f32 %v1335, %v779
          %v1337 = vmul.f32 %v1332, %v783
          %1338 = vset.pattern.permute.xlu0 9
          %1339 = vperm.xlu0 %1338, %v440
          %v1340 = vpop.permute.xlu0 %1339
          %v1342 = vmul.f32 %v1340, %v1336
          %v1343 = vmul.f32 %v1340, %v1337
          %v1344 = vadd.f32 %v1325, %v1342
          %v1345 = vadd.f32 %v1326, %v1343
          %1346 = vset.pattern.permute.xlu0 10
          %1347 = vperm.xlu0 %1346, %v440
          %v1348 = vpop.permute.xlu0 %1347
          %v1350 = vmul.f32 %v1348, %v1285
          %v1351 = vmul.f32 %v1348, %v1286
          %v1352 = vadd.f32 %v1344, %v1350
          %v1353 = vadd.f32 %v1345, %v1351
          %1354 = vrot.lane.b32.xlu0 %v1285, 127
          %v1355 = vpop.permute.xlu0 %1354
          %1356 = vrot.lane.b32.xlu0 %v1286, 127
          %v1357 = vpop.permute.xlu0 %1356
          %v1358 = vsel %vm826, %v1355, %v1357
          %v1362 = vsel %vm826, %v1357, %v1355
          %v1363 = vmul.f32 %v1358, %v840
          %v1364 = vmul.f32 %v1362, %v844
          %1365 = vset.pattern.permute.xlu0 11
          %1366 = vperm.xlu0 %1365, %v440
          %v1367 = vpop.permute.xlu0 %1366
          %v1369 = vmul.f32 %v1367, %v1363
          %v1370 = vmul.f32 %v1367, %v1364
          %v1371 = vadd.f32 %v1352, %v1369
          %v1372 = vadd.f32 %v1353, %v1370
          %1373 = vrot.lane.b32.xlu0 %v1285, 126
          %v1374 = vpop.permute.xlu0 %1373
          %1375 = vrot.lane.b32.xlu0 %v1286, 126
          %v1376 = vpop.permute.xlu0 %1375
          %v1377 = vsel %vm1215, %v1374, %v1376
          %v1381 = vsel %vm1215, %v1376, %v1374
          %v1382 = vmul.f32 %v1377, %v1224
          %v1383 = vmul.f32 %v1381, %v1228
          %1384 = vset.pattern.permute.xlu0 12
          %1385 = vperm.xlu0 %1384, %v440
          %v1386 = vpop.permute.xlu0 %1385
          %v1388 = vmul.f32 %v1386, %v1382
          %v1389 = vmul.f32 %v1386, %v1383
          %v1390 = vadd.f32 %v1371, %v1388
          %v1391 = vadd.f32 %v1372, %v1389
          %1392 = vrot.lane.b32.xlu0 %v1285, 125
          %v1393 = vpop.permute.xlu0 %1392
          %1394 = vrot.lane.b32.xlu0 %v1286, 125
          %v1395 = vpop.permute.xlu0 %1394
          %v1396 = vsel %vm1243, %v1393, %v1395
          %v1400 = vsel %vm1243, %v1395, %v1393
          %v1401 = vmul.f32 %v1396, %v1252
          %v1402 = vmul.f32 %v1400, %v1256
          %1403 = vset.pattern.permute.xlu0 13
          %1404 = vperm.xlu0 %1403, %v440
          %v1405 = vpop.permute.xlu0 %1404
          %v1407 = vmul.f32 %v1405, %v1401
          %v1408 = vmul.f32 %v1405, %v1402
          %v1409 = vadd.f32 %v1390, %v1407
          %v1410 = vadd.f32 %v1391, %v1408
          %1411 = vrot.lane.b32.xlu0 %v1085, 16
          %v1412 = vpop.permute.xlu0 %1411
          %1414 = vrot.lane.b32.xlu0 %v1084, 16
          %v1415 = vpop.permute.xlu0 %1414
          %v1416 = vsel %vm732, %v1415, %v1412
          %v1419 = vsel %vm732, %v1412, %v1415
          %v1420 = vmul.f32 %v1419, %v744
          %v1421 = vmul.f32 %v1416, %v748
          %1423 = vrot.lane.b32.xlu0 %v1421, 3
          %v1424 = vpop.permute.xlu0 %1423
          %1427 = vrot.lane.b32.xlu0 %v1420, 3
          %v1428 = vpop.permute.xlu0 %1427
          %v1429 = vsel %vm1115, %v1428, %v1424
          %v1432 = vsel %vm1115, %v1424, %v1428
          %v1433 = vmul.f32 %v1432, %v1123
          %v1434 = vmul.f32 %v1429, %v1127
          %1435 = vset.pattern.permute.xlu0 14
          %1436 = vperm.xlu0 %1435, %v440
          %v1437 = vpop.permute.xlu0 %1436
          %v1439 = vmul.f32 %v1437, %v1433
          %v1440 = vmul.f32 %v1437, %v1434
          %v1441 = vadd.f32 %v1409, %v1439
          %v1442 = vadd.f32 %v1410, %v1440
          %1443 = vrot.lane.b32.xlu0 %v1421, 2
          %v1444 = vpop.permute.xlu0 %1443
          %1446 = vrot.lane.b32.xlu0 %v1420, 2
          %v1447 = vpop.permute.xlu0 %1446
          %v1448 = vsel %vm1142, %v1447, %v1444
          %v1451 = vsel %vm1142, %v1444, %v1447
          %v1452 = vmul.f32 %v1451, %v1150
          %v1453 = vmul.f32 %v1448, %v1154
          %1454 = vset.pattern.permute.xlu0 15
          %1455 = vperm.xlu0 %1454, %v440
          %v1456 = vpop.permute.xlu0 %1455
          %v1458 = vmul.f32 %v1456, %v1452
          %v1459 = vmul.f32 %v1456, %v1453
          %v1460 = vadd.f32 %v1441, %v1458
          %v1461 = vadd.f32 %v1442, %v1459
          %1462 = vrot.lane.b32.xlu0 %v1421, 1
          %v1463 = vpop.permute.xlu0 %1462
          %1465 = vrot.lane.b32.xlu0 %v1420, 1
          %v1466 = vpop.permute.xlu0 %1465
          %v1467 = vsel %vm767, %v1466, %v1463
          %v1470 = vsel %vm767, %v1463, %v1466
          %v1471 = vmul.f32 %v1470, %v779
          %v1472 = vmul.f32 %v1467, %v783
          %1473 = vset.pattern.permute.xlu0 16
          %1474 = vperm.xlu0 %1473, %v440
          %v1475 = vpop.permute.xlu0 %1474
          %v1477 = vmul.f32 %v1475, %v1471
          %v1478 = vmul.f32 %v1475, %v1472
          %v1479 = vadd.f32 %v1460, %v1477
          %v1480 = vadd.f32 %v1461, %v1478
          %1481 = vset.pattern.permute.xlu0 17
          %1482 = vperm.xlu0 %1481, %v440
          %v1483 = vpop.permute.xlu0 %1482
          %v1485 = vmul.f32 %v1483, %v1420
          %v1486 = vmul.f32 %v1483, %v1421
          %v1487 = vadd.f32 %v1479, %v1485
          %v1488 = vadd.f32 %v1480, %v1486
          %1489 = vrot.lane.b32.xlu0 %v1420, 127
          %v1490 = vpop.permute.xlu0 %1489
          %1491 = vrot.lane.b32.xlu0 %v1421, 127
          %v1492 = vpop.permute.xlu0 %1491
          %v1493 = vsel %vm826, %v1490, %v1492
          %v1497 = vsel %vm826, %v1492, %v1490
          %v1498 = vmul.f32 %v1493, %v840
          %v1499 = vmul.f32 %v1497, %v844
          %1500 = vset.pattern.permute.xlu0 18
          %1501 = vperm.xlu0 %1500, %v440
          %v1502 = vpop.permute.xlu0 %1501
          %v1504 = vmul.f32 %v1502, %v1498
          %v1505 = vmul.f32 %v1502, %v1499
          %v1506 = vadd.f32 %v1487, %v1504
          %v1507 = vadd.f32 %v1488, %v1505
          %1508 = vrot.lane.b32.xlu0 %v1420, 126
          %v1509 = vpop.permute.xlu0 %1508
          %1510 = vrot.lane.b32.xlu0 %v1421, 126
          %v1511 = vpop.permute.xlu0 %1510
          %v1512 = vsel %vm1215, %v1509, %v1511
          %v1516 = vsel %vm1215, %v1511, %v1509
          %v1517 = vmul.f32 %v1512, %v1224
          %v1518 = vmul.f32 %v1516, %v1228
          %1519 = vset.pattern.permute.xlu0 19
          %1520 = vperm.xlu0 %1519, %v440
          %v1521 = vpop.permute.xlu0 %1520
          %v1523 = vmul.f32 %v1521, %v1517
          %v1524 = vmul.f32 %v1521, %v1518
          %v1525 = vadd.f32 %v1506, %v1523
          %v1526 = vadd.f32 %v1507, %v1524
          %1527 = vrot.lane.b32.xlu0 %v1420, 125
          %v1528 = vpop.permute.xlu0 %1527
          %1529 = vrot.lane.b32.xlu0 %v1421, 125
          %v1530 = vpop.permute.xlu0 %1529
          %v1531 = vsel %vm1243, %v1528, %v1530
          %v1535 = vsel %vm1243, %v1530, %v1528
          %v1536 = vmul.f32 %v1531, %v1252
          %v1537 = vmul.f32 %v1535, %v1256
          %1538 = vset.pattern.permute.xlu0 20
          %1539 = vperm.xlu0 %1538, %v440
          %v1540 = vpop.permute.xlu0 %1539
          %v1542 = vmul.f32 %v1540, %v1536
          %v1543 = vmul.f32 %v1540, %v1537
          %v1544 = vadd.f32 %v1525, %v1542
          %v1545 = vadd.f32 %v1526, %v1543
          %1546 = vrot.lane.b32.xlu0 %v1085, 3
          %v1547 = vpop.permute.xlu0 %1546
          %1549 = vrot.lane.b32.xlu0 %v1084, 3
          %v1550 = vpop.permute.xlu0 %1549
          %v1551 = vsel %vm1115, %v1550, %v1547
          %v1554 = vsel %vm1115, %v1547, %v1550
          %v1555 = vmul.f32 %v1554, %v1123
          %v1556 = vmul.f32 %v1551, %v1127
          %1557 = vset.pattern.permute.xlu0 21
          %1558 = vperm.xlu0 %1557, %v440
          %v1559 = vpop.permute.xlu0 %1558
          %v1561 = vmul.f32 %v1559, %v1555
          %v1562 = vmul.f32 %v1559, %v1556
          %v1563 = vadd.f32 %v1544, %v1561
          %v1564 = vadd.f32 %v1545, %v1562
          %1565 = vrot.lane.b32.xlu0 %v1085, 2
          %v1566 = vpop.permute.xlu0 %1565
          %1568 = vrot.lane.b32.xlu0 %v1084, 2
          %v1569 = vpop.permute.xlu0 %1568
          %v1570 = vsel %vm1142, %v1569, %v1566
          %v1573 = vsel %vm1142, %v1566, %v1569
          %v1574 = vmul.f32 %v1573, %v1150
          %v1575 = vmul.f32 %v1570, %v1154
          %1576 = vset.pattern.permute.xlu0 22
          %1577 = vperm.xlu0 %1576, %v440
          %v1578 = vpop.permute.xlu0 %1577
          %v1580 = vmul.f32 %v1578, %v1574
          %v1581 = vmul.f32 %v1578, %v1575
          %v1582 = vadd.f32 %v1563, %v1580
          %v1583 = vadd.f32 %v1564, %v1581
          %1584 = vrot.lane.b32.xlu0 %v1085, 1
          %v1585 = vpop.permute.xlu0 %1584
          %1587 = vrot.lane.b32.xlu0 %v1084, 1
          %v1588 = vpop.permute.xlu0 %1587
          %v1589 = vsel %vm767, %v1588, %v1585
          %v1592 = vsel %vm767, %v1585, %v1588
          %v1593 = vmul.f32 %v1592, %v779
          %v1594 = vmul.f32 %v1589, %v783
          %1595 = vset.pattern.permute.xlu0 23
          %1596 = vperm.xlu0 %1595, %v440
          %v1597 = vpop.permute.xlu0 %1596
          %v1599 = vmul.f32 %v1597, %v1593
          %v1600 = vmul.f32 %v1597, %v1594
          %v1601 = vadd.f32 %v1582, %v1599
          %v1602 = vadd.f32 %v1583, %v1600
          %1603 = vset.pattern.permute.xlu0 24
          %1604 = vperm.xlu0 %1603, %v440
          %v1605 = vpop.permute.xlu0 %1604
          %v1607 = vmul.f32 %v1605, %v1084
          %v1608 = vmul.f32 %v1605, %v1085
          %v1609 = vadd.f32 %v1601, %v1607
          %v1610 = vadd.f32 %v1602, %v1608
          %1611 = vrot.lane.b32.xlu0 %v1084, 127
          %v1612 = vpop.permute.xlu0 %1611
          %1613 = vrot.lane.b32.xlu0 %v1085, 127
          %v1614 = vpop.permute.xlu0 %1613
          %v1615 = vsel %vm826, %v1612, %v1614
          %v1619 = vsel %vm826, %v1614, %v1612
          %v1620 = vmul.f32 %v1615, %v840
          %v1621 = vmul.f32 %v1619, %v844
          %1622 = vset.pattern.permute.xlu0 25
          %1623 = vperm.xlu0 %1622, %v440
          %v1624 = vpop.permute.xlu0 %1623
          %v1626 = vmul.f32 %v1624, %v1620
          %v1627 = vmul.f32 %v1624, %v1621
          %v1628 = vadd.f32 %v1609, %v1626
          %v1629 = vadd.f32 %v1610, %v1627
          %1630 = vrot.lane.b32.xlu0 %v1084, 126
          %v1631 = vpop.permute.xlu0 %1630
          %1632 = vrot.lane.b32.xlu0 %v1085, 126
          %v1633 = vpop.permute.xlu0 %1632
          %v1634 = vsel %vm1215, %v1631, %v1633
          %v1638 = vsel %vm1215, %v1633, %v1631
          %v1639 = vmul.f32 %v1634, %v1224
          %v1640 = vmul.f32 %v1638, %v1228
          %1641 = vset.pattern.permute.xlu0 26
          %1642 = vperm.xlu0 %1641, %v440
          %v1643 = vpop.permute.xlu0 %1642
          %v1645 = vmul.f32 %v1643, %v1639
          %v1646 = vmul.f32 %v1643, %v1640
          %v1647 = vadd.f32 %v1628, %v1645
          %v1648 = vadd.f32 %v1629, %v1646
          %1649 = vrot.lane.b32.xlu0 %v1084, 125
          %v1650 = vpop.permute.xlu0 %1649
          %1651 = vrot.lane.b32.xlu0 %v1085, 125
          %v1652 = vpop.permute.xlu0 %1651
          %v1653 = vsel %vm1243, %v1650, %v1652
          %v1657 = vsel %vm1243, %v1652, %v1650
          %v1658 = vmul.f32 %v1653, %v1252
          %v1659 = vmul.f32 %v1657, %v1256
          %1660 = vset.pattern.permute.xlu0 27
          %1661 = vperm.xlu0 %1660, %v440
          %v1662 = vpop.permute.xlu0 %1661
          %v1664 = vmul.f32 %v1662, %v1658
          %v1665 = vmul.f32 %v1662, %v1659
          %v1666 = vadd.f32 %v1647, %v1664
          %v1667 = vadd.f32 %v1648, %v1665
          %1668 = vrot.lane.b32.xlu0 %v1084, 112
          %v1669 = vpop.permute.xlu0 %1668
          %1670 = vrot.lane.b32.xlu0 %v1085, 112
          %v1671 = vpop.permute.xlu0 %1670
          %v1672 = vsel %vm965, %v1669, %v1671
          %v1676 = vsel %vm965, %v1671, %v1669
          %v1677 = vmul.f32 %v1672, %v979
          %v1678 = vmul.f32 %v1676, %v983
          %1680 = vrot.lane.b32.xlu0 %v1678, 3
          %v1681 = vpop.permute.xlu0 %1680
          %1684 = vrot.lane.b32.xlu0 %v1677, 3
          %v1685 = vpop.permute.xlu0 %1684
          %v1686 = vsel %vm1115, %v1685, %v1681
          %v1689 = vsel %vm1115, %v1681, %v1685
          %v1690 = vmul.f32 %v1689, %v1123
          %v1691 = vmul.f32 %v1686, %v1127
          %1692 = vset.pattern.permute.xlu0 28
          %1693 = vperm.xlu0 %1692, %v440
          %v1694 = vpop.permute.xlu0 %1693
          %v1696 = vmul.f32 %v1694, %v1690
          %v1697 = vmul.f32 %v1694, %v1691
          %v1698 = vadd.f32 %v1666, %v1696
          %v1699 = vadd.f32 %v1667, %v1697
          %1700 = vrot.lane.b32.xlu0 %v1678, 2
          %v1701 = vpop.permute.xlu0 %1700
          %1703 = vrot.lane.b32.xlu0 %v1677, 2
          %v1704 = vpop.permute.xlu0 %1703
          %v1705 = vsel %vm1142, %v1704, %v1701
          %v1708 = vsel %vm1142, %v1701, %v1704
          %v1709 = vmul.f32 %v1708, %v1150
          %v1710 = vmul.f32 %v1705, %v1154
          %1711 = vset.pattern.permute.xlu0 29
          %1712 = vperm.xlu0 %1711, %v440
          %v1713 = vpop.permute.xlu0 %1712
          %v1715 = vmul.f32 %v1713, %v1709
          %v1716 = vmul.f32 %v1713, %v1710
          %v1717 = vadd.f32 %v1698, %v1715
          %v1718 = vadd.f32 %v1699, %v1716
          %1719 = vrot.lane.b32.xlu0 %v1678, 1
          %v1720 = vpop.permute.xlu0 %1719
          %1722 = vrot.lane.b32.xlu0 %v1677, 1
          %v1723 = vpop.permute.xlu0 %1722
          %v1724 = vsel %vm767, %v1723, %v1720
          %v1727 = vsel %vm767, %v1720, %v1723
          %v1728 = vmul.f32 %v1727, %v779
          %v1729 = vmul.f32 %v1724, %v783
          %1730 = vset.pattern.permute.xlu0 30
          %1731 = vperm.xlu0 %1730, %v440
          %v1732 = vpop.permute.xlu0 %1731
          %v1734 = vmul.f32 %v1732, %v1728
          %v1735 = vmul.f32 %v1732, %v1729
          %v1736 = vadd.f32 %v1717, %v1734
          %v1737 = vadd.f32 %v1718, %v1735
          %1738 = vset.pattern.permute.xlu0 31
          %1739 = vperm.xlu0 %1738, %v440
          %v1740 = vpop.permute.xlu0 %1739
          %v1742 = vmul.f32 %v1740, %v1677
          %v1743 = vmul.f32 %v1740, %v1678
          %v1744 = vadd.f32 %v1736, %v1742
          %v1745 = vadd.f32 %v1737, %v1743
          %1746 = vrot.lane.b32.xlu0 %v1677, 127
          %v1747 = vpop.permute.xlu0 %1746
          %1748 = vrot.lane.b32.xlu0 %v1678, 127
          %v1749 = vpop.permute.xlu0 %1748
          %v1750 = vsel %vm826, %v1747, %v1749
          %v1754 = vsel %vm826, %v1749, %v1747
          %v1755 = vmul.f32 %v1750, %v840
          %v1756 = vmul.f32 %v1754, %v844
          %1757 = vset.pattern.permute.xlu0 32
          %1758 = vperm.xlu0 %1757, %v440
          %v1759 = vpop.permute.xlu0 %1758
          %v1761 = vmul.f32 %v1759, %v1755
          %v1762 = vmul.f32 %v1759, %v1756
          %v1763 = vadd.f32 %v1744, %v1761
          %v1764 = vadd.f32 %v1745, %v1762
          %1765 = vrot.lane.b32.xlu0 %v1677, 126
          %v1766 = vpop.permute.xlu0 %1765
          %1767 = vrot.lane.b32.xlu0 %v1678, 126
          %v1768 = vpop.permute.xlu0 %1767
          %v1769 = vsel %vm1215, %v1766, %v1768
          %v1773 = vsel %vm1215, %v1768, %v1766
          %v1774 = vmul.f32 %v1769, %v1224
          %v1775 = vmul.f32 %v1773, %v1228
          %1776 = vset.pattern.permute.xlu0 33
          %1777 = vperm.xlu0 %1776, %v440
          %v1778 = vpop.permute.xlu0 %1777
          %v1780 = vmul.f32 %v1778, %v1774
          %v1781 = vmul.f32 %v1778, %v1775
          %v1782 = vadd.f32 %v1763, %v1780
          %v1783 = vadd.f32 %v1764, %v1781
          %1784 = vrot.lane.b32.xlu0 %v1677, 125
          %v1785 = vpop.permute.xlu0 %1784
          %1786 = vrot.lane.b32.xlu0 %v1678, 125
          %v1787 = vpop.permute.xlu0 %1786
          %v1788 = vsel %vm1243, %v1785, %v1787
          %v1792 = vsel %vm1243, %v1787, %v1785
          %v1793 = vmul.f32 %v1788, %v1252
          %v1794 = vmul.f32 %v1792, %v1256
          %1795 = vset.pattern.permute.xlu0 34
          %1796 = vperm.xlu0 %1795, %v440
          %v1797 = vpop.permute.xlu0 %1796
          %v1799 = vmul.f32 %v1797, %v1793
          %v1800 = vmul.f32 %v1797, %v1794
          %v1801 = vadd.f32 %v1782, %v1799
          %v1802 = vadd.f32 %v1783, %v1800
          %1803 = vrot.lane.b32.xlu0 %v1084, 96
          %v1804 = vpop.permute.xlu0 %1803
          %1805 = vrot.lane.b32.xlu0 %v1085, 96
          %v1806 = vpop.permute.xlu0 %1805
          %vm1807 = vcmask 785408
          %v1808 = vsel %vm1807, %v1804, %v1806
          %v1812 = vsel %vm1807, %v1806, %v1804
          %v1813 = vlaneseq
          %v1814 = vshrl.u32 %v1813, 7
          %v1815 = vsub.s32 5, %v1814
          %v1816 = vrot.slane %v430, %v1815
          %v1817 = vlaneseq
          %v1818 = vshrl.u32 %v1817, 7
          %v1819 = vsub.s32 5, %v1818
          %v1820 = vrot.slane %v431, %v1819
          %v1821 = vmul.f32 %v1808, %v1816
          %v1822 = vmul.f32 %v1812, %v1820
          %1824 = vrot.lane.b32.xlu0 %v1822, 3
          %v1825 = vpop.permute.xlu0 %1824
          %1828 = vrot.lane.b32.xlu0 %v1821, 3
          %v1829 = vpop.permute.xlu0 %1828
          %v1830 = vsel %vm1115, %v1829, %v1825
          %v1833 = vsel %vm1115, %v1825, %v1829
          %v1834 = vmul.f32 %v1833, %v1123
          %v1835 = vmul.f32 %v1830, %v1127
          %1836 = vset.pattern.permute.xlu0 35
          %1837 = vperm.xlu0 %1836, %v440
          %v1838 = vpop.permute.xlu0 %1837
          %v1840 = vmul.f32 %v1838, %v1834
          %v1841 = vmul.f32 %v1838, %v1835
          %v1842 = vadd.f32 %v1801, %v1840
          %v1843 = vadd.f32 %v1802, %v1841
          %1844 = vrot.lane.b32.xlu0 %v1822, 2
          %v1845 = vpop.permute.xlu0 %1844
          %1847 = vrot.lane.b32.xlu0 %v1821, 2
          %v1848 = vpop.permute.xlu0 %1847
          %v1849 = vsel %vm1142, %v1848, %v1845
          %v1852 = vsel %vm1142, %v1845, %v1848
          %v1853 = vmul.f32 %v1852, %v1150
          %v1854 = vmul.f32 %v1849, %v1154
          %1855 = vset.pattern.permute.xlu0 36
          %1856 = vperm.xlu0 %1855, %v440
          %v1857 = vpop.permute.xlu0 %1856
          %v1859 = vmul.f32 %v1857, %v1853
          %v1860 = vmul.f32 %v1857, %v1854
          %v1861 = vadd.f32 %v1842, %v1859
          %v1862 = vadd.f32 %v1843, %v1860
          %1863 = vrot.lane.b32.xlu0 %v1822, 1
          %v1864 = vpop.permute.xlu0 %1863
          %1866 = vrot.lane.b32.xlu0 %v1821, 1
          %v1867 = vpop.permute.xlu0 %1866
          %v1868 = vsel %vm767, %v1867, %v1864
          %v1871 = vsel %vm767, %v1864, %v1867
          %v1872 = vmul.f32 %v1871, %v779
          %v1873 = vmul.f32 %v1868, %v783
          %1874 = vset.pattern.permute.xlu0 37
          %1875 = vperm.xlu0 %1874, %v440
          %v1876 = vpop.permute.xlu0 %1875
          %v1878 = vmul.f32 %v1876, %v1872
          %v1879 = vmul.f32 %v1876, %v1873
          %v1880 = vadd.f32 %v1861, %v1878
          %v1881 = vadd.f32 %v1862, %v1879
          %1882 = vset.pattern.permute.xlu0 38
          %1883 = vperm.xlu0 %1882, %v440
          %v1884 = vpop.permute.xlu0 %1883
          %v1886 = vmul.f32 %v1884, %v1821
          %v1887 = vmul.f32 %v1884, %v1822
          %v1888 = vadd.f32 %v1880, %v1886
          %v1889 = vadd.f32 %v1881, %v1887
          %1890 = vrot.lane.b32.xlu0 %v1821, 127
          %v1891 = vpop.permute.xlu0 %1890
          %1892 = vrot.lane.b32.xlu0 %v1822, 127
          %v1893 = vpop.permute.xlu0 %1892
          %v1894 = vsel %vm826, %v1891, %v1893
          %v1898 = vsel %vm826, %v1893, %v1891
          %v1899 = vmul.f32 %v1894, %v840
          %v1900 = vmul.f32 %v1898, %v844
          %1901 = vset.pattern.permute.xlu0 39
          %1902 = vperm.xlu0 %1901, %v440
          %v1903 = vpop.permute.xlu0 %1902
          %v1905 = vmul.f32 %v1903, %v1899
          %v1906 = vmul.f32 %v1903, %v1900
          %v1907 = vadd.f32 %v1888, %v1905
          %v1908 = vadd.f32 %v1889, %v1906
          %1909 = vrot.lane.b32.xlu0 %v1821, 126
          %v1910 = vpop.permute.xlu0 %1909
          %1911 = vrot.lane.b32.xlu0 %v1822, 126
          %v1912 = vpop.permute.xlu0 %1911
          %v1913 = vsel %vm1215, %v1910, %v1912
          %v1917 = vsel %vm1215, %v1912, %v1910
          %v1918 = vmul.f32 %v1913, %v1224
          %v1919 = vmul.f32 %v1917, %v1228
          %1920 = vset.pattern.permute.xlu0 40
          %1921 = vperm.xlu0 %1920, %v440
          %v1922 = vpop.permute.xlu0 %1921
          %v1924 = vmul.f32 %v1922, %v1918
          %v1925 = vmul.f32 %v1922, %v1919
          %v1926 = vadd.f32 %v1907, %v1924
          %v1927 = vadd.f32 %v1908, %v1925
          %1928 = vrot.lane.b32.xlu0 %v1821, 125
          %v1929 = vpop.permute.xlu0 %1928
          %1930 = vrot.lane.b32.xlu0 %v1822, 125
          %v1931 = vpop.permute.xlu0 %1930
          %v1932 = vsel %vm1243, %v1929, %v1931
          %v1936 = vsel %vm1243, %v1931, %v1929
          %v1937 = vmul.f32 %v1932, %v1252
          %v1938 = vmul.f32 %v1936, %v1256
          %1939 = vset.pattern.permute.xlu0 41
          %1940 = vperm.xlu0 %1939, %v440
          %v1941 = vpop.permute.xlu0 %1940
          %v1943 = vmul.f32 %v1941, %v1937
          %v1944 = vmul.f32 %v1941, %v1938
          %v1945 = vadd.f32 %v1926, %v1943
          %v1946 = vadd.f32 %v1927, %v1944
          %1947 = vrot.lane.b32.xlu0 %v1084, 80
          %v1948 = vpop.permute.xlu0 %1947
          %1949 = vrot.lane.b32.xlu0 %v1085, 80
          %v1950 = vpop.permute.xlu0 %1949
          %vm1951 = vcmask 654336
          %v1952 = vsel %vm1951, %v1948, %v1950
          %v1956 = vsel %vm1951, %v1950, %v1948
          %v1957 = vlaneseq
          %v1958 = vshrl.u32 %v1957, 7
          %v1959 = vsub.s32 6, %v1958
          %v1960 = vrot.slane %v430, %v1959
          %v1961 = vlaneseq
          %v1962 = vshrl.u32 %v1961, 7
          %v1963 = vsub.s32 6, %v1962
          %v1964 = vrot.slane %v431, %v1963
          %v1965 = vmul.f32 %v1952, %v1960
          %v1966 = vmul.f32 %v1956, %v1964
          %1968 = vrot.lane.b32.xlu0 %v1966, 3
          %v1969 = vpop.permute.xlu0 %1968
          %1972 = vrot.lane.b32.xlu0 %v1965, 3
          %v1973 = vpop.permute.xlu0 %1972
          %v1974 = vsel %vm1115, %v1973, %v1969
          %v1977 = vsel %vm1115, %v1969, %v1973
          %v1978 = vmul.f32 %v1977, %v1123
          %v1979 = vmul.f32 %v1974, %v1127
          %1980 = vset.pattern.permute.xlu0 42
          %1981 = vperm.xlu0 %1980, %v440
          %v1982 = vpop.permute.xlu0 %1981
          %v1984 = vmul.f32 %v1982, %v1978
          %v1985 = vmul.f32 %v1982, %v1979
          %v1986 = vadd.f32 %v1945, %v1984
          %v1987 = vadd.f32 %v1946, %v1985
          %1988 = vrot.lane.b32.xlu0 %v1966, 2
          %v1989 = vpop.permute.xlu0 %1988
          %1991 = vrot.lane.b32.xlu0 %v1965, 2
          %v1992 = vpop.permute.xlu0 %1991
          %v1993 = vsel %vm1142, %v1992, %v1989
          %v1996 = vsel %vm1142, %v1989, %v1992
          %v1997 = vmul.f32 %v1996, %v1150
          %v1998 = vmul.f32 %v1993, %v1154
          %1999 = vset.pattern.permute.xlu0 43
          %2000 = vperm.xlu0 %1999, %v440
          %v2001 = vpop.permute.xlu0 %2000
          %v2003 = vmul.f32 %v2001, %v1997
          %v2004 = vmul.f32 %v2001, %v1998
          %v2005 = vadd.f32 %v1986, %v2003
          %v2006 = vadd.f32 %v1987, %v2004
          %2007 = vrot.lane.b32.xlu0 %v1966, 1
          %v2008 = vpop.permute.xlu0 %2007
          %2010 = vrot.lane.b32.xlu0 %v1965, 1
          %v2011 = vpop.permute.xlu0 %2010
          %v2012 = vsel %vm767, %v2011, %v2008
          %v2015 = vsel %vm767, %v2008, %v2011
          %v2016 = vmul.f32 %v2015, %v779
          %v2017 = vmul.f32 %v2012, %v783
          %2018 = vset.pattern.permute.xlu0 44
          %2019 = vperm.xlu0 %2018, %v440
          %v2020 = vpop.permute.xlu0 %2019
          %v2022 = vmul.f32 %v2020, %v2016
          %v2023 = vmul.f32 %v2020, %v2017
          %v2024 = vadd.f32 %v2005, %v2022
          %v2025 = vadd.f32 %v2006, %v2023
          %2026 = vset.pattern.permute.xlu0 45
          %2027 = vperm.xlu0 %2026, %v440
          %v2028 = vpop.permute.xlu0 %2027
          %v2030 = vmul.f32 %v2028, %v1965
          %v2031 = vmul.f32 %v2028, %v1966
          %v2032 = vadd.f32 %v2024, %v2030
          %v2033 = vadd.f32 %v2025, %v2031
          %2034 = vrot.lane.b32.xlu0 %v1965, 127
          %v2035 = vpop.permute.xlu0 %2034
          %2036 = vrot.lane.b32.xlu0 %v1966, 127
          %v2037 = vpop.permute.xlu0 %2036
          %v2038 = vsel %vm826, %v2035, %v2037
          %v2042 = vsel %vm826, %v2037, %v2035
          %v2043 = vmul.f32 %v2038, %v840
          %v2044 = vmul.f32 %v2042, %v844
          %2045 = vset.pattern.permute.xlu0 46
          %2046 = vperm.xlu0 %2045, %v440
          %v2047 = vpop.permute.xlu0 %2046
          %v2049 = vmul.f32 %v2047, %v2043
          %v2050 = vmul.f32 %v2047, %v2044
          %v2051 = vadd.f32 %v2032, %v2049
          %v2052 = vadd.f32 %v2033, %v2050
          %2053 = vrot.lane.b32.xlu0 %v1965, 126
          %v2054 = vpop.permute.xlu0 %2053
          %2055 = vrot.lane.b32.xlu0 %v1966, 126
          %v2056 = vpop.permute.xlu0 %2055
          %v2057 = vsel %vm1215, %v2054, %v2056
          %v2061 = vsel %vm1215, %v2056, %v2054
          %v2062 = vmul.f32 %v2057, %v1224
          %v2063 = vmul.f32 %v2061, %v1228
          %2064 = vset.pattern.permute.xlu0 47
          %2065 = vperm.xlu0 %2064, %v440
          %v2066 = vpop.permute.xlu0 %2065
          %v2068 = vmul.f32 %v2066, %v2062
          %v2069 = vmul.f32 %v2066, %v2063
          %v2070 = vadd.f32 %v2051, %v2068
          %v2071 = vadd.f32 %v2052, %v2069
          %2072 = vrot.lane.b32.xlu0 %v1965, 125
          %v2073 = vpop.permute.xlu0 %2072
          %2074 = vrot.lane.b32.xlu0 %v1966, 125
          %v2075 = vpop.permute.xlu0 %2074
          %v2076 = vsel %vm1243, %v2073, %v2075
          %v2080 = vsel %vm1243, %v2075, %v2073
          %v2081 = vmul.f32 %v2076, %v1252
          %v2082 = vmul.f32 %v2080, %v1256
          %2083 = vset.pattern.permute.xlu0 48
          %2084 = vperm.xlu0 %2083, %v440
          %v2085 = vpop.permute.xlu0 %2084
          %v2087 = vmul.f32 %v2085, %v2081
          %v2088 = vmul.f32 %v2085, %v2082
          %v2089 = vadd.f32 %v2070, %v2087
          %v2090 = vadd.f32 %v2071, %v2088
          %v2091 = vpack.c.bf16 %v2089, %v2089
          %v2092 = vpack.c.bf16 %v2090, %v2090
          %v2095 = vunpack.c.l.b16 %v441
          %v2096 = vunpack.c.l.b16 %v442
          %v2097 = vpack.c.b16 %v2096, %v2095
          %vm2098 = vcmask 64512
          %v2100 = vsel %vm2098, %v2097, 0
          %v2103 = vsel %vm457, %v2091, 0
          %v2106 = vsel %vm457, %v2092, 0
          %2108 = vmatprep.subr.bf16.mxu0 %v2106
          %2109 = vmatpush1.bf16.msra.mxu0 %v2103
          %2110 = vmatprep.subr.bf16.mxu0 0
          %2111 = vmatpush1.bf16.msra.mxu0 0
          %2112 = vmatprep.subr.bf16.mxu0 0
          %2113 = vmatpush1.bf16.msra.mxu0 0
          %2114 = vmatprep.subr.bf16.mxu0 0
          %2115 = vmatpush1.bf16.msra.mxu0 0
          %2116 = vmatprep.subr.bf16.mxu0 0
          %2117 = vmatpush1.bf16.msra.mxu0 0
          %2118 = vmatprep.subr.bf16.mxu0 0
          %2119 = vmatpush1.bf16.msra.mxu0 0
          %2120 = vmatprep.subr.bf16.mxu0 0
          %2121 = vmatpush1.bf16.msra.mxu0 0
          %2122 = vmatprep.subr.bf16.mxu0 0
          %2123 = vmatpush1.bf16.msra.mxu0 0
          %2124 = vmatprep.subr.bf16.mxu0 0
          %2125 = vmatpush1.bf16.msra.mxu0 0
          %2126 = vmatprep.subr.bf16.mxu0 0
          %2127 = vmatpush1.bf16.msra.mxu0 0
          %2128 = vmatprep.subr.bf16.mxu0 0
          %2129 = vmatpush1.bf16.msra.mxu0 0
          %2130 = vmatprep.subr.bf16.mxu0 0
          %2131 = vmatpush1.bf16.msra.mxu0 0
          %2132 = vmatprep.subr.bf16.mxu0 0
          %2133 = vmatpush1.bf16.msra.mxu0 0
          %2134 = vmatprep.subr.bf16.mxu0 0
          %2135 = vmatpush1.bf16.msra.mxu0 0
          %2136 = vmatprep.subr.bf16.mxu0 0
          %2137 = vmatpush1.bf16.msra.mxu0 0
          %2138 = vmatprep.subr.bf16.mxu0 0
          %2139 = vmatpush1.bf16.msra.mxu0 0
          %2140 = vmatprep.mubr.bf16.mxu0 0
          %2141 = vmatmul.mubr.bf16.gmra.mrb[0].mxu0 %v2100
          %v2142 = vpop.f32.mrb[0].mxu0
          %v2143 = vadd.f32 0.0, %v2142
          %v2144 = vpop.f32.mrb[0].mxu0
          %v2145 = vadd.f32 0.0, %v2144
          %v2146 = vpop.f32.mrb[0].mxu0
          %v2147 = vadd.f32 0.0, %v2146
          %v2148 = vpop.f32.mrb[0].mxu0
          %v2149 = vadd.f32 0.0, %v2148
          %2150 = vdwg.mxu0
          %v2151 = vxor.u32 %v2147, 2147483648
          %v2152 = vxor.u32 %v2149, 2147483648
          %v2153 = vmul.f32 %v2151, 1.442695
          %v2154 = vpow.pop %v2153
          %v2155 = vmul.f32 %v2152, 1.442695
          %v2156 = vpow.pop %v2155
          %v2157 = vadd.f32 %v2154, 1.0
          %v2158 = vadd.f32 %v2156, 1.0
          %v2159 = vrcp.pop %v2157
          %v2160 = vmul.f32 1.0, %v2159
          %v2161 = vrcp.pop %v2158
          %v2162 = vmul.f32 1.0, %v2161
          %v2163 = vmul.f32 %v2143, %v2160
          %v2164 = vmul.f32 %v2145, %v2162
          %v2165 = vadd.f32 %v2163, %v2164
          %2166 = vadd.xlane.f32.xlu0 %v2165
          %v2167 = vpop.xlane.xlu0 %2166
          %v2168 = vmul.f32 %v2167, 0.00390625
          %v2170 = vsel %vm2098, %v443, 0
          %2172 = vmatprep.subr.mxu0 0.0
          %2173 = vmatpush1.msra.mxu0 %v2168
          %2174 = vmatprep.subr.mxu0 0.0
          %2175 = vmatpush1.msra.mxu0 0.0
          %2176 = vmatprep.subr.mxu0 0.0
          %2177 = vmatpush1.msra.mxu0 0.0
          %2178 = vmatprep.subr.mxu0 0.0
          %2179 = vmatpush1.msra.mxu0 0.0
          %2180 = vmatprep.subr.mxu0 0.0
          %2181 = vmatpush1.msra.mxu0 0.0
          %2182 = vmatprep.subr.mxu0 0.0
          %2183 = vmatpush1.msra.mxu0 0.0
          %2184 = vmatprep.subr.mxu0 0.0
          %2185 = vmatpush1.msra.mxu0 0.0
          %2186 = vmatprep.subr.mxu0 0.0
          %2187 = vmatpush1.msra.mxu0 0.0
          %2188 = vmatprep.subr.mxu0 0.0
          %2189 = vmatpush1.msra.mxu0 0.0
          %2190 = vmatprep.subr.mxu0 0.0
          %2191 = vmatpush1.msra.mxu0 0.0
          %2192 = vmatprep.subr.mxu0 0.0
          %2193 = vmatpush1.msra.mxu0 0.0
          %2194 = vmatprep.subr.mxu0 0.0
          %2195 = vmatpush1.msra.mxu0 0.0
          %2196 = vmatprep.subr.mxu0 0.0
          %2197 = vmatpush1.msra.mxu0 0.0
          %2198 = vmatprep.subr.mxu0 0.0
          %2199 = vmatpush1.msra.mxu0 0.0
          %2200 = vmatprep.subr.mxu0 0.0
          %2201 = vmatpush1.msra.mxu0 0.0
          %2202 = vmatprep.subr.mxu0 0.0
          %2203 = vmatpush1.msra.mxu0 0.0
          %2204 = vmatprep.subr.mxu0 0.0
          %2205 = vmatpush1.msra.mxu0 0.0
          %2206 = vmatprep.subr.mxu0 0.0
          %2207 = vmatpush1.msra.mxu0 0.0
          %2208 = vmatprep.subr.mxu0 0.0
          %2209 = vmatpush1.msra.mxu0 0.0
          %2210 = vmatprep.subr.mxu0 0.0
          %2211 = vmatpush1.msra.mxu0 0.0
          %2212 = vmatprep.subr.mxu0 0.0
          %2213 = vmatpush1.msra.mxu0 0.0
          %2214 = vmatprep.subr.mxu0 0.0
          %2215 = vmatpush1.msra.mxu0 0.0
          %2216 = vmatprep.subr.mxu0 0.0
          %2217 = vmatpush1.msra.mxu0 0.0
          %2218 = vmatprep.subr.mxu0 0.0
          %2219 = vmatpush1.msra.mxu0 0.0
          %2220 = vmatprep.subr.mxu0 0.0
          %2221 = vmatpush1.msra.mxu0 0.0
          %2222 = vmatprep.subr.mxu0 0.0
          %2223 = vmatpush1.msra.mxu0 0.0
          %2224 = vmatprep.subr.mxu0 0.0
          %2225 = vmatpush1.msra.mxu0 0.0
          %2226 = vmatprep.subr.mxu0 0.0
          %2227 = vmatpush1.msra.mxu0 0.0
          %2228 = vmatprep.subr.mxu0 0.0
          %2229 = vmatpush1.msra.mxu0 0.0
          %2230 = vmatprep.subr.mxu0 0.0
          %2231 = vmatpush1.msra.mxu0 0.0
          %2232 = vmatprep.subr.mxu0 0.0
          %2233 = vmatpush1.msra.mxu0 0.0
          %2234 = vmatprep.subr.mxu0 0.0
          %2235 = vmatpush1.msra.mxu0 0.0
          %2236 = vmatprep.mubr.f32.mxu0 0.0
          %2237 = vmatmul.mubr.f32.gmra.mrb[0].mxu0 %v2170
          %v2238 = vpop.f32.mrb[0].mxu0
          %v2239 = vadd.f32 0.0, %v2238
          %v2240 = vpop.f32.mrb[0].mxu0
          %2241 = vdwg.mxu0
          %v2242 = vmax.f32 %v2239, 0.0
          %v2244 = vsel %vm1142, %v444, 0
          %vm2246 = vcmask 1041408
          %v2248 = vsel %vm2246, %v2242, 0
          %2250 = vmatprep.subr.mxu0 0.0
          %2251 = vmatpush1.msra.mxu0 %v2248
          %2252 = vmatprep.subr.mxu0 0.0
          %2253 = vmatpush1.msra.mxu0 0.0
          %2254 = vmatprep.subr.mxu0 0.0
          %2255 = vmatpush1.msra.mxu0 0.0
          %2256 = vmatprep.subr.mxu0 0.0
          %2257 = vmatpush1.msra.mxu0 0.0
          %2258 = vmatprep.subr.mxu0 0.0
          %2259 = vmatpush1.msra.mxu0 0.0
          %2260 = vmatprep.subr.mxu0 0.0
          %2261 = vmatpush1.msra.mxu0 0.0
          %2262 = vmatprep.subr.mxu0 0.0
          %2263 = vmatpush1.msra.mxu0 0.0
          %2264 = vmatprep.subr.mxu0 0.0
          %2265 = vmatpush1.msra.mxu0 0.0
          %2266 = vmatprep.subr.mxu0 0.0
          %2267 = vmatpush1.msra.mxu0 0.0
          %2268 = vmatprep.subr.mxu0 0.0
          %2269 = vmatpush1.msra.mxu0 0.0
          %2270 = vmatprep.subr.mxu0 0.0
          %2271 = vmatpush1.msra.mxu0 0.0
          %2272 = vmatprep.subr.mxu0 0.0
          %2273 = vmatpush1.msra.mxu0 0.0
          %2274 = vmatprep.subr.mxu0 0.0
          %2275 = vmatpush1.msra.mxu0 0.0
          %2276 = vmatprep.subr.mxu0 0.0
          %2277 = vmatpush1.msra.mxu0 0.0
          %2278 = vmatprep.subr.mxu0 0.0
          %2279 = vmatpush1.msra.mxu0 0.0
          %2280 = vmatprep.subr.mxu0 0.0
          %2281 = vmatpush1.msra.mxu0 0.0
          %2282 = vmatprep.subr.mxu0 0.0
          %2283 = vmatpush1.msra.mxu0 0.0
          %2284 = vmatprep.subr.mxu0 0.0
          %2285 = vmatpush1.msra.mxu0 0.0
          %2286 = vmatprep.subr.mxu0 0.0
          %2287 = vmatpush1.msra.mxu0 0.0
          %2288 = vmatprep.subr.mxu0 0.0
          %2289 = vmatpush1.msra.mxu0 0.0
          %2290 = vmatprep.subr.mxu0 0.0
          %2291 = vmatpush1.msra.mxu0 0.0
          %2292 = vmatprep.subr.mxu0 0.0
          %2293 = vmatpush1.msra.mxu0 0.0
          %2294 = vmatprep.subr.mxu0 0.0
          %2295 = vmatpush1.msra.mxu0 0.0
          %2296 = vmatprep.subr.mxu0 0.0
          %2297 = vmatpush1.msra.mxu0 0.0
          %2298 = vmatprep.subr.mxu0 0.0
          %2299 = vmatpush1.msra.mxu0 0.0
          %2300 = vmatprep.subr.mxu0 0.0
          %2301 = vmatpush1.msra.mxu0 0.0
          %2302 = vmatprep.subr.mxu0 0.0
          %2303 = vmatpush1.msra.mxu0 0.0
          %2304 = vmatprep.subr.mxu0 0.0
          %2305 = vmatpush1.msra.mxu0 0.0
          %2306 = vmatprep.subr.mxu0 0.0
          %2307 = vmatpush1.msra.mxu0 0.0
          %2308 = vmatprep.subr.mxu0 0.0
          %2309 = vmatpush1.msra.mxu0 0.0
          %2310 = vmatprep.subr.mxu0 0.0
          %2311 = vmatpush1.msra.mxu0 0.0
          %2312 = vmatprep.subr.mxu0 0.0
          %2313 = vmatpush1.msra.mxu0 0.0
          %2314 = vmatprep.mubr.f32.mxu0 0.0
          %2315 = vmatmul.mubr.f32.gmra.mrb[0].mxu0 %v2244
          %v2316 = vpop.f32.mrb[0].mxu0
          %v2317 = vadd.f32 0.0, %v2316
          %v2318 = vpop.f32.mrb[0].mxu0
          %2319 = vdwg.mxu0
          %v2320 = vxor.u32 %v2317, 2147483648
          %v2321 = vmul.f32 %v2320, 1.442695
          %v2322 = vpow.pop %v2321
          %v2323 = vadd.f32 %v2322, 1.0
          %v2324 = vrcp.pop %v2323
          %v2325 = vmul.f32 1.0, %v2324
          %2327 = vset.pattern.permute.xlu0 0
          %2328 = vperm.xlu0 %2327, %v2325
          %v2329 = vpop.permute.xlu0 %2328
          %v2331 = vmul.f32 %v2163, %v2329
          %v2332 = vmul.f32 %v2164, %v2329
          %v2333 = vpack.c.bf16 %v2331, %v2331
          %v2334 = vpack.c.bf16 %v2332, %v2332
          %v2336 = vsel %vm2098, %v445, 0
          %v2339 = vsel %vm457, %v2333, 0
          %v2342 = vsel %vm457, %v2334, 0
          %2344 = vmatprep.subr.bf16.mxu0 %v2342
          %2345 = vmatpush1.bf16.msra.mxu0 %v2339
          %2346 = vmatprep.subr.bf16.mxu0 0
          %2347 = vmatpush1.bf16.msra.mxu0 0
          %2348 = vmatprep.subr.bf16.mxu0 0
          %2349 = vmatpush1.bf16.msra.mxu0 0
          %2350 = vmatprep.subr.bf16.mxu0 0
          %2351 = vmatpush1.bf16.msra.mxu0 0
          %2352 = vmatprep.subr.bf16.mxu0 0
          %2353 = vmatpush1.bf16.msra.mxu0 0
          %2354 = vmatprep.subr.bf16.mxu0 0
          %2355 = vmatpush1.bf16.msra.mxu0 0
          %2356 = vmatprep.subr.bf16.mxu0 0
          %2357 = vmatpush1.bf16.msra.mxu0 0
          %2358 = vmatprep.subr.bf16.mxu0 0
          %2359 = vmatpush1.bf16.msra.mxu0 0
          %2360 = vmatprep.subr.bf16.mxu0 0
          %2361 = vmatpush1.bf16.msra.mxu0 0
          %2362 = vmatprep.subr.bf16.mxu0 0
          %2363 = vmatpush1.bf16.msra.mxu0 0
          %2364 = vmatprep.subr.bf16.mxu0 0
          %2365 = vmatpush1.bf16.msra.mxu0 0
          %2366 = vmatprep.subr.bf16.mxu0 0
          %2367 = vmatpush1.bf16.msra.mxu0 0
          %2368 = vmatprep.subr.bf16.mxu0 0
          %2369 = vmatpush1.bf16.msra.mxu0 0
          %2370 = vmatprep.subr.bf16.mxu0 0
          %2371 = vmatpush1.bf16.msra.mxu0 0
          %2372 = vmatprep.subr.bf16.mxu0 0
          %2373 = vmatpush1.bf16.msra.mxu0 0
          %2374 = vmatprep.subr.bf16.mxu0 0
          %2375 = vmatpush1.bf16.msra.mxu0 0
          %2376 = vmatprep.mubr.bf16.mxu0 0
          %2377 = vmatmul.mubr.bf16.gmra.mrb[0].mxu0 %v2336
          %v2378 = vpop.f32.mrb[0].mxu0
          %v2379 = vadd.f32 0.0, %v2378
          %v2380 = vpop.f32.mrb[0].mxu0
          %v2381 = vadd.f32 0.0, %v2380
          %v2382 = vpop.f32.mrb[0].mxu0
          %v2383 = vpop.f32.mrb[0].mxu0
          %2384 = vdwg.mxu0
          %v2385 = vadd.f32 %v449, %v2379
          %v2386 = vadd.f32 %v450, %v2381
          %s2387 = smul.u32 %s425, 2
          %s2388 = smul.addr %s2387, 8
          %s2389 = scalar_lea.vmem %s420, %s2388 [#allocation7]
          %2390 = vst [vmem:[%s2389] sm:$0xff] %v2385
          %2391 = vst [vmem:[%s2389 + $0x8] sm:$0xff] %v2386
        $region77: #{tpu_custom_call.1} parent=63 // loop_footer
          %s429 = sadd.s32 1, %s425
        $region78: #{tpu_custom_call.1} parent=63 // loop_footer_branch
          %424 = sbr.rel target = $region74
        $region79: #{tpu_custom_call.1} parent=63 // loop_exit
          _
        %s2392 = sand.u32 %s273, 1
        %s2393 = scalar_lea.sflag [#allocation4], %s2392
        %s2394 = sand.u32 %s273, 1
        %s2395 = smul.addr %s2394, 48
        %s2396 = scalar_lea.vmem [#allocation7], %s2395
        // Predicated region
        $region80: #{tpu_custom_call.1} parent=63 // pred_check
          %p2397 = pneg %p283
        $region81: #{tpu_custom_call.1} parent=63 // pred_check_branch
          %2399 = sbr.rel (%p2397) target = $region83
        $region82: #{tpu_custom_call.1} parent=63 // pred_region
          %s2400 = smul.u32 3, %s29
          %s2402 = ssub.s32 768, 768
          %2403 = vsyncadd %s2393, %s2402
          %s2404 = smul.addr %s2400, 2
          %s2405 = smul.addr %s2404, 128
          %s2406 = scalar_lea.hbm %s11, %s2405
          %s2407 = sshll.u32 %s2396, 4
          %s2408 = int_to_ptr.vmem [resolvable:$true] %s2407
          %2413 = dma.vmem_to_hbm [thread:$0]  %s2408, 768, %s2406, %s2393, 256, 256, 16
        $region83: #{tpu_custom_call.1} parent=63 // pred_fallthru
          _
      $region64: #{tpu_custom_call.1} parent=5 // pred_fallthru
        _
      %p2414 = scmp.le.s32.totalorder 2, %s24
      // Predicated region
      $region84: #{tpu_custom_call.1} parent=5 // pred_check
        %p2415 = pneg %p2414
      $region85: #{tpu_custom_call.1} parent=5 // pred_check_branch
        %2417 = sbr.rel (%p2415) target = $region87
      $region86: #{tpu_custom_call.1} parent=5 // pred_region
        %s2418 = ssub.s32 %s24, 2
        // Predicated region
        $region88: #{tpu_custom_call.1} parent=86 // pred_check
          %p2419 = pneg %p289
        $region89: #{tpu_custom_call.1} parent=86 // pred_check_branch
          %2421 = sbr.rel (%p2419) target = $region91
        $region90: #{tpu_custom_call.1} parent=86 // pred_region
          %s2422 = sand.u32 %s274, 1
          %s2423 = scalar_lea.sflag [#allocation4], %s2422
          %s2424 = sand.u32 %s274, 1
          %s2425 = smul.addr %s2424, 48
          %s2426 = scalar_lea.vmem [#allocation7], %s2425
          %2427 = dma.done %s2423, 768
        $region91: #{tpu_custom_call.1} parent=86 // pred_fallthru
          _
      $region87: #{tpu_custom_call.1} parent=5 // pred_fallthru
        _
    $region6: #{tpu_custom_call.1} parent=1 // loop_footer
      %s28 = sadd.s32 1, %s24
    $region7: #{tpu_custom_call.1} parent=1 // loop_footer_branch
      %23 = sbr.rel target = $region3
    $region8: #{tpu_custom_call.1} parent=1 // loop_exit
      _
    %2428 = vsyncpa [#allocation3], 1
    %s2429 = scalar_lea.sflag [#allocation3], 1
    %2430 = vsyncpa %s2429, 1
    %2431 = vsyncpa [#allocation6], 1
    %2432 = vsyncpa [#allocation4], 1
    %s2433 = scalar_lea.sflag [#allocation4], 1
    %2434 = vsyncpa %s2433, 1

</llo_original>
